<compile_context>
chip_gen: v7x
topology: tpu7x:2x2x1
jax: 0.10.0
libtpu: 0.0.40
codegen_flags: <defaults>
</compile_context>

<pallas_src>
import functools
import math

import jax
import jax.numpy as jnp
from jax import lax
from jax.experimental import pallas as pl
from jax.experimental.pallas import tpu as pltpu

# ---------------------------------------------------------------------------
# Config: bert-base-chinese geometry (hidden=768 fixed by nn.Linear(768,1));
# depth / vocab reduced so the synthetic demo stays small & fast.
# ---------------------------------------------------------------------------
HIDDEN = 768
NUM_HEADS = 12
HEAD_DIM = HIDDEN // NUM_HEADS
INTERMEDIATE = 3072
NUM_LAYERS = 2          # bert-base has 12; reduced for a small runnable demo
VOCAB = 512             # bert-base-chinese has 21128; synthetic weights anyway
MAX_POS = 64
TYPE_VOCAB = 2
LN_EPS = 1e-12

# Explicit scoped-VMEM budget: above the 32 MiB default (useful on v5e/v6e),
# below v7x's 64 MiB physical VMEM. Actual per-kernel footprints are << this.
VMEM_LIMIT = 48 * 1024 * 1024


def _pick_tile(dim, pref):
    """Lane/contraction tile: prefer `pref` if it divides `dim`."""
    return pref if dim % pref == 0 else dim


def _largest_row_tile(m_pad, target):
    """Largest multiple of 8 that divides m_pad and is <= target."""
    if m_pad <= target:
        return m_pad
    for cand in range(target - target % 8, 7, -8):
        if m_pad % cand == 0:
            return cand
    return m_pad  # unreachable: 8 always divides m_pad


def _pad_rows(x, m_pad):
    return jnp.pad(x, ((0, m_pad - x.shape[0]), (0, 0)))


# ---------------------------------------------------------------------------
# Dense: y = x @ w + b  (optional fused exact-gelu epilogue)
# x, w are bf16 (MXU bf16 path); accumulation and epilogue are fp32.
# ---------------------------------------------------------------------------
def _dense_kernel(x_ref, w_ref, b_ref, o_ref, acc_ref, *, act):
    k = pl.program_id(2)

    @pl.when(k == 0)
    def _():
        acc_ref[...] = jnp.zeros_like(acc_ref)

    acc_ref[...] += jnp.dot(x_ref[...], w_ref[...],
                            preferred_element_type=jnp.float32)

    @pl.when(k == pl.num_programs(2) - 1)
    def _():
        y = acc_ref[...] + b_ref[...].astype(jnp.float32)
        if act == "gelu":   # exact (erf) GELU, as used by HF BERT
            y = 0.5 * y * (1.0 + lax.erf(y * (1.0 / math.sqrt(2.0))))
        o_ref[...] = y.astype(o_ref.dtype)


def dense(x, w, b, act=None, bm_target=256, bn_target=256, bk_target=256):
    """x: [M, K] bf16, w: [K, N] bf16, b: [N] f32 -> [M, N] (x.dtype)."""
    M, K = x.shape
    N = w.shape[1]
    m_pad = -(-M // 8) * 8
    if m_pad != M:
        x = _pad_rows(x, m_pad)
    bm = _largest_row_tile(m_pad, bm_target)
    bn = _pick_tile(N, bn_target)
    bk = _pick_tile(K, bk_target)
    grid = (m_pad // bm, N // bn, K // bk)
    out = pl.pallas_call(
        functools.partial(_dense_kernel, act=act),
        out_shape=jax.ShapeDtypeStruct((m_pad, N), x.dtype),
        grid_spec=pltpu.PrefetchScalarGridSpec(
            num_scalar_prefetch=0,
            grid=grid,
            in_specs=[
                pl.BlockSpec((bm, bk), lambda i, j, k: (i, k)),
                pl.BlockSpec((bk, bn), lambda i, j, k: (k, j)),
                pl.BlockSpec((1, bn), lambda i, j, k: (0, j)),
            ],
            out_specs=pl.BlockSpec((bm, bn), lambda i, j, k: (i, j)),
            scratch_shapes=[pltpu.VMEM((bm, bn), jnp.float32)],
        ),
        compiler_params=pltpu.CompilerParams(
            dimension_semantics=("parallel", "parallel", "arbitrary"),
            vmem_limit_bytes=VMEM_LIMIT),
    )(x, w, b.reshape(1, N))
    if m_pad != M:
        out = out[:M]
    return out


# ---------------------------------------------------------------------------
# Fused dense + bias + residual-add + LayerNorm.
# Output N (= HIDDEN) is kept as a single lane block so the LN statistics can
# be computed on the fp32 accumulator in the epilogue of the last K step.
# ---------------------------------------------------------------------------
def _dense_add_ln_kernel(x_ref, w_ref, b_ref, r_ref, g_ref, be_ref,
                         o_ref, acc_ref, *, eps):
    k = pl.program_id(1)

    @pl.when(k == 0)
    def _():
        acc_ref[...] = jnp.zeros_like(acc_ref)

    acc_ref[...] += jnp.dot(x_ref[...], w_ref[...],
                            preferred_element_type=jnp.float32)

    @pl.when(k == pl.num_programs(1) - 1)
    def _():
        y = (acc_ref[...] + b_ref[...].astype(jnp.float32)
             + r_ref[...].astype(jnp.float32))
        mean = jnp.mean(y, axis=-1, keepdims=True)
        c = y - mean
        var = jnp.mean(c * c, axis=-1, keepdims=True)
        yn = c * lax.rsqrt(var + eps)
        o_ref[...] = (yn * g_ref[...].astype(jnp.float32)
                      + be_ref[...].astype(jnp.float32)).astype(o_ref.dtype)


def dense_add_ln(x, w, b, residual, gamma, beta, eps=LN_EPS,
                 bm_target=256, bk_target=256):
    """(x @ w + b + residual) -> LayerNorm.  x:[M,K] bf16, w:[K,N] bf16."""
    M, K = x.shape
    N = w.shape[1]
    m_pad = -(-M // 8) * 8
    if m_pad != M:
        x = _pad_rows(x, m_pad)
        residual = _pad_rows(residual, m_pad)
    bm = _largest_row_tile(m_pad, bm_target)
    bk = _pick_tile(K, bk_target)
    grid = (m_pad // bm, K // bk)
    out = pl.pallas_call(
        functools.partial(_dense_add_ln_kernel, eps=eps),
        out_shape=jax.ShapeDtypeStruct((m_pad, N), x.dtype),
        grid_spec=pltpu.PrefetchScalarGridSpec(
            num_scalar_prefetch=0,
            grid=grid,
            in_specs=[
                pl.BlockSpec((bm, bk), lambda i, k: (i, k)),
                pl.BlockSpec((bk, N), lambda i, k: (k, 0)),
                pl.BlockSpec((1, N), lambda i, k: (0, 0)),
                pl.BlockSpec((bm, N), lambda i, k: (i, 0)),   # residual
                pl.BlockSpec((1, N), lambda i, k: (0, 0)),    # gamma
                pl.BlockSpec((1, N), lambda i, k: (0, 0)),    # beta
            ],
            out_specs=pl.BlockSpec((bm, N), lambda i, k: (i, 0)),
            scratch_shapes=[pltpu.VMEM((bm, N), jnp.float32)],
        ),
        compiler_params=pltpu.CompilerParams(
            dimension_semantics=("parallel", "arbitrary"),
            vmem_limit_bytes=VMEM_LIMIT),
    )(x, w, b.reshape(1, N), residual,
      gamma.reshape(1, N), beta.reshape(1, N))
    if m_pad != M:
        out = out[:M]
    return out


# ---------------------------------------------------------------------------
# Plain LayerNorm (embeddings), tiled over rows (statistics in fp32).
# ---------------------------------------------------------------------------
def _ln_kernel(x_ref, g_ref, b_ref, o_ref, *, eps):
    x = x_ref[...].astype(jnp.float32)
    mean = jnp.mean(x, axis=-1, keepdims=True)
    c = x - mean
    var = jnp.mean(c * c, axis=-1, keepdims=True)
    y = c * lax.rsqrt(var + eps)
    o_ref[...] = (y * g_ref[...].astype(jnp.float32)
                  + b_ref[...].astype(jnp.float32)).astype(o_ref.dtype)


def layernorm(x, gamma, beta, eps=LN_EPS, bm_target=512):
    M, H = x.shape
    m_pad = -(-M // 8) * 8
    if m_pad != M:
        x = _pad_rows(x, m_pad)
    bm = _largest_row_tile(m_pad, bm_target)
    out = pl.pallas_call(
        functools.partial(_ln_kernel, eps=eps),
        out_shape=jax.ShapeDtypeStruct((m_pad, H), x.dtype),
        grid_spec=pltpu.PrefetchScalarGridSpec(
            num_scalar_prefetch=0,
            grid=(m_pad // bm,),
            in_specs=[
                pl.BlockSpec((bm, H), lambda i: (i, 0)),
                pl.BlockSpec((1, H), lambda i: (0, 0)),
                pl.BlockSpec((1, H), lambda i: (0, 0)),
            ],
            out_specs=pl.BlockSpec((bm, H), lambda i: (i, 0)),
        ),
        compiler_params=pltpu.CompilerParams(
            dimension_semantics=("parallel",),
            vmem_limit_bytes=VMEM_LIMIT),
    )(x, gamma.reshape(1, H), beta.reshape(1, H))
    if m_pad != M:
        out = out[:M]
    return out


# ---------------------------------------------------------------------------
# Scaled-dot-product attention, G heads per grid step (no mask: HF default
# all-ones attention mask). bf16 matmuls, fp32 softmax, EUP reciprocal.
# The 1/sum(p) normalization is applied to the P.V result (S*D multiplies
# instead of S*S).
# ---------------------------------------------------------------------------
def _attention_kernel(q_ref, k_ref, v_ref, o_ref, *, scale):
    s = jnp.einsum('gqd,gkd->gqk', q_ref[...], k_ref[...],
                   preferred_element_type=jnp.float32) * scale
    s = s - jnp.max(s, axis=-1, keepdims=True)
    p = jnp.exp(s)
    inv = pl.reciprocal(jnp.sum(p, axis=-1, keepdims=True), approx=True)
    ctx = jnp.einsum('gqk,gkd->gqd', p.astype(v_ref.dtype), v_ref[...],
                     preferred_element_type=jnp.float32)
    o_ref[...] = (ctx * inv).astype(o_ref.dtype)


def attention(q, k, v, heads_per_block=4):
    """q, k, v: [B*H, S, D] -> [B*H, S, D]."""
    BH, S, D = q.shape
    g = min(heads_per_block, BH)
    while BH % g:
        g -= 1
    spec = pl.BlockSpec((g, S, D), lambda i: (i, 0, 0))
    return pl.pallas_call(
        functools.partial(_attention_kernel, scale=1.0 / math.sqrt(D)),
        out_shape=jax.ShapeDtypeStruct((BH, S, D), q.dtype),
        grid_spec=pltpu.PrefetchScalarGridSpec(
            num_scalar_prefetch=0,
            grid=(BH // g,),
            in_specs=[spec, spec, spec],
            out_specs=spec,
        ),
        compiler_params=pltpu.CompilerParams(
            dimension_semantics=("parallel",),
            vmem_limit_bytes=VMEM_LIMIT),
    )(q, k, v)


# ---------------------------------------------------------------------------
# Parameter init (deterministic, synthetic — NOT a checkpoint load)
# Matmul weights stored in bf16; biases / LN params / head in fp32.
# ---------------------------------------------------------------------------
def init_params(key):
    idx = [0]

    def nxt():
        idx[0] += 1
        return jax.random.fold_in(key, idx[0])

    def w(shape, dtype=jnp.bfloat16, scale=0.02):
        return (scale * jax.random.normal(nxt(), shape)).astype(dtype)

    params = {
        "word_emb": w((VOCAB, HIDDEN)),
        "pos_emb": w((MAX_POS, HIDDEN)),
        "type_emb": w((TYPE_VOCAB, HIDDEN)),
        "emb_ln_g": jnp.ones((HIDDEN,), jnp.float32),
        "emb_ln_b": jnp.zeros((HIDDEN,), jnp.float32),
        "layers": [],
        "pool_w": w((HIDDEN, HIDDEN), jnp.float32),
        "pool_b": jnp.zeros((HIDDEN,), jnp.float32),
        "out_w": w((HIDDEN, 1), jnp.float32),        # nn.Linear(768, 1)
        "out_b": jnp.zeros((1,), jnp.float32),
    }
    for _ in range(NUM_LAYERS):
        params["layers"].append({
            # fused Q/K/V projection: columns [0:768]=Q, [768:1536]=K, rest=V
            "qkv_w": w((HIDDEN, 3 * HIDDEN)),
            "qkv_b": jnp.zeros((3 * HIDDEN,), jnp.float32),
            "o_w": w((HIDDEN, HIDDEN)), "o_b": jnp.zeros((HIDDEN,), jnp.float32),
            "ln1_g": jnp.ones((HIDDEN,), jnp.float32),
            "ln1_b": jnp.zeros((HIDDEN,), jnp.float32),
            "ffn1_w": w((HIDDEN, INTERMEDIATE)),
            "ffn1_b": jnp.zeros((INTERMEDIATE,), jnp.float32),
            "ffn2_w": w((INTERMEDIATE, HIDDEN)),
            "ffn2_b": jnp.zeros((HIDDEN,), jnp.float32),
            "ln2_g": jnp.ones((HIDDEN,), jnp.float32),
            "ln2_b": jnp.zeros((HIDDEN,), jnp.float32),
        })
    return params


# ---------------------------------------------------------------------------
# Forward: BertModel(input_ids, token_type_ids)[1] -> Linear(768,1) -> view(-1)
# ---------------------------------------------------------------------------
def bert_forward(params, input_ids, token_type_ids):
    B, S = input_ids.shape

    # Embeddings (gathers are glue; LayerNorm is a Pallas kernel)
    emb = (params["word_emb"][input_ids]
           + params["pos_emb"][jnp.arange(S)][None, :, :]
           + params["type_emb"][token_type_ids])
    x = emb.reshape(B * S, HIDDEN).astype(jnp.bfloat16)
    x = layernorm(x, params["emb_ln_g"], params["emb_ln_b"])
    # TODO(synk): dropout (module calls encoder.train()) omitted — stochastic,
    # not reproducible deterministically across frameworks.

    def to_heads(t):
        return (t.reshape(B, S, NUM_HEADS, HEAD_DIM)
                 .transpose(0, 2, 1, 3)
                 .reshape(B * NUM_HEADS, S, HEAD_DIM))

    for lyr in params["layers"]:
        qkv = dense(x, lyr["qkv_w"], lyr["qkv_b"])          # fused QKV
        q, k, v = jnp.split(qkv, 3, axis=1)
        ctx = attention(to_heads(q), to_heads(k), to_heads(v))
        ctx = (ctx.reshape(B, NUM_HEADS, S, HEAD_DIM)
                  .transpose(0, 2, 1, 3)
                  .reshape(B * S, HIDDEN))
        # output projection + residual + LayerNorm fused in one kernel
        x = dense_add_ln(ctx, lyr["o_w"], lyr["o_b"],
                         x, lyr["ln1_g"], lyr["ln1_b"])

        h = dense(x, lyr["ffn1_w"], lyr["ffn1_b"], act="gelu")
        # FFN-down projection + residual + LayerNorm fused in one kernel
        x = dense_add_ln(h, lyr["ffn2_w"], lyr["ffn2_b"],
                         x, lyr["ln2_g"], lyr["ln2_b"])

    hidden = x.reshape(B, S, HIDDEN)
    cls = hidden[:, 0, :].astype(jnp.float32)                     # [B, HIDDEN]
    # Pooler (tanh) + Linear(768,1): negligible FLOPs, done in plain JAX to
    # avoid a fully-masked 1-lane Pallas output block and launch overhead.
    pooled = jnp.tanh(cls @ params["pool_w"] + params["pool_b"])  # [B, HIDDEN]
    logits = pooled @ params["out_w"] + params["out_b"]           # [B, 1]
    return logits.reshape(-1)                                     # .view(-1)


if __name__ == "__main__":
    key = jax.random.PRNGKey(0)
    params = init_params(jax.random.fold_in(key, 1))

    B, S = 2, 8
    ids_key, type_key = jax.random.split(jax.random.fold_in(key, 2))
    input_ids = jax.random.randint(ids_key, (B, S), 0, VOCAB, dtype=jnp.int32)
    token_type_ids = jax.random.randint(type_key, (B, S), 0, TYPE_VOCAB,
                                        dtype=jnp.int32)

    fwd = jax.jit(bert_forward)
    out = jax.block_until_ready(fwd(params, input_ids, token_type_ids))
    assert out.shape == (B,) and out.dtype == jnp.float32
    print("KERNEL_OK")
</pallas_src>

<mosaic_0001>
module attributes {stable_mosaic.version = 11 : i64} {
  func.func @_dense_kernel(%arg0: i32, %arg1: i32, %arg2: i32, %arg3: memref<16x256xbf16, #tpu.memory_space<vmem>>, %arg4: memref<256x256xbf16, #tpu.memory_space<vmem>>, %arg5: memref<1x256xf32, #tpu.memory_space<vmem>>, %arg6: memref<16x256xbf16, #tpu.memory_space<vmem>>, %arg7: memref<16x256xf32, #tpu.memory_space<vmem>>) attributes {dimension_semantics = [#tpu.dimension_semantics<parallel>, #tpu.dimension_semantics<parallel>, #tpu.dimension_semantics<arbitrary>], iteration_bounds = array<i64: 1, 9, 3>, scalar_prefetch = 0 : i64, scratch_operands = 1 : i64, tpu.core_type = #tpu.core_type<tc>, window_params = [{transform_indices = @transform_0, window_bounds = array<i64: 16, 256>}, {transform_indices = @transform_1, window_bounds = array<i64: 256, 256>}, {transform_indices = @transform_2, window_bounds = array<i64: 1, 256>}, {transform_indices = @transform_3, window_bounds = array<i64: 16, 256>}]} {
    %c0_i32 = arith.constant 0 : i32
    %0 = arith.cmpi eq, %arg2, %c0_i32 : i32
    %1 = arith.extui %0 : i1 to i32
    %c0_i32_0 = arith.constant 0 : i32
    %2 = arith.cmpi ne, %1, %c0_i32_0 : i32
    scf.if %2 {
      %cst_9 = arith.constant 0.000000e+00 : f32
      %12 = vector.broadcast %cst_9 : f32 to vector<16x256xf32>
      %c0_10 = arith.constant 0 : index
      %c0_11 = arith.constant 0 : index
      %13 = vector.load %arg7[%c0_10, %c0_11] : memref<16x256xf32, #tpu.memory_space<vmem>>, vector<16x256xf32>
      tpu.vector_store %arg7[%c0_10, %c0_11], %12 {strides = array<i32>} : memref<16x256xf32, #tpu.memory_space<vmem>>, vector<16x256xf32>,
    } else {
    }
    %c0 = arith.constant 0 : index
    %c0_1 = arith.constant 0 : index
    %3 = vector.load %arg7[%c0, %c0_1] : memref<16x256xf32, #tpu.memory_space<vmem>>, vector<16x256xf32>
    %c0_2 = arith.constant 0 : index
    %c0_3 = arith.constant 0 : index
    %4 = vector.load %arg3[%c0_2, %c0_3] : memref<16x256xbf16, #tpu.memory_space<vmem>>, vector<16x256xbf16>
    %c0_4 = arith.constant 0 : index
    %c0_5 = arith.constant 0 : index
    %5 = vector.load %arg4[%c0_4, %c0_5] : memref<256x256xbf16, #tpu.memory_space<vmem>>, vector<256x256xbf16>
    %cst = arith.constant dense<0.000000e+00> : vector<16x256xf32>
    %6 = tpu.matmul %4, %5, %cst {dimension_numbers = #tpu.dot_dimension_numbers<[1], [0], [0], [1], [0, 0, 1, 1], [], []>} : vector<16x256xbf16>, vector<256x256xbf16>, vector<16x256xf32> -> vector<16x256xf32>
    %7 = arith.addf %3, %6 : vector<16x256xf32>
    %c0_6 = arith.constant 0 : index
    %c0_7 = arith.constant 0 : index
    %8 = vector.load %arg7[%c0_6, %c0_7] : memref<16x256xf32, #tpu.memory_space<vmem>>, vector<16x256xf32>
    tpu.vector_store %arg7[%c0_6, %c0_7], %7 {strides = array<i32>} : memref<16x256xf32, #tpu.memory_space<vmem>>, vector<16x256xf32>,
    %c2_i32 = arith.constant 2 : i32
    %9 = arith.cmpi eq, %arg2, %c2_i32 : i32
    %10 = arith.extui %9 : i1 to i32
    %c0_i32_8 = arith.constant 0 : i32
    %11 = arith.cmpi ne, %10, %c0_i32_8 : i32
    scf.if %11 {
      %c0_9 = arith.constant 0 : index
      %c0_10 = arith.constant 0 : index
      %12 = vector.load %arg7[%c0_9, %c0_10] : memref<16x256xf32, #tpu.memory_space<vmem>>, vector<16x256xf32>
      %c0_11 = arith.constant 0 : index
      %c0_12 = arith.constant 0 : index
      %13 = vector.load %arg5[%c0_11, %c0_12] : memref<1x256xf32, #tpu.memory_space<vmem>>, vector<1x256xf32>
      %14 = vector.broadcast %13 : vector<1x256xf32> to vector<16x256xf32>
      %15 = arith.addf %12, %14 : vector<16x256xf32>
      %16 = arith.truncf %15 : vector<16x256xf32> to vector<16x256xbf16>
      %c0_13 = arith.constant 0 : index
      %c0_14 = arith.constant 0 : index
      %17 = vector.load %arg6[%c0_13, %c0_14] : memref<16x256xbf16, #tpu.memory_space<vmem>>, vector<16x256xbf16>
      tpu.vector_store %arg6[%c0_13, %c0_14], %16 {strides = array<i32>} : memref<16x256xbf16, #tpu.memory_space<vmem>>, vector<16x256xbf16>,
    } else {
    }
    return
  }
  func.func @transform_0(%arg0: i32, %arg1: i32, %arg2: i32) -> (i32, i32) {
    %c0_i32 = arith.constant 0 : i32
    return %arg0, %arg2 : i32, i32
  }
  func.func @transform_1(%arg0: i32, %arg1: i32, %arg2: i32) -> (i32, i32) {
    %c0_i32 = arith.constant 0 : i32
    return %arg2, %arg1 : i32, i32
  }
  func.func @transform_2(%arg0: i32, %arg1: i32, %arg2: i32) -> (i32, i32) {
    %c0_i32 = arith.constant 0 : i32
    %c0_i32_0 = arith.constant 0 : i32
    return %c0_i32, %arg1 : i32, i32
  }
  func.func @transform_3(%arg0: i32, %arg1: i32, %arg2: i32) -> (i32, i32) {
    %c0_i32 = arith.constant 0 : i32
    return %arg0, %arg1 : i32, i32
  }
}

module attributes {stable_mosaic.version = 11 : i64} {
  func.func @_ln_kernel(%arg0: i32, %arg1: memref<16x768xbf16, #tpu.memory_space<vmem>>, %arg2: memref<1x768xf32, #tpu.memory_space<vmem>>, %arg3: memref<1x768xf32, #tpu.memory_space<vmem>>, %arg4: memref<16x768xbf16, #tpu.memory_space<vmem>>) attributes {dimension_semantics = [#tpu.dimension_semantics<parallel>], iteration_bounds = array<i64: 1>, scalar_prefetch = 0 : i64, scratch_operands = 0 : i64, tpu.core_type = #tpu.core_type<tc>, window_params = [{transform_indices = @transform_0, window_bounds = array<i64: 16, 768>}, {pipeline_mode = #tpu.pipeline_mode<synchronous>, transform_indices = @transform_1, window_bounds = array<i64: 1, 768>}, {pipeline_mode = #tpu.pipeline_mode<synchronous>, transform_indices = @transform_2, window_bounds = array<i64: 1, 768>}, {transform_indices = @transform_3, window_bounds = array<i64: 16, 768>}]} {
    %c0 = arith.constant 0 : index
    %c0_0 = arith.constant 0 : index
    %0 = vector.load %arg1[%c0, %c0_0] : memref<16x768xbf16, #tpu.memory_space<vmem>>, vector<16x768xbf16>
    %1 = arith.extf %0 : vector<16x768xbf16> to vector<16x768xf32>
    %cst = arith.constant dense<0.000000e+00> : vector<16xf32>
    %2 = vector.multi_reduction <add>, %1, %cst [1] : vector<16x768xf32> to vector<16xf32>
    %3 = vector.shape_cast %2 : vector<16xf32> to vector<16x1xf32>
    %cst_1 = arith.constant 7.680000e+02 : f32
    %4 = vector.broadcast %cst_1 : f32 to vector<16x1xf32>
    %5 = arith.divf %3, %4 : vector<16x1xf32>
    %6 = vector.broadcast %5 : vector<16x1xf32> to vector<16x768xf32>
    %7 = arith.subf %1, %6 : vector<16x768xf32>
    %8 = arith.mulf %7, %7 : vector<16x768xf32>
    %cst_2 = arith.constant dense<0.000000e+00> : vector<16xf32>
    %9 = vector.multi_reduction <add>, %8, %cst_2 [1] : vector<16x768xf32> to vector<16xf32>
    %10 = vector.shape_cast %9 : vector<16xf32> to vector<16x1xf32>
    %cst_3 = arith.constant 7.680000e+02 : f32
    %11 = vector.broadcast %cst_3 : f32 to vector<16x1xf32>
    %12 = arith.divf %10, %11 : vector<16x1xf32>
    %cst_4 = arith.constant 9.99999996E-13 : f32
    %13 = vector.broadcast %cst_4 : f32 to vector<16x1xf32>
    %14 = arith.addf %12, %13 : vector<16x1xf32>
    %15 = math.rsqrt %14 : vector<16x1xf32>
    %16 = vector.broadcast %15 : vector<16x1xf32> to vector<16x768xf32>
    %17 = arith.mulf %7, %16 : vector<16x768xf32>
    %c0_5 = arith.constant 0 : index
    %c0_6 = arith.constant 0 : index
    %18 = vector.load %arg2[%c0_5, %c0_6] : memref<1x768xf32, #tpu.memory_space<vmem>>, vector<1x768xf32>
    %19 = vector.broadcast %18 : vector<1x768xf32> to vector<16x768xf32>
    %20 = arith.mulf %17, %19 : vector<16x768xf32>
    %c0_7 = arith.constant 0 : index
    %c0_8 = arith.constant 0 : index
    %21 = vector.load %arg3[%c0_7, %c0_8] : memref<1x768xf32, #tpu.memory_space<vmem>>, vector<1x768xf32>
    %22 = vector.broadcast %21 : vector<1x768xf32> to vector<16x768xf32>
    %23 = arith.addf %20, %22 : vector<16x768xf32>
    %24 = arith.truncf %23 : vector<16x768xf32> to vector<16x768xbf16>
    %c0_9 = arith.constant 0 : index
    %c0_10 = arith.constant 0 : index
    %25 = vector.load %arg4[%c0_9, %c0_10] : memref<16x768xbf16, #tpu.memory_space<vmem>>, vector<16x768xbf16>
    tpu.vector_store %arg4[%c0_9, %c0_10], %24 {strides = array<i32>} : memref<16x768xbf16, #tpu.memory_space<vmem>>, vector<16x768xbf16>,
    return
  }
  func.func @transform_0(%arg0: i32) -> (i32, i32) {
    %c0_i32 = arith.constant 0 : i32
    %c0_i32_0 = arith.constant 0 : i32
    return %arg0, %c0_i32 : i32, i32
  }
  func.func @transform_1(%arg0: i32) -> (i32, i32) {
    %c0_i32 = arith.constant 0 : i32
    %c0_i32_0 = arith.constant 0 : i32
    %c0_i32_1 = arith.constant 0 : i32
    return %c0_i32, %c0_i32_0 : i32, i32
  }
  func.func @transform_2(%arg0: i32) -> (i32, i32) {
    %c0_i32 = arith.constant 0 : i32
    %c0_i32_0 = arith.constant 0 : i32
    %c0_i32_1 = arith.constant 0 : i32
    return %c0_i32, %c0_i32_0 : i32, i32
  }
  func.func @transform_3(%arg0: i32) -> (i32, i32) {
    %c0_i32 = arith.constant 0 : i32
    %c0_i32_0 = arith.constant 0 : i32
    return %arg0, %c0_i32 : i32, i32
  }
}

module attributes {stable_mosaic.version = 11 : i64} {
  func.func @_attention_kernel(%arg0: i32, %arg1: memref<4x8x64xbf16, #tpu.memory_space<vmem>>, %arg2: memref<4x8x64xbf16, #tpu.memory_space<vmem>>, %arg3: memref<4x8x64xbf16, #tpu.memory_space<vmem>>, %arg4: memref<4x8x64xbf16, #tpu.memory_space<vmem>>) attributes {dimension_semantics = [#tpu.dimension_semantics<parallel>], iteration_bounds = array<i64: 6>, scalar_prefetch = 0 : i64, scratch_operands = 0 : i64, tpu.core_type = #tpu.core_type<tc>, window_params = [{transform_indices = @transform_0, window_bounds = array<i64: 4, 8, 64>}, {transform_indices = @transform_1, window_bounds = array<i64: 4, 8, 64>}, {transform_indices = @transform_2, window_bounds = array<i64: 4, 8, 64>}, {transform_indices = @transform_3, window_bounds = array<i64: 4, 8, 64>}]} {
    %c0 = arith.constant 0 : index
    %c0_0 = arith.constant 0 : index
    %c0_1 = arith.constant 0 : index
    %0 = vector.load %arg1[%c0, %c0_0, %c0_1] : memref<4x8x64xbf16, #tpu.memory_space<vmem>>, vector<4x8x64xbf16>
    %c0_2 = arith.constant 0 : index
    %c0_3 = arith.constant 0 : index
    %c0_4 = arith.constant 0 : index
    %1 = vector.load %arg2[%c0_2, %c0_3, %c0_4] : memref<4x8x64xbf16, #tpu.memory_space<vmem>>, vector<4x8x64xbf16>
    "tpu.trace_start"() <{level = 10 : i32, message = "gqd,gkd->gqk"}> : () -> ()
    %cst = arith.constant dense<0.000000e+00> : vector<4x8x8xf32>
    %2 = tpu.matmul %0, %1, %cst {dimension_numbers = #tpu.dot_dimension_numbers<[2], [2], [1], [1], [0, 0, 0, 1, 1, 1], [0], [0]>} : vector<4x8x64xbf16>, vector<4x8x64xbf16>, vector<4x8x8xf32> -> vector<4x8x8xf32>
    "tpu.trace_stop"() : () -> ()
    %cst_5 = arith.constant 1.250000e-01 : f32
    %3 = vector.broadcast %cst_5 : f32 to vector<4x8x8xf32>
    %4 = arith.mulf %2, %3 : vector<4x8x8xf32>
    %cst_6 = arith.constant dense<0xFF800000> : vector<4x8xf32>
    %5 = vector.multi_reduction <maximumf>, %4, %cst_6 [2] : vector<4x8x8xf32> to vector<4x8xf32>
    %6 = vector.shape_cast %5 : vector<4x8xf32> to vector<4x8x1xf32>
    %7 = vector.broadcast %6 : vector<4x8x1xf32> to vector<4x8x8xf32>
    %8 = arith.subf %4, %7 : vector<4x8x8xf32>
    %9 = math.exp %8 : vector<4x8x8xf32>
    %cst_7 = arith.constant dense<0.000000e+00> : vector<4x8xf32>
    %10 = vector.multi_reduction <add>, %9, %cst_7 [2] : vector<4x8x8xf32> to vector<4x8xf32>
    %11 = vector.shape_cast %10 : vector<4x8xf32> to vector<4x8x1xf32>
    %12 = tpu.reciprocal %11 {approx = true} : vector<4x8x1xf32> -> vector<4x8x1xf32>
    %13 = arith.truncf %9 : vector<4x8x8xf32> to vector<4x8x8xbf16>
    %c0_8 = arith.constant 0 : index
    %c0_9 = arith.constant 0 : index
    %c0_10 = arith.constant 0 : index
    %14 = vector.load %arg3[%c0_8, %c0_9, %c0_10] : memref<4x8x64xbf16, #tpu.memory_space<vmem>>, vector<4x8x64xbf16>
    "tpu.trace_start"() <{level = 10 : i32, message = "gqk,gkd->gqd"}> : () -> ()
    %cst_11 = arith.constant dense<0.000000e+00> : vector<4x8x64xf32>
    %15 = tpu.matmul %13, %14, %cst_11 {dimension_numbers = #tpu.dot_dimension_numbers<[2], [1], [1], [2], [0, 0, 0, 1, 1, 2], [0], [0]>} : vector<4x8x8xbf16>, vector<4x8x64xbf16>, vector<4x8x64xf32> -> vector<4x8x64xf32>
    "tpu.trace_stop"() : () -> ()
    %16 = vector.broadcast %12 : vector<4x8x1xf32> to vector<4x8x64xf32>
    %17 = arith.mulf %15, %16 : vector<4x8x64xf32>
    %18 = arith.truncf %17 : vector<4x8x64xf32> to vector<4x8x64xbf16>
    %c0_12 = arith.constant 0 : index
    %c0_13 = arith.constant 0 : index
    %c0_14 = arith.constant 0 : index
    %19 = vector.load %arg4[%c0_12, %c0_13, %c0_14] : memref<4x8x64xbf16, #tpu.memory_space<vmem>>, vector<4x8x64xbf16>
    tpu.vector_store %arg4[%c0_12, %c0_13, %c0_14], %18 {strides = array<i32>} : memref<4x8x64xbf16, #tpu.memory_space<vmem>>, vector<4x8x64xbf16>,
    return
  }
  func.func @transform_0(%arg0: i32) -> (i32, i32, i32) {
    %c0_i32 = arith.constant 0 : i32
    %c0_i32_0 = arith.constant 0 : i32
    %c0_i32_1 = arith.constant 0 : i32
    return %arg0, %c0_i32, %c0_i32_0 : i32, i32, i32
  }
  func.func @transform_1(%arg0: i32) -> (i32, i32, i32) {
    %c0_i32 = arith.constant 0 : i32
    %c0_i32_0 = arith.constant 0 : i32
    %c0_i32_1 = arith.constant 0 : i32
    return %arg0, %c0_i32, %c0_i32_0 : i32, i32, i32
  }
  func.func @transform_2(%arg0: i32) -> (i32, i32, i32) {
    %c0_i32 = arith.constant 0 : i32
    %c0_i32_0 = arith.constant 0 : i32
    %c0_i32_1 = arith.constant 0 : i32
    return %arg0, %c0_i32, %c0_i32_0 : i32, i32, i32
  }
  func.func @transform_3(%arg0: i32) -> (i32, i32, i32) {
    %c0_i32 = arith.constant 0 : i32
    %c0_i32_0 = arith.constant 0 : i32
    %c0_i32_1 = arith.constant 0 : i32
    return %arg0, %c0_i32, %c0_i32_0 : i32, i32, i32
  }
}

module attributes {stable_mosaic.version = 11 : i64} {
  func.func @_dense_add_ln_kernel(%arg0: i32, %arg1: i32, %arg2: memref<16x256xbf16, #tpu.memory_space<vmem>>, %arg3: memref<256x768xbf16, #tpu.memory_space<vmem>>, %arg4: memref<1x768xf32, #tpu.memory_space<vmem>>, %arg5: memref<16x768xbf16, #tpu.memory_space<vmem>>, %arg6: memref<1x768xf32, #tpu.memory_space<vmem>>, %arg7: memref<1x768xf32, #tpu.memory_space<vmem>>, %arg8: memref<16x768xbf16, #tpu.memory_space<vmem>>, %arg9: memref<16x768xf32, #tpu.memory_space<vmem>>) attributes {dimension_semantics = [#tpu.dimension_semantics<parallel>, #tpu.dimension_semantics<arbitrary>], iteration_bounds = array<i64: 1, 3>, scalar_prefetch = 0 : i64, scratch_operands = 1 : i64, tpu.core_type = #tpu.core_type<tc>, window_params = [{transform_indices = @transform_0, window_bounds = array<i64: 16, 256>}, {transform_indices = @transform_1, window_bounds = array<i64: 256, 768>}, {pipeline_mode = #tpu.pipeline_mode<synchronous>, transform_indices = @transform_2, window_bounds = array<i64: 1, 768>}, {transform_indices = @transform_3, window_bounds = array<i64: 16, 768>}, {pipeline_mode = #tpu.pipeline_mode<synchronous>, transform_indices = @transform_4, window_bounds = array<i64: 1, 768>}, {pipeline_mode = #tpu.pipeline_mode<synchronous>, transform_indices = @transform_5, window_bounds = array<i64: 1, 768>}, {transform_indices = @transform_6, window_bounds = array<i64: 16, 768>}]} {
    %c0_i32 = arith.constant 0 : i32
    %0 = arith.cmpi eq, %arg1, %c0_i32 : i32
    %1 = arith.extui %0 : i1 to i32
    %c0_i32_0 = arith.constant 0 : i32
    %2 = arith.cmpi ne, %1, %c0_i32_0 : i32
    scf.if %2 {
      %cst_9 = arith.constant 0.000000e+00 : f32
      %12 = vector.broadcast %cst_9 : f32 to vector<16x768xf32>
      %c0_10 = arith.constant 0 : index
      %c0_11 = arith.constant 0 : index
      %13 = vector.load %arg9[%c0_10, %c0_11] : memref<16x768xf32, #tpu.memory_space<vmem>>, vector<16x768xf32>
      tpu.vector_store %arg9[%c0_10, %c0_11], %12 {strides = array<i32>} : memref<16x768xf32, #tpu.memory_space<vmem>>, vector<16x768xf32>,
    } else {
    }
    %c0 = arith.constant 0 : index
    %c0_1 = arith.constant 0 : index
    %3 = vector.load %arg9[%c0, %c0_1] : memref<16x768xf32, #tpu.memory_space<vmem>>, vector<16x768xf32>
    %c0_2 = arith.constant 0 : index
    %c0_3 = arith.constant 0 : index
    %4 = vector.load %arg2[%c0_2, %c0_3] : memref<16x256xbf16, #tpu.memory_space<vmem>>, vector<16x256xbf16>
    %c0_4 = arith.constant 0 : index
    %c0_5 = arith.constant 0 : index
    %5 = vector.load %arg3[%c0_4, %c0_5] : memref<256x768xbf16, #tpu.memory_space<vmem>>, vector<256x768xbf16>
    %cst = arith.constant dense<0.000000e+00> : vector<16x768xf32>
    %6 = tpu.matmul %4, %5, %cst {dimension_numbers = #tpu.dot_dimension_numbers<[1], [0], [0], [1], [0, 0, 1, 1], [], []>} : vector<16x256xbf16>, vector<256x768xbf16>, vector<16x768xf32> -> vector<16x768xf32>
    %7 = arith.addf %3, %6 : vector<16x768xf32>
    %c0_6 = arith.constant 0 : index
    %c0_7 = arith.constant 0 : index
    %8 = vector.load %arg9[%c0_6, %c0_7] : memref<16x768xf32, #tpu.memory_space<vmem>>, vector<16x768xf32>
    tpu.vector_store %arg9[%c0_6, %c0_7], %7 {strides = array<i32>} : memref<16x768xf32, #tpu.memory_space<vmem>>, vector<16x768xf32>,
    %c2_i32 = arith.constant 2 : i32
    %9 = arith.cmpi eq, %arg1, %c2_i32 : i32
    %10 = arith.extui %9 : i1 to i32
    %c0_i32_8 = arith.constant 0 : i32
    %11 = arith.cmpi ne, %10, %c0_i32_8 : i32
    scf.if %11 {
      %c0_9 = arith.constant 0 : index
      %c0_10 = arith.constant 0 : index
      %12 = vector.load %arg9[%c0_9, %c0_10] : memref<16x768xf32, #tpu.memory_space<vmem>>, vector<16x768xf32>
      %c0_11 = arith.constant 0 : index
      %c0_12 = arith.constant 0 : index
      %13 = vector.load %arg4[%c0_11, %c0_12] : memref<1x768xf32, #tpu.memory_space<vmem>>, vector<1x768xf32>
      %14 = vector.broadcast %13 : vector<1x768xf32> to vector<16x768xf32>
      %15 = arith.addf %12, %14 : vector<16x768xf32>
      %c0_13 = arith.constant 0 : index
      %c0_14 = arith.constant 0 : index
      %16 = vector.load %arg5[%c0_13, %c0_14] : memref<16x768xbf16, #tpu.memory_space<vmem>>, vector<16x768xbf16>
      %17 = arith.extf %16 : vector<16x768xbf16> to vector<16x768xf32>
      %18 = arith.addf %15, %17 : vector<16x768xf32>
      %cst_15 = arith.constant dense<0.000000e+00> : vector<16xf32>
      %19 = vector.multi_reduction <add>, %18, %cst_15 [1] : vector<16x768xf32> to vector<16xf32>
      %20 = vector.shape_cast %19 : vector<16xf32> to vector<16x1xf32>
      %cst_16 = arith.constant 7.680000e+02 : f32
      %21 = vector.broadcast %cst_16 : f32 to vector<16x1xf32>
      %22 = arith.divf %20, %21 : vector<16x1xf32>
      %23 = vector.broadcast %22 : vector<16x1xf32> to vector<16x768xf32>
      %24 = arith.subf %18, %23 : vector<16x768xf32>
      %25 = arith.mulf %24, %24 : vector<16x768xf32>
      %cst_17 = arith.constant dense<0.000000e+00> : vector<16xf32>
      %26 = vector.multi_reduction <add>, %25, %cst_17 [1] : vector<16x768xf32> to vector<16xf32>
      %27 = vector.shape_cast %26 : vector<16xf32> to vector<16x1xf32>
      %cst_18 = arith.constant 7.680000e+02 : f32
      %28 = vector.broadcast %cst_18 : f32 to vector<16x1xf32>
      %29 = arith.divf %27, %28 : vector<16x1xf32>
      %cst_19 = arith.constant 9.99999996E-13 : f32
      %30 = vector.broadcast %cst_19 : f32 to vector<16x1xf32>
      %31 = arith.addf %29, %30 : vector<16x1xf32>
      %32 = math.rsqrt %31 : vector<16x1xf32>
      %33 = vector.broadcast %32 : vector<16x1xf32> to vector<16x768xf32>
      %34 = arith.mulf %24, %33 : vector<16x768xf32>
      %c0_20 = arith.constant 0 : index
      %c0_21 = arith.constant 0 : index
      %35 = vector.load %arg6[%c0_20, %c0_21] : memref<1x768xf32, #tpu.memory_space<vmem>>, vector<1x768xf32>
      %36 = vector.broadcast %35 : vector<1x768xf32> to vector<16x768xf32>
      %37 = arith.mulf %34, %36 : vector<16x768xf32>
      %c0_22 = arith.constant 0 : index
      %c0_23 = arith.constant 0 : index
      %38 = vector.load %arg7[%c0_22, %c0_23] : memref<1x768xf32, #tpu.memory_space<vmem>>, vector<1x768xf32>
      %39 = vector.broadcast %38 : vector<1x768xf32> to vector<16x768xf32>
      %40 = arith.addf %37, %39 : vector<16x768xf32>
      %41 = arith.truncf %40 : vector<16x768xf32> to vector<16x768xbf16>
      %c0_24 = arith.constant 0 : index
      %c0_25 = arith.constant 0 : index
      %42 = vector.load %arg8[%c0_24, %c0_25] : memref<16x768xbf16, #tpu.memory_space<vmem>>, vector<16x768xbf16>
      tpu.vector_store %arg8[%c0_24, %c0_25], %41 {strides = array<i32>} : memref<16x768xbf16, #tpu.memory_space<vmem>>, vector<16x768xbf16>,
    } else {
    }
    return
  }
  func.func @transform_0(%arg0: i32, %arg1: i32) -> (i32, i32) {
    %c0_i32 = arith.constant 0 : i32
    return %arg0, %arg1 : i32, i32
  }
  func.func @transform_1(%arg0: i32, %arg1: i32) -> (i32, i32) {
    %c0_i32 = arith.constant 0 : i32
    %c0_i32_0 = arith.constant 0 : i32
    return %arg1, %c0_i32 : i32, i32
  }
  func.func @transform_2(%arg0: i32, %arg1: i32) -> (i32, i32) {
    %c0_i32 = arith.constant 0 : i32
    %c0_i32_0 = arith.constant 0 : i32
    %c0_i32_1 = arith.constant 0 : i32
    return %c0_i32, %c0_i32_0 : i32, i32
  }
  func.func @transform_3(%arg0: i32, %arg1: i32) -> (i32, i32) {
    %c0_i32 = arith.constant 0 : i32
    %c0_i32_0 = arith.constant 0 : i32
    return %arg0, %c0_i32 : i32, i32
  }
  func.func @transform_4(%arg0: i32, %arg1: i32) -> (i32, i32) {
    %c0_i32 = arith.constant 0 : i32
    %c0_i32_0 = arith.constant 0 : i32
    %c0_i32_1 = arith.constant 0 : i32
    return %c0_i32, %c0_i32_0 : i32, i32
  }
  func.func @transform_5(%arg0: i32, %arg1: i32) -> (i32, i32) {
    %c0_i32 = arith.constant 0 : i32
    %c0_i32_0 = arith.constant 0 : i32
    %c0_i32_1 = arith.constant 0 : i32
    return %c0_i32, %c0_i32_0 : i32, i32
  }
  func.func @transform_6(%arg0: i32, %arg1: i32) -> (i32, i32) {
    %c0_i32 = arith.constant 0 : i32
    %c0_i32_0 = arith.constant 0 : i32
    return %arg0, %c0_i32 : i32, i32
  }
}

module attributes {stable_mosaic.version = 11 : i64} {
  func.func @_dense_add_ln_kernel(%arg0: i32, %arg1: i32, %arg2: memref<16x256xbf16, #tpu.memory_space<vmem>>, %arg3: memref<256x768xbf16, #tpu.memory_space<vmem>>, %arg4: memref<1x768xf32, #tpu.memory_space<vmem>>, %arg5: memref<16x768xbf16, #tpu.memory_space<vmem>>, %arg6: memref<1x768xf32, #tpu.memory_space<vmem>>, %arg7: memref<1x768xf32, #tpu.memory_space<vmem>>, %arg8: memref<16x768xbf16, #tpu.memory_space<vmem>>, %arg9: memref<16x768xf32, #tpu.memory_space<vmem>>) attributes {dimension_semantics = [#tpu.dimension_semantics<parallel>, #tpu.dimension_semantics<arbitrary>], iteration_bounds = array<i64: 1, 12>, scalar_prefetch = 0 : i64, scratch_operands = 1 : i64, tpu.core_type = #tpu.core_type<tc>, window_params = [{transform_indices = @transform_0, window_bounds = array<i64: 16, 256>}, {transform_indices = @transform_1, window_bounds = array<i64: 256, 768>}, {pipeline_mode = #tpu.pipeline_mode<synchronous>, transform_indices = @transform_2, window_bounds = array<i64: 1, 768>}, {transform_indices = @transform_3, window_bounds = array<i64: 16, 768>}, {pipeline_mode = #tpu.pipeline_mode<synchronous>, transform_indices = @transform_4, window_bounds = array<i64: 1, 768>}, {pipeline_mode = #tpu.pipeline_mode<synchronous>, transform_indices = @transform_5, window_bounds = array<i64: 1, 768>}, {transform_indices = @transform_6, window_bounds = array<i64: 16, 768>}]} {
    %c0_i32 = arith.constant 0 : i32
    %0 = arith.cmpi eq, %arg1, %c0_i32 : i32
    %1 = arith.extui %0 : i1 to i32
    %c0_i32_0 = arith.constant 0 : i32
    %2 = arith.cmpi ne, %1, %c0_i32_0 : i32
    scf.if %2 {
      %cst_9 = arith.constant 0.000000e+00 : f32
      %12 = vector.broadcast %cst_9 : f32 to vector<16x768xf32>
      %c0_10 = arith.constant 0 : index
      %c0_11 = arith.constant 0 : index
      %13 = vector.load %arg9[%c0_10, %c0_11] : memref<16x768xf32, #tpu.memory_space<vmem>>, vector<16x768xf32>
      tpu.vector_store %arg9[%c0_10, %c0_11], %12 {strides = array<i32>} : memref<16x768xf32, #tpu.memory_space<vmem>>, vector<16x768xf32>,
    } else {
    }
    %c0 = arith.constant 0 : index
    %c0_1 = arith.constant 0 : index
    %3 = vector.load %arg9[%c0, %c0_1] : memref<16x768xf32, #tpu.memory_space<vmem>>, vector<16x768xf32>
    %c0_2 = arith.constant 0 : index
    %c0_3 = arith.constant 0 : index
    %4 = vector.load %arg2[%c0_2, %c0_3] : memref<16x256xbf16, #tpu.memory_space<vmem>>, vector<16x256xbf16>
    %c0_4 = arith.constant 0 : index
    %c0_5 = arith.constant 0 : index
    %5 = vector.load %arg3[%c0_4, %c0_5] : memref<256x768xbf16, #tpu.memory_space<vmem>>, vector<256x768xbf16>
    %cst = arith.constant dense<0.000000e+00> : vector<16x768xf32>
    %6 = tpu.matmul %4, %5, %cst {dimension_numbers = #tpu.dot_dimension_numbers<[1], [0], [0], [1], [0, 0, 1, 1], [], []>} : vector<16x256xbf16>, vector<256x768xbf16>, vector<16x768xf32> -> vector<16x768xf32>
    %7 = arith.addf %3, %6 : vector<16x768xf32>
    %c0_6 = arith.constant 0 : index
    %c0_7 = arith.constant 0 : index
    %8 = vector.load %arg9[%c0_6, %c0_7] : memref<16x768xf32, #tpu.memory_space<vmem>>, vector<16x768xf32>
    tpu.vector_store %arg9[%c0_6, %c0_7], %7 {strides = array<i32>} : memref<16x768xf32, #tpu.memory_space<vmem>>, vector<16x768xf32>,
    %c11_i32 = arith.constant 11 : i32
    %9 = arith.cmpi eq, %arg1, %c11_i32 : i32
    %10 = arith.extui %9 : i1 to i32
    %c0_i32_8 = arith.constant 0 : i32
    %11 = arith.cmpi ne, %10, %c0_i32_8 : i32
    scf.if %11 {
      %c0_9 = arith.constant 0 : index
      %c0_10 = arith.constant 0 : index
      %12 = vector.load %arg9[%c0_9, %c0_10] : memref<16x768xf32, #tpu.memory_space<vmem>>, vector<16x768xf32>
      %c0_11 = arith.constant 0 : index
      %c0_12 = arith.constant 0 : index
      %13 = vector.load %arg4[%c0_11, %c0_12] : memref<1x768xf32, #tpu.memory_space<vmem>>, vector<1x768xf32>
      %14 = vector.broadcast %13 : vector<1x768xf32> to vector<16x768xf32>
      %15 = arith.addf %12, %14 : vector<16x768xf32>
      %c0_13 = arith.constant 0 : index
      %c0_14 = arith.constant 0 : index
      %16 = vector.load %arg5[%c0_13, %c0_14] : memref<16x768xbf16, #tpu.memory_space<vmem>>, vector<16x768xbf16>
      %17 = arith.extf %16 : vector<16x768xbf16> to vector<16x768xf32>
      %18 = arith.addf %15, %17 : vector<16x768xf32>
      %cst_15 = arith.constant dense<0.000000e+00> : vector<16xf32>
      %19 = vector.multi_reduction <add>, %18, %cst_15 [1] : vector<16x768xf32> to vector<16xf32>
      %20 = vector.shape_cast %19 : vector<16xf32> to vector<16x1xf32>
      %cst_16 = arith.constant 7.680000e+02 : f32
      %21 = vector.broadcast %cst_16 : f32 to vector<16x1xf32>
      %22 = arith.divf %20, %21 : vector<16x1xf32>
      %23 = vector.broadcast %22 : vector<16x1xf32> to vector<16x768xf32>
      %24 = arith.subf %18, %23 : vector<16x768xf32>
      %25 = arith.mulf %24, %24 : vector<16x768xf32>
      %cst_17 = arith.constant dense<0.000000e+00> : vector<16xf32>
      %26 = vector.multi_reduction <add>, %25, %cst_17 [1] : vector<16x768xf32> to vector<16xf32>
      %27 = vector.shape_cast %26 : vector<16xf32> to vector<16x1xf32>
      %cst_18 = arith.constant 7.680000e+02 : f32
      %28 = vector.broadcast %cst_18 : f32 to vector<16x1xf32>
      %29 = arith.divf %27, %28 : vector<16x1xf32>
      %cst_19 = arith.constant 9.99999996E-13 : f32
      %30 = vector.broadcast %cst_19 : f32 to vector<16x1xf32>
      %31 = arith.addf %29, %30 : vector<16x1xf32>
      %32 = math.rsqrt %31 : vector<16x1xf32>
      %33 = vector.broadcast %32 : vector<16x1xf32> to vector<16x768xf32>
      %34 = arith.mulf %24, %33 : vector<16x768xf32>
      %c0_20 = arith.constant 0 : index
      %c0_21 = arith.constant 0 : index
      %35 = vector.load %arg6[%c0_20, %c0_21] : memref<1x768xf32, #tpu.memory_space<vmem>>, vector<1x768xf32>
      %36 = vector.broadcast %35 : vector<1x768xf32> to vector<16x768xf32>
      %37 = arith.mulf %34, %36 : vector<16x768xf32>
      %c0_22 = arith.constant 0 : index
      %c0_23 = arith.constant 0 : index
      %38 = vector.load %arg7[%c0_22, %c0_23] : memref<1x768xf32, #tpu.memory_space<vmem>>, vector<1x768xf32>
      %39 = vector.broadcast %38 : vector<1x768xf32> to vector<16x768xf32>
      %40 = arith.addf %37, %39 : vector<16x768xf32>
      %41 = arith.truncf %40 : vector<16x768xf32> to vector<16x768xbf16>
      %c0_24 = arith.constant 0 : index
      %c0_25 = arith.constant 0 : index
      %42 = vector.load %arg8[%c0_24, %c0_25] : memref<16x768xbf16, #tpu.memory_space<vmem>>, vector<16x768xbf16>
      tpu.vector_store %arg8[%c0_24, %c0_25], %41 {strides = array<i32>} : memref<16x768xbf16, #tpu.memory_space<vmem>>, vector<16x768xbf16>,
    } else {
    }
    return
  }
  func.func @transform_0(%arg0: i32, %arg1: i32) -> (i32, i32) {
    %c0_i32 = arith.constant 0 : i32
    return %arg0, %arg1 : i32, i32
  }
  func.func @transform_1(%arg0: i32, %arg1: i32) -> (i32, i32) {
    %c0_i32 = arith.constant 0 : i32
    %c0_i32_0 = arith.constant 0 : i32
    return %arg1, %c0_i32 : i32, i32
  }
  func.func @transform_2(%arg0: i32, %arg1: i32) -> (i32, i32) {
    %c0_i32 = arith.constant 0 : i32
    %c0_i32_0 = arith.constant 0 : i32
    %c0_i32_1 = arith.constant 0 : i32
    return %c0_i32, %c0_i32_0 : i32, i32
  }
  func.func @transform_3(%arg0: i32, %arg1: i32) -> (i32, i32) {
    %c0_i32 = arith.constant 0 : i32
    %c0_i32_0 = arith.constant 0 : i32
    return %arg0, %c0_i32 : i32, i32
  }
  func.func @transform_4(%arg0: i32, %arg1: i32) -> (i32, i32) {
    %c0_i32 = arith.constant 0 : i32
    %c0_i32_0 = arith.constant 0 : i32
    %c0_i32_1 = arith.constant 0 : i32
    return %c0_i32, %c0_i32_0 : i32, i32
  }
  func.func @transform_5(%arg0: i32, %arg1: i32) -> (i32, i32) {
    %c0_i32 = arith.constant 0 : i32
    %c0_i32_0 = arith.constant 0 : i32
    %c0_i32_1 = arith.constant 0 : i32
    return %c0_i32, %c0_i32_0 : i32, i32
  }
  func.func @transform_6(%arg0: i32, %arg1: i32) -> (i32, i32) {
    %c0_i32 = arith.constant 0 : i32
    %c0_i32_0 = arith.constant 0 : i32
    return %arg0, %c0_i32 : i32, i32
  }
}

module attributes {stable_mosaic.version = 11 : i64} {
  func.func @_dense_kernel(%arg0: i32, %arg1: i32, %arg2: i32, %arg3: memref<16x256xbf16, #tpu.memory_space<vmem>>, %arg4: memref<256x256xbf16, #tpu.memory_space<vmem>>, %arg5: memref<1x256xf32, #tpu.memory_space<vmem>>, %arg6: memref<16x256xbf16, #tpu.memory_space<vmem>>, %arg7: memref<16x256xf32, #tpu.memory_space<vmem>>) attributes {dimension_semantics = [#tpu.dimension_semantics<parallel>, #tpu.dimension_semantics<parallel>, #tpu.dimension_semantics<arbitrary>], iteration_bounds = array<i64: 1, 12, 3>, scalar_prefetch = 0 : i64, scratch_operands = 1 : i64, tpu.core_type = #tpu.core_type<tc>, window_params = [{transform_indices = @transform_0, window_bounds = array<i64: 16, 256>}, {transform_indices = @transform_1, window_bounds = array<i64: 256, 256>}, {transform_indices = @transform_2, window_bounds = array<i64: 1, 256>}, {transform_indices = @transform_3, window_bounds = array<i64: 16, 256>}]} {
    %c0_i32 = arith.constant 0 : i32
    %0 = arith.cmpi eq, %arg2, %c0_i32 : i32
    %1 = arith.extui %0 : i1 to i32
    %c0_i32_0 = arith.constant 0 : i32
    %2 = arith.cmpi ne, %1, %c0_i32_0 : i32
    scf.if %2 {
      %cst_9 = arith.constant 0.000000e+00 : f32
      %12 = vector.broadcast %cst_9 : f32 to vector<16x256xf32>
      %c0_10 = arith.constant 0 : index
      %c0_11 = arith.constant 0 : index
      %13 = vector.load %arg7[%c0_10, %c0_11] : memref<16x256xf32, #tpu.memory_space<vmem>>, vector<16x256xf32>
      tpu.vector_store %arg7[%c0_10, %c0_11], %12 {strides = array<i32>} : memref<16x256xf32, #tpu.memory_space<vmem>>, vector<16x256xf32>,
    } else {
    }
    %c0 = arith.constant 0 : index
    %c0_1 = arith.constant 0 : index
    %3 = vector.load %arg7[%c0, %c0_1] : memref<16x256xf32, #tpu.memory_space<vmem>>, vector<16x256xf32>
    %c0_2 = arith.constant 0 : index
    %c0_3 = arith.constant 0 : index
    %4 = vector.load %arg3[%c0_2, %c0_3] : memref<16x256xbf16, #tpu.memory_space<vmem>>, vector<16x256xbf16>
    %c0_4 = arith.constant 0 : index
    %c0_5 = arith.constant 0 : index
    %5 = vector.load %arg4[%c0_4, %c0_5] : memref<256x256xbf16, #tpu.memory_space<vmem>>, vector<256x256xbf16>
    %cst = arith.constant dense<0.000000e+00> : vector<16x256xf32>
    %6 = tpu.matmul %4, %5, %cst {dimension_numbers = #tpu.dot_dimension_numbers<[1], [0], [0], [1], [0, 0, 1, 1], [], []>} : vector<16x256xbf16>, vector<256x256xbf16>, vector<16x256xf32> -> vector<16x256xf32>
    %7 = arith.addf %3, %6 : vector<16x256xf32>
    %c0_6 = arith.constant 0 : index
    %c0_7 = arith.constant 0 : index
    %8 = vector.load %arg7[%c0_6, %c0_7] : memref<16x256xf32, #tpu.memory_space<vmem>>, vector<16x256xf32>
    tpu.vector_store %arg7[%c0_6, %c0_7], %7 {strides = array<i32>} : memref<16x256xf32, #tpu.memory_space<vmem>>, vector<16x256xf32>,
    %c2_i32 = arith.constant 2 : i32
    %9 = arith.cmpi eq, %arg2, %c2_i32 : i32
    %10 = arith.extui %9 : i1 to i32
    %c0_i32_8 = arith.constant 0 : i32
    %11 = arith.cmpi ne, %10, %c0_i32_8 : i32
    scf.if %11 {
      %c0_9 = arith.constant 0 : index
      %c0_10 = arith.constant 0 : index
      %12 = vector.load %arg7[%c0_9, %c0_10] : memref<16x256xf32, #tpu.memory_space<vmem>>, vector<16x256xf32>
      %c0_11 = arith.constant 0 : index
      %c0_12 = arith.constant 0 : index
      %13 = vector.load %arg5[%c0_11, %c0_12] : memref<1x256xf32, #tpu.memory_space<vmem>>, vector<1x256xf32>
      %14 = vector.broadcast %13 : vector<1x256xf32> to vector<16x256xf32>
      %15 = arith.addf %12, %14 : vector<16x256xf32>
      %cst_13 = arith.constant 5.000000e-01 : f32
      %16 = vector.broadcast %cst_13 : f32 to vector<16x256xf32>
      %17 = arith.mulf %16, %15 : vector<16x256xf32>
      %cst_14 = arith.constant 0.707106769 : f32
      %18 = vector.broadcast %cst_14 : f32 to vector<16x256xf32>
      %19 = arith.mulf %15, %18 : vector<16x256xf32>
      %20 = math.erf %19 : vector<16x256xf32>
      %cst_15 = arith.constant 1.000000e+00 : f32
      %21 = vector.broadcast %cst_15 : f32 to vector<16x256xf32>
      %22 = arith.addf %21, %20 : vector<16x256xf32>
      %23 = arith.mulf %17, %22 : vector<16x256xf32>
      %24 = arith.truncf %23 : vector<16x256xf32> to vector<16x256xbf16>
      %c0_16 = arith.constant 0 : index
      %c0_17 = arith.constant 0 : index
      %25 = vector.load %arg6[%c0_16, %c0_17] : memref<16x256xbf16, #tpu.memory_space<vmem>>, vector<16x256xbf16>
      tpu.vector_store %arg6[%c0_16, %c0_17], %24 {strides = array<i32>} : memref<16x256xbf16, #tpu.memory_space<vmem>>, vector<16x256xbf16>,
    } else {
    }
    return
  }
  func.func @transform_0(%arg0: i32, %arg1: i32, %arg2: i32) -> (i32, i32) {
    %c0_i32 = arith.constant 0 : i32
    return %arg0, %arg2 : i32, i32
  }
  func.func @transform_1(%arg0: i32, %arg1: i32, %arg2: i32) -> (i32, i32) {
    %c0_i32 = arith.constant 0 : i32
    return %arg2, %arg1 : i32, i32
  }
  func.func @transform_2(%arg0: i32, %arg1: i32, %arg2: i32) -> (i32, i32) {
    %c0_i32 = arith.constant 0 : i32
    %c0_i32_0 = arith.constant 0 : i32
    return %c0_i32, %arg1 : i32, i32
  }
  func.func @transform_3(%arg0: i32, %arg1: i32, %arg2: i32) -> (i32, i32) {
    %c0_i32 = arith.constant 0 : i32
    return %arg0, %arg1 : i32, i32
  }
}

</mosaic_0001>

<llo_original>
// kernel: bert_forward.11
$region0: #{bert_forward.11}
  #allocation0 [shape = 'u32[]', space=smem, size = 0x4, offset = 0x4, fixed_abs, tag = 'smem constant byte address 0x4 - core index']
  #allocation1 [shape = 'u32[144,128]{1,0:T(1,128)}', space=vmem, size = 0x12000, scoped, tag = 'internal scratch']
  %s0 = inlined_call_operand.vmem [shape: bf16[16,768], index: 0, kind: input, shape index: {}]
  %s1 = inlined_call_operand.vmem [shape: f32[1,768], index: 1, kind: input, shape index: {}]
  %s2 = inlined_call_operand.vmem [shape: f32[1,768], index: 2, kind: input, shape index: {}]
  %s3 = inlined_call_operand.vmem [shape: bf16[16,768], index: 3, kind: output, shape index: {}]
  %s4 = sld [smem:[#allocation0]]
  $region22: #{bert_forward.11} parent=0
    _
  %s6 = ssub.s32 1, %s4
  %s7 = scalar_select 0, %s6, %s4
  // Predicated region
  $region2: #{bert_forward.11} parent=0 // pred_check
    _
  $region3: #{bert_forward.11} parent=0 // pred_check_branch
    %9 = sbr.rel (0) target = $region5
  $region4: #{bert_forward.11} parent=0 // pred_region
    _
  $region5: #{bert_forward.11} parent=0 // pred_fallthru
    _
  // Predicated region
  $region6: #{bert_forward.11} parent=0 // pred_check
    _
  $region7: #{bert_forward.11} parent=0 // pred_check_branch
    %11 = sbr.rel (0) target = $region9
  $region8: #{bert_forward.11} parent=0 // pred_region
    _
  $region9: #{bert_forward.11} parent=0 // pred_fallthru
    _
  // Predicated region
  $region10: #{bert_forward.11} parent=0 // pred_check
    _
  $region11: #{bert_forward.11} parent=0 // pred_check_branch
    %13 = sbr.rel (0) target = $region13
  $region12: #{bert_forward.11} parent=0 // pred_region
    _
  $region13: #{bert_forward.11} parent=0 // pred_fallthru
    _
  %v14 = vld [vmem:[%s0] sm:$0xff]
  %v15 = vld [vmem:[%s0 + $0x8] sm:$0xff]
  %v16 = vld [vmem:[%s0 + $0x10] sm:$0xff]
  %v17 = vld [vmem:[%s0 + $0x18] sm:$0xff]
  %v18 = vld [vmem:[%s0 + $0x20] sm:$0xff]
  %v19 = vld [vmem:[%s0 + $0x28] sm:$0xff]
  %v20 = vunpack.c.l.bf16 %v14
  %v21 = vunpack.c.h.bf16 %v14
  %v22 = vunpack.c.l.bf16 %v15
  %v23 = vunpack.c.h.bf16 %v15
  %v24 = vunpack.c.l.bf16 %v16
  %v25 = vunpack.c.h.bf16 %v16
  %v26 = vunpack.c.l.bf16 %v17
  %v27 = vunpack.c.h.bf16 %v17
  %v28 = vunpack.c.l.bf16 %v18
  %v29 = vunpack.c.h.bf16 %v18
  %v30 = vunpack.c.l.bf16 %v19
  %v31 = vunpack.c.h.bf16 %v19
  %v32 = vadd.f32 %v20, %v21
  %v33 = vadd.f32 %v32, %v22
  %v34 = vadd.f32 %v33, %v23
  %v35 = vadd.f32 %v34, %v24
  %v36 = vadd.f32 %v35, %v25
  %37 = vadd.xlane.f32.xlu0 %v36
  %v38 = vpop.xlane.xlu0 %37
  %v39 = vadd.f32 %v26, %v27
  %v40 = vadd.f32 %v39, %v28
  %v41 = vadd.f32 %v40, %v29
  %v42 = vadd.f32 %v41, %v30
  %v43 = vadd.f32 %v42, %v31
  %44 = vadd.xlane.f32.xlu0 %v43
  %v45 = vpop.xlane.xlu0 %44
  %v46 = vrcp.pop 768.0
  %v47 = vmul.f32 %v38, %v46
  %v48 = vmul.f32 %v45, %v46
  %v49 = vsub.f32 %v20, %v47
  %v50 = vsub.f32 %v21, %v47
  %v51 = vsub.f32 %v22, %v47
  %v52 = vsub.f32 %v23, %v47
  %v53 = vsub.f32 %v24, %v47
  %v54 = vsub.f32 %v25, %v47
  %v55 = vsub.f32 %v26, %v48
  %v56 = vsub.f32 %v27, %v48
  %v57 = vsub.f32 %v28, %v48
  %v58 = vsub.f32 %v29, %v48
  %v59 = vsub.f32 %v30, %v48
  %v60 = vsub.f32 %v31, %v48
  %v61 = vmul.f32 %v49, %v49
  %v62 = vmul.f32 %v50, %v50
  %v63 = vmul.f32 %v51, %v51
  %v64 = vmul.f32 %v52, %v52
  %v65 = vmul.f32 %v53, %v53
  %v66 = vmul.f32 %v54, %v54
  %v67 = vmul.f32 %v55, %v55
  %v68 = vmul.f32 %v56, %v56
  %v69 = vmul.f32 %v57, %v57
  %v70 = vmul.f32 %v58, %v58
  %v71 = vmul.f32 %v59, %v59
  %v72 = vmul.f32 %v60, %v60
  %v73 = vadd.f32 %v61, %v62
  %v74 = vadd.f32 %v73, %v63
  %v75 = vadd.f32 %v74, %v64
  %v76 = vadd.f32 %v75, %v65
  %v77 = vadd.f32 %v76, %v66
  %78 = vadd.xlane.f32.xlu0 %v77
  %v79 = vpop.xlane.xlu0 %78
  %v80 = vadd.f32 %v67, %v68
  %v81 = vadd.f32 %v80, %v69
  %v82 = vadd.f32 %v81, %v70
  %v83 = vadd.f32 %v82, %v71
  %v84 = vadd.f32 %v83, %v72
  %85 = vadd.xlane.f32.xlu0 %v84
  %v86 = vpop.xlane.xlu0 %85
  %v87 = vmul.f32 %v79, %v46
  %v88 = vmul.f32 %v86, %v46
  %v89 = vadd.f32 %v87, 1e-12
  %v90 = vadd.f32 %v88, 1e-12
  %v91 = vrsqrt.pop %v89
  %v92 = vrsqrt.pop %v90
  %v93 = vmul.f32 %v49, %v91
  %v94 = vmul.f32 %v50, %v91
  %v95 = vmul.f32 %v51, %v91
  %v96 = vmul.f32 %v52, %v91
  %v97 = vmul.f32 %v53, %v91
  %v98 = vmul.f32 %v54, %v91
  %v99 = vmul.f32 %v55, %v92
  %v100 = vmul.f32 %v56, %v92
  %v101 = vmul.f32 %v57, %v92
  %v102 = vmul.f32 %v58, %v92
  %v103 = vmul.f32 %v59, %v92
  %v104 = vmul.f32 %v60, %v92
  %v105 = vld [vmem:[%s1] sm:$0x3f]
  %v107 = vlaneseq
  %v108 = vshrl.u32 %v107, 7
  %v109 = vsub.s32 0, %v108
  %v110 = vrot.slane %v105, %v109
  %v111 = vlaneseq
  %v112 = vshrl.u32 %v111, 7
  %v113 = vsub.s32 1, %v112
  %v114 = vrot.slane %v105, %v113
  %v115 = vlaneseq
  %v116 = vshrl.u32 %v115, 7
  %v117 = vsub.s32 2, %v116
  %v118 = vrot.slane %v105, %v117
  %v119 = vlaneseq
  %v120 = vshrl.u32 %v119, 7
  %v121 = vsub.s32 3, %v120
  %v122 = vrot.slane %v105, %v121
  %v123 = vlaneseq
  %v124 = vshrl.u32 %v123, 7
  %v125 = vsub.s32 4, %v124
  %v126 = vrot.slane %v105, %v125
  %v127 = vlaneseq
  %v128 = vshrl.u32 %v127, 7
  %v129 = vsub.s32 5, %v128
  %v130 = vrot.slane %v105, %v129
  %v137 = vmul.f32 %v93, %v110
  %v138 = vmul.f32 %v94, %v114
  %v139 = vmul.f32 %v95, %v118
  %v140 = vmul.f32 %v96, %v122
  %v141 = vmul.f32 %v97, %v126
  %v142 = vmul.f32 %v98, %v130
  %v143 = vmul.f32 %v99, %v110
  %v144 = vmul.f32 %v100, %v114
  %v145 = vmul.f32 %v101, %v118
  %v146 = vmul.f32 %v102, %v122
  %v147 = vmul.f32 %v103, %v126
  %v148 = vmul.f32 %v104, %v130
  %v149 = vld [vmem:[%s2] sm:$0x3f]
  %v151 = vlaneseq
  %v152 = vshrl.u32 %v151, 7
  %v153 = vsub.s32 0, %v152
  %v154 = vrot.slane %v149, %v153
  %v155 = vlaneseq
  %v156 = vshrl.u32 %v155, 7
  %v157 = vsub.s32 1, %v156
  %v158 = vrot.slane %v149, %v157
  %v159 = vlaneseq
  %v160 = vshrl.u32 %v159, 7
  %v161 = vsub.s32 2, %v160
  %v162 = vrot.slane %v149, %v161
  %v163 = vlaneseq
  %v164 = vshrl.u32 %v163, 7
  %v165 = vsub.s32 3, %v164
  %v166 = vrot.slane %v149, %v165
  %v167 = vlaneseq
  %v168 = vshrl.u32 %v167, 7
  %v169 = vsub.s32 4, %v168
  %v170 = vrot.slane %v149, %v169
  %v171 = vlaneseq
  %v172 = vshrl.u32 %v171, 7
  %v173 = vsub.s32 5, %v172
  %v174 = vrot.slane %v149, %v173
  %v181 = vadd.f32 %v137, %v154
  %v182 = vadd.f32 %v138, %v158
  %v183 = vadd.f32 %v139, %v162
  %v184 = vadd.f32 %v140, %v166
  %v185 = vadd.f32 %v141, %v170
  %v186 = vadd.f32 %v142, %v174
  %v187 = vadd.f32 %v143, %v154
  %v188 = vadd.f32 %v144, %v158
  %v189 = vadd.f32 %v145, %v162
  %v190 = vadd.f32 %v146, %v166
  %v191 = vadd.f32 %v147, %v170
  %v192 = vadd.f32 %v148, %v174
  %v193 = vpack.c.bf16 %v187, %v181
  %v194 = vpack.c.bf16 %v188, %v182
  %v195 = vpack.c.bf16 %v189, %v183
  %v196 = vpack.c.bf16 %v190, %v184
  %v197 = vpack.c.bf16 %v191, %v185
  %v198 = vpack.c.bf16 %v192, %v186
  %v205 = vunpack.c.l.b16 %v193
  %v206 = vunpack.c.l.b16 %v194
  %v207 = vunpack.c.l.b16 %v195
  %v208 = vunpack.c.l.b16 %v196
  %v209 = vunpack.c.l.b16 %v197
  %v210 = vunpack.c.l.b16 %v198
  %v211 = vunpack.c.h.b16 %v193
  %v212 = vunpack.c.h.b16 %v194
  %v213 = vunpack.c.h.b16 %v195
  %v214 = vunpack.c.h.b16 %v196
  %v215 = vunpack.c.h.b16 %v197
  %v216 = vunpack.c.h.b16 %v198
  %v217 = vpack.c.b16 %v206, %v205
  %v218 = vpack.c.b16 %v208, %v207
  %v219 = vpack.c.b16 %v210, %v209
  %v220 = vpack.c.b16 %v212, %v211
  %v221 = vpack.c.b16 %v214, %v213
  %v222 = vpack.c.b16 %v216, %v215
  %229 = vst [vmem:[%s3] sm:$0xff] %v217
  %230 = vst [vmem:[%s3 + $0x8] sm:$0xff] %v218
  %231 = vst [vmem:[%s3 + $0x10] sm:$0xff] %v219
  %232 = vst [vmem:[%s3 + $0x18] sm:$0xff] %v220
  %233 = vst [vmem:[%s3 + $0x20] sm:$0xff] %v221
  %234 = vst [vmem:[%s3 + $0x28] sm:$0xff] %v222
  // Predicated region
  $region14: #{bert_forward.11} parent=0 // pred_check
    _
  $region15: #{bert_forward.11} parent=0 // pred_check_branch
    %236 = sbr.rel (0) target = $region17
  $region16: #{bert_forward.11} parent=0 // pred_region
    _
  $region17: #{bert_forward.11} parent=0 // pred_fallthru
    _
  // Predicated region
  $region18: #{bert_forward.11} parent=0 // pred_check
    _
  $region19: #{bert_forward.11} parent=0 // pred_check_branch
    %238 = sbr.rel (0) target = $region21
  $region20: #{bert_forward.11} parent=0 // pred_region
    _
  $region21: #{bert_forward.11} parent=0 // pred_fallthru
    _

// kernel: bert_forward.12
$region0: #{bert_forward.12}
  #allocation0 [shape = 'u32[]', space=smem, size = 0x4, offset = 0x4, fixed_abs, tag = 'smem constant byte address 0x4 - core index']
  #allocation1 [shape = 'u32[144,128]{1,0:T(1,128)}', space=vmem, size = 0x12000, scoped, tag = 'internal scratch']
  #allocation2 [shape = 'f32[16,256]{1,0:T(8,128)}', space=vmem, size = 0x4000, scoped, tag = 'scratch operand']
  %s0 = inlined_call_operand.vmem [shape: bf16[16,768], index: 0, kind: input, shape index: {}]
  %s1 = inlined_call_operand.hbm [shape: bf16[768,2304], index: 1, kind: input, shape index: {}]
  %s2 = inlined_call_operand.vmem [shape: f32[1,2304], index: 2, kind: input, shape index: {}]
  %s3 = inlined_call_operand.vmem [shape: bf16[16,2304], index: 3, kind: output, shape index: {}]
  %s4 = sld [smem:[#allocation0]]
  $region129: #{bert_forward.12} parent=0
    _
  %s6 = ssub.s32 1, %s4
  %s7 = scalar_select 0, %s6, %s4
  $region1: #{bert_forward.12} parent=0
    #allocation3 [shape = 'u8[16384]{0}', space=vmem, size = 0x4000, scoped, tag = 'input window, operand 0']
    #allocation4 [shape = 'u8[262144]{0}', space=vmem, size = 0x40000, scoped, tag = 'input window, operand 1']
    #allocation5 [shape = 's32[2]{0}', space=sflag, size = 0x8, scoped, tag = 'scoped memory for bert_forward.12']
    #allocation6 [shape = 'u8[16384]{0}', space=vmem, size = 0x4000, scoped, tag = 'output window, operand 0']
    %8 = vsyncpa [#allocation5], 0
    %s9 = scalar_lea.sflag [#allocation5], 1
    %10 = vsyncpa %s9, 0
    loop: start=0, step=1, limit=29
    $region2: #{bert_forward.12} parent=1 // loop_pre_header
      _
    $region3: #{bert_forward.12} parent=1 // loop_header
      %s12 = sphi 0, %s16
      %p13 = scmp.ge.s32.totalorder %s12, 29
      %s19 = sphi 0, %s38
      %s20 = sphi 0, %s34
      %s21 = sphi 0, %s30
      %s22 = sphi 0, %s19
      %s23 = sphi 0, %s20
      %s24 = sphi 0, %s21
      %s25 = sphi 0, %s22
      %s26 = sphi 0, %s23
      %s27 = sphi 0, %s24
      %s43 = sphi 0, %s45
      %s46 = sphi 0, %s43
      %s47 = sphi 0, %s46
      %s63 = sphi 0, %s47
      %s71 = sphi 0, %s73
      %s74 = sphi 0, %s71
      %s75 = sphi 0, %s74
      %s91 = sphi 0, %s75
      %s97 = sphi 0, %s99
      %s100 = sphi 0, %s97
      %s101 = sphi 0, %s100
      %s117 = sphi 0, %s101
      %s125 = sphi 0, %s127
      %s128 = sphi 0, %s125
      %s129 = sphi 0, %s128
      %s145 = sphi 0, %s129
    $region4: #{bert_forward.12} parent=1 // loop_header_branch
      %15 = sbr.rel (%p13) target = $region8
    $region5: #{bert_forward.12} parent=1 // loop_body
      %s17 = ssub.s32 %s12, 1
      %s18 = ssub.s32 %s12, 2
      %s28 = sadd.s32 1, %s21
      %p29 = scmp.ge.s32.totalorder %s28, 3
      %s30 = scalar_select %p29, 0, %s28
      %s31 = sadd.s32 1, %s20
      %s32 = scalar_select %p29, %s31, %s20
      %p33 = scmp.ge.s32.totalorder %s32, 9
      %s34 = scalar_select %p33, 0, %s32
      %s35 = sadd.s32 1, %s19
      %s36 = scalar_select %p33, %s35, %s19
      %p37 = scmp.ge.s32.totalorder %s36, 1
      %s38 = scalar_select %p37, 0, %s36
      %s39 = ssub.s32 %s19, %s38
      %s40 = ssub.s32 %s21, %s30
      %s41 = sor.u32 %s39, %s40
      %p42 = scmp.eq.s32.totalorder %s41, 0
      %s44 = sadd.s32 %s43, 1
      %s45 = scalar_select %p42, %s43, %s44
      %p48 = pneg %p42
      %p49 = scmp.eq.s32.totalorder %s12, 26
      %p50 = por %p48, %p49
      %p51 = scmp.ne.s32.totalorder %s43, %s46
      %p52 = scmp.eq.s32.totalorder %s12, 0
      %p53 = por %p51, %p52
      %p54 = scmp.ne.s32.totalorder %s43, %s46
      %p55 = scmp.eq.s32.totalorder %s17, 26
      %p56 = por %p54, %p55
      %p57 = scmp.ne.s32.totalorder %s46, %s47
      %p58 = scmp.eq.s32.totalorder %s17, 0
      %p59 = por %p57, %p58
      %p60 = scmp.ne.s32.totalorder %s46, %s47
      %p61 = scmp.eq.s32.totalorder %s18, 26
      %p62 = por %p60, %p61
      %p64 = scmp.ne.s32.totalorder %s47, %s63
      %p65 = scmp.eq.s32.totalorder %s18, 0
      %p66 = por %p64, %p65
      %s67 = ssub.s32 %s21, %s30
      %s68 = ssub.s32 %s20, %s34
      %s69 = sor.u32 %s67, %s68
      %p70 = scmp.eq.s32.totalorder %s69, 0
      %s72 = sadd.s32 %s71, 1
      %s73 = scalar_select %p70, %s71, %s72
      %p76 = pneg %p70
      %p77 = scmp.eq.s32.totalorder %s12, 26
      %p78 = por %p76, %p77
      %p79 = scmp.ne.s32.totalorder %s71, %s74
      %p80 = scmp.eq.s32.totalorder %s12, 0
      %p81 = por %p79, %p80
      %p82 = scmp.ne.s32.totalorder %s71, %s74
      %p83 = scmp.eq.s32.totalorder %s17, 26
      %p84 = por %p82, %p83
      %p85 = scmp.ne.s32.totalorder %s74, %s75
      %p86 = scmp.eq.s32.totalorder %s17, 0
      %p87 = por %p85, %p86
      %p88 = scmp.ne.s32.totalorder %s74, %s75
      %p89 = scmp.eq.s32.totalorder %s18, 26
      %p90 = por %p88, %p89
      %p92 = scmp.ne.s32.totalorder %s75, %s91
      %p93 = scmp.eq.s32.totalorder %s18, 0
      %p94 = por %p92, %p93
      %s95 = ssub.s32 %s20, %s34
      %p96 = scmp.eq.s32.totalorder %s95, 0
      %s98 = sadd.s32 %s97, 1
      %s99 = scalar_select %p96, %s97, %s98
      %p102 = pneg %p96
      %p103 = scmp.eq.s32.totalorder %s12, 26
      %p104 = por %p102, %p103
      %p105 = scmp.ne.s32.totalorder %s97, %s100
      %p106 = scmp.eq.s32.totalorder %s12, 0
      %p107 = por %p105, %p106
      %p108 = scmp.ne.s32.totalorder %s97, %s100
      %p109 = scmp.eq.s32.totalorder %s17, 26
      %p110 = por %p108, %p109
      %p111 = scmp.ne.s32.totalorder %s100, %s101
      %p112 = scmp.eq.s32.totalorder %s17, 0
      %p113 = por %p111, %p112
      %p114 = scmp.ne.s32.totalorder %s100, %s101
      %p115 = scmp.eq.s32.totalorder %s18, 26
      %p116 = por %p114, %p115
      %p118 = scmp.ne.s32.totalorder %s101, %s117
      %p119 = scmp.eq.s32.totalorder %s18, 0
      %p120 = por %p118, %p119
      %s121 = ssub.s32 %s19, %s38
      %s122 = ssub.s32 %s20, %s34
      %s123 = sor.u32 %s121, %s122
      %p124 = scmp.eq.s32.totalorder %s123, 0
      %s126 = sadd.s32 %s125, 1
      %s127 = scalar_select %p124, %s125, %s126
      %p130 = pneg %p124
      %p131 = scmp.eq.s32.totalorder %s12, 26
      %p132 = por %p130, %p131
      %p133 = scmp.ne.s32.totalorder %s125, %s128
      %p134 = scmp.eq.s32.totalorder %s12, 0
      %p135 = por %p133, %p134
      %p136 = scmp.ne.s32.totalorder %s125, %s128
      %p137 = scmp.eq.s32.totalorder %s17, 26
      %p138 = por %p136, %p137
      %p139 = scmp.ne.s32.totalorder %s128, %s129
      %p140 = scmp.eq.s32.totalorder %s17, 0
      %p141 = por %p139, %p140
      %p142 = scmp.ne.s32.totalorder %s128, %s129
      %p143 = scmp.eq.s32.totalorder %s18, 26
      %p144 = por %p142, %p143
      %p146 = scmp.ne.s32.totalorder %s129, %s145
      %p147 = scmp.eq.s32.totalorder %s18, 0
      %p148 = por %p146, %p147
      %p149 = scmp.le.s32.totalorder 1, %s12
      %p150 = scmp.lt.s32.totalorder %s12, 28
      %p151 = pnand %p149, %p150
      %p152 = pneg %p151
      // Predicated region
      $region9: #{bert_forward.12} parent=5 // pred_check
        _
      $region10: #{bert_forward.12} parent=5 // pred_check_branch
        %154 = sbr.rel (%p151) target = $region12
      $region11: #{bert_forward.12} parent=5 // pred_region
        %s155 = ssub.s32 %s12, 1
      $region12: #{bert_forward.12} parent=5 // pred_fallthru
        _
      %p156 = scmp.lt.s32.totalorder %s12, 27
      // Predicated region
      $region13: #{bert_forward.12} parent=5 // pred_check
        %p157 = pneg %p156
      $region14: #{bert_forward.12} parent=5 // pred_check_branch
        %159 = sbr.rel (%p157) target = $region16
      $region15: #{bert_forward.12} parent=5 // pred_region
        // Predicated region
        $region17: #{bert_forward.12} parent=15 // pred_check
          %p160 = pneg %p53
        $region18: #{bert_forward.12} parent=15 // pred_check_branch
          %162 = sbr.rel (%p160) target = $region20
        $region19: #{bert_forward.12} parent=15 // pred_region
          %s163 = sand.u32 %s43, 1
          %s164 = sand.u32 %s43, 1
          %s165 = smul.addr %s164, 16
          %s166 = scalar_lea.vmem [#allocation3], %s165
          %s167 = smul.u32 2, %s19
          %s168 = smul.u32 2, %s21
          %s169 = smul.addr %s167, 6
          %s170 = sadd.s32 %s168, %s169
          %s171 = smul.addr %s170, 4
          %s172 = scalar_lea.vmem %s0, %s171
          // Predicated region
          $region21: #{bert_forward.12} parent=19 // pred_check
            _
          $region22: #{bert_forward.12} parent=19 // pred_check_branch
            %174 = sbr.rel (0) target = $region24
          $region23: #{bert_forward.12} parent=19 // pred_region
            // Predicated region
            $region25: #{bert_forward.12} parent=23 // pred_check
              _
            $region26: #{bert_forward.12} parent=23 // pred_check_branch
              %176 = sbr.rel (0) target = $region28
            $region27: #{bert_forward.12} parent=23 // pred_region
              // Predicated region
              $region40: #{bert_forward.12} parent=27 // pred_check
                _
              $region41: #{bert_forward.12} parent=27 // pred_check_branch
                %193 = sbr.rel (0) target = $region43
              $region42: #{bert_forward.12} parent=27 // pred_region
                loop: start=0, step=1, limit=1
                $region44: #{bert_forward.12} parent=42 // loop_pre_header
                  _
                $region45: #{bert_forward.12} parent=42 // loop_header
                  %s195 = sphi 0, %s199
                  %p196 = scmp.ge.s32.totalorder %s195, 1
                  %s200 = sphi %s172, %s172
                  %s201 = sphi %s166, %s166
                $region46: #{bert_forward.12} parent=42 // loop_header_branch
                  %198 = sbr.rel (%p196) target = $region50
                $region47: #{bert_forward.12} parent=42 // loop_body
                  %v202 = vld [vmem:[%s200] sm:$0xff]
                  %203 = vst [vmem:[%s201] sm:$0xff] %v202
                  %v204 = vld [vmem:[%s200 + $0x18] sm:$0xff]
                  %205 = vst [vmem:[%s201 + $0x8] sm:$0xff] %v204
                $region48: #{bert_forward.12} parent=42 // loop_footer
                  %s199 = sadd.s32 1, %s195
                $region49: #{bert_forward.12} parent=42 // loop_footer_branch
                  %194 = sbr.rel target = $region45
                $region50: #{bert_forward.12} parent=42 // loop_exit
                  _
              $region43: #{bert_forward.12} parent=27 // pred_fallthru
                _
              // Predicated region
              $region51: #{bert_forward.12} parent=27 // pred_check
                _
              $region52: #{bert_forward.12} parent=27 // pred_check_branch
                %207 = sbr.rel target = $region54
              $region53: #{bert_forward.12} parent=27 // pred_region
                _
              $region54: #{bert_forward.12} parent=27 // pred_fallthru
                _
            $region28: #{bert_forward.12} parent=23 // pred_fallthru
              _
            // Predicated region
            $region29: #{bert_forward.12} parent=23 // pred_check
              _
            $region30: #{bert_forward.12} parent=23 // pred_check_branch
              %178 = sbr.rel target = $region32
            $region31: #{bert_forward.12} parent=23 // pred_region
              loop: start=0, step=1, limit=1
              $region33: #{bert_forward.12} parent=31 // loop_pre_header
                _
              $region34: #{bert_forward.12} parent=31 // loop_header
                %s181 = sphi 0, %s185
                %p182 = scmp.ge.s32.totalorder %s181, 1
                %s186 = sphi %s172, %s172
                %s187 = sphi %s166, %s166
              $region35: #{bert_forward.12} parent=31 // loop_header_branch
                %184 = sbr.rel (%p182) target = $region39
              $region36: #{bert_forward.12} parent=31 // loop_body
                %v188 = vld [vmem:[%s186] sm:$0xff]
                %189 = vst [vmem:[%s187] sm:$0xff] %v188
                %v190 = vld [vmem:[%s186 + $0x18] sm:$0xff]
                %191 = vst [vmem:[%s187 + $0x8] sm:$0xff] %v190
              $region37: #{bert_forward.12} parent=31 // loop_footer
                %s185 = sadd.s32 1, %s181
              $region38: #{bert_forward.12} parent=31 // loop_footer_branch
                %180 = sbr.rel target = $region34
              $region39: #{bert_forward.12} parent=31 // loop_exit
                _
            $region32: #{bert_forward.12} parent=23 // pred_fallthru
              _
          $region24: #{bert_forward.12} parent=19 // pred_fallthru
            _
          %208 = vnop
        $region20: #{bert_forward.12} parent=15 // pred_fallthru
          _
        // Predicated region
        $region55: #{bert_forward.12} parent=15 // pred_check
          %p209 = pneg %p81
        $region56: #{bert_forward.12} parent=15 // pred_check_branch
          %211 = sbr.rel (%p209) target = $region58
        $region57: #{bert_forward.12} parent=15 // pred_region
          %s212 = sand.u32 %s71, 1
          %s213 = scalar_lea.sflag [#allocation5], %s212
          %s214 = sand.u32 %s71, 1
          %s215 = smul.addr %s214, 256
          %s216 = scalar_lea.vmem [#allocation4], %s215
          %s217 = smul.u32 32, %s21
          %s218 = smul.u32 2, %s20
          %s220 = ssub.s32 4096, 4096
          %221 = vsyncadd %s213, %s220
          %s222 = smul.addr %s217, 18
          %s223 = sadd.s32 %s218, %s222
          %s224 = smul.addr %s223, 64
          %s225 = scalar_lea.hbm %s1, %s224
          %s226 = sshll.u32 %s216, 4
          %s227 = int_to_ptr.vmem [resolvable:$true] %s226
          %232 = dma.hbm_to_vmem [thread:$0]  %s225, 4096, %s227, %s213, 1152, 128, 8
        $region58: #{bert_forward.12} parent=15 // pred_fallthru
          _
        // Predicated region
        $region59: #{bert_forward.12} parent=15 // pred_check
          %p233 = pneg %p107
        $region60: #{bert_forward.12} parent=15 // pred_check_branch
          %235 = sbr.rel (%p233) target = $region62
        $region61: #{bert_forward.12} parent=15 // pred_region
          %s236 = smul.u32 2, %s20
          %p237 = scmp.lt.s32.totalorder %s236, 17
          %s238 = scalar_select %p237, %s236, 17
          %s239 = scalar_lea.vmem %s2, %s238
          %s240 = smul.u32 2, %s20
        $region62: #{bert_forward.12} parent=15 // pred_fallthru
          _
      $region16: #{bert_forward.12} parent=5 // pred_fallthru
        _
      %p241 = scmp.le.s32.totalorder 1, %s12
      %p242 = scmp.lt.s32.totalorder %s12, 28
      %p243 = pnand %p241, %p242
      %p244 = pneg %p243
      // Predicated region
      $region63: #{bert_forward.12} parent=5 // pred_check
        _
      $region64: #{bert_forward.12} parent=5 // pred_check_branch
        %246 = sbr.rel (%p243) target = $region66
      $region65: #{bert_forward.12} parent=5 // pred_region
        %s247 = ssub.s32 %s12, 1
        %s248 = sand.u32 %s46, 1
        %s249 = sand.u32 %s46, 1
        %s250 = smul.addr %s249, 16
        %s251 = scalar_lea.vmem [#allocation3], %s250
        // Predicated region
        $region67: #{bert_forward.12} parent=65 // pred_check
          %p252 = pneg %p59
        $region68: #{bert_forward.12} parent=65 // pred_check_branch
          %254 = sbr.rel (%p252) target = $region70
        $region69: #{bert_forward.12} parent=65 // pred_region
          _
        $region70: #{bert_forward.12} parent=65 // pred_fallthru
          _
        %s255 = sand.u32 %s74, 1
        %s256 = scalar_lea.sflag [#allocation5], %s255
        %s257 = sand.u32 %s74, 1
        %s258 = smul.addr %s257, 256
        %s259 = scalar_lea.vmem [#allocation4], %s258
        // Predicated region
        $region71: #{bert_forward.12} parent=65 // pred_check
          %p260 = pneg %p87
        $region72: #{bert_forward.12} parent=65 // pred_check_branch
          %262 = sbr.rel (%p260) target = $region74
        $region73: #{bert_forward.12} parent=65 // pred_region
          %263 = dma.done %s256, 4096
        $region74: #{bert_forward.12} parent=65 // pred_fallthru
          _
        %s264 = sand.u32 %s46, 1
        %s265 = sand.u32 %s46, 1
        %s266 = smul.addr %s265, 16
        %s267 = scalar_lea.vmem [#allocation3], %s266
        %p268 = pneg %p59
        %p269 = pneg %p56
        %s270 = sand.u32 %s74, 1
        %s271 = scalar_lea.sflag [#allocation5], %s270
        %s272 = sand.u32 %s74, 1
        %s273 = smul.addr %s272, 256
        %s274 = scalar_lea.vmem [#allocation4], %s273
        %p275 = pneg %p87
        %p276 = pneg %p84
        %s277 = smul.u32 2, %s23
        %p278 = scmp.lt.s32.totalorder %s277, 17
        %s279 = scalar_select %p278, %s277, 17
        %s280 = scalar_lea.vmem %s2, %s279
        %p281 = pneg %p113
        %p282 = pneg %p110
        %p283 = pneg %p141
        %p284 = pneg %p138
        %s285 = sand.u32 %s128, 1
        %s286 = sand.u32 %s128, 1
        %s287 = smul.addr %s286, 16
        %s288 = scalar_lea.vmem [#allocation6], %s287
        %s289 = smul.u32 2, %s22
        %s290 = smul.u32 2, %s24
        %s291 = smul.u32 32, %s24
        %s292 = smul.u32 2, %s23
        %s293 = smul.u32 2, %s23
        %p294 = scmp.lt.s32.totalorder %s293, 17
        %s295 = scalar_select %p294, %s293, 17
        %s296 = scalar_lea.vmem %s2, %s295
        %s297 = smul.u32 2, %s23
        %s298 = smul.u32 2, %s22
        %s299 = smul.u32 2, %s23
        %p300 = scmp.eq.s32.totalorder %s24, 0
        // Predicated region
        $region75: #{bert_forward.12} parent=65 // pred_check
          %p301 = pneg %p300
        $region76: #{bert_forward.12} parent=65 // pred_check_branch
          %303 = sbr.rel (%p301) target = $region78
        $region77: #{bert_forward.12} parent=65 // pred_region
          %304 = vst [vmem:[#allocation2] sm:$0xff] 0.0
          %305 = vst [vmem:[#allocation2 + $0x8] sm:$0xff] 0.0
          %306 = vst [vmem:[#allocation2 + $0x10] sm:$0xff] 0.0
          %307 = vst [vmem:[#allocation2 + $0x18] sm:$0xff] 0.0
        $region78: #{bert_forward.12} parent=65 // pred_fallthru
          _
        %v308 = vld [vmem:[#allocation2] sm:$0xff]
        %v309 = vld [vmem:[#allocation2 + $0x8] sm:$0xff]
        %v310 = vld [vmem:[#allocation2 + $0x10] sm:$0xff]
        %v311 = vld [vmem:[#allocation2 + $0x18] sm:$0xff]
        %v312 = vld [vmem:[%s251] sm:$0xff]
        %v313 = vld [vmem:[%s251 + $0x8] sm:$0xff]
        %v314 = vld [vmem:[%s259] sm:$0xff]
        %v315 = vld [vmem:[%s259 + $0x8] sm:$0xff]
        %v316 = vld [vmem:[%s259 + $0x10] sm:$0xff]
        %v317 = vld [vmem:[%s259 + $0x18] sm:$0xff]
        %v318 = vld [vmem:[%s259 + $0x20] sm:$0xff]
        %v319 = vld [vmem:[%s259 + $0x28] sm:$0xff]
        %v320 = vld [vmem:[%s259 + $0x30] sm:$0xff]
        %v321 = vld [vmem:[%s259 + $0x38] sm:$0xff]
        %v322 = vld [vmem:[%s259 + $0x40] sm:$0xff]
        %v323 = vld [vmem:[%s259 + $0x48] sm:$0xff]
        %v324 = vld [vmem:[%s259 + $0x50] sm:$0xff]
        %v325 = vld [vmem:[%s259 + $0x58] sm:$0xff]
        %v326 = vld [vmem:[%s259 + $0x60] sm:$0xff]
        %v327 = vld [vmem:[%s259 + $0x68] sm:$0xff]
        %v328 = vld [vmem:[%s259 + $0x70] sm:$0xff]
        %v329 = vld [vmem:[%s259 + $0x78] sm:$0xff]
        %v330 = vld [vmem:[%s259 + $0x80] sm:$0xff]
        %v331 = vld [vmem:[%s259 + $0x88] sm:$0xff]
        %v332 = vld [vmem:[%s259 + $0x90] sm:$0xff]
        %v333 = vld [vmem:[%s259 + $0x98] sm:$0xff]
        %v334 = vld [vmem:[%s259 + $0xa0] sm:$0xff]
        %v335 = vld [vmem:[%s259 + $0xa8] sm:$0xff]
        %v336 = vld [vmem:[%s259 + $0xb0] sm:$0xff]
        %v337 = vld [vmem:[%s259 + $0xb8] sm:$0xff]
        %v338 = vld [vmem:[%s259 + $0xc0] sm:$0xff]
        %v339 = vld [vmem:[%s259 + $0xc8] sm:$0xff]
        %v340 = vld [vmem:[%s259 + $0xd0] sm:$0xff]
        %v341 = vld [vmem:[%s259 + $0xd8] sm:$0xff]
        %v342 = vld [vmem:[%s259 + $0xe0] sm:$0xff]
        %v343 = vld [vmem:[%s259 + $0xe8] sm:$0xff]
        %v344 = vld [vmem:[%s259 + $0xf0] sm:$0xff]
        %v345 = vld [vmem:[%s259 + $0xf8] sm:$0xff]
        %v348 = vunpack.c.l.b16 %v312
        %v349 = vunpack.c.h.b16 %v312
        %v350 = vunpack.c.l.b16 %v313
        %v351 = vunpack.c.h.b16 %v313
        %v352 = vpack.c.b16 %v350, %v348
        %v353 = vpack.c.b16 %v351, %v349
        %v388 = vunpack.c.l.b16 %v314
        %v389 = vunpack.c.h.b16 %v314
        %v390 = vunpack.c.l.b16 %v315
        %v391 = vunpack.c.h.b16 %v315
        %v392 = vunpack.c.l.b16 %v316
        %v393 = vunpack.c.h.b16 %v316
        %v394 = vunpack.c.l.b16 %v317
        %v395 = vunpack.c.h.b16 %v317
        %v396 = vunpack.c.l.b16 %v318
        %v397 = vunpack.c.h.b16 %v318
        %v398 = vunpack.c.l.b16 %v319
        %v399 = vunpack.c.h.b16 %v319
        %v400 = vunpack.c.l.b16 %v320
        %v401 = vunpack.c.h.b16 %v320
        %v402 = vunpack.c.l.b16 %v321
        %v403 = vunpack.c.h.b16 %v321
        %v404 = vunpack.c.l.b16 %v322
        %v405 = vunpack.c.h.b16 %v322
        %v406 = vunpack.c.l.b16 %v323
        %v407 = vunpack.c.h.b16 %v323
        %v408 = vunpack.c.l.b16 %v324
        %v409 = vunpack.c.h.b16 %v324
        %v410 = vunpack.c.l.b16 %v325
        %v411 = vunpack.c.h.b16 %v325
        %v412 = vunpack.c.l.b16 %v326
        %v413 = vunpack.c.h.b16 %v326
        %v414 = vunpack.c.l.b16 %v327
        %v415 = vunpack.c.h.b16 %v327
        %v416 = vunpack.c.l.b16 %v328
        %v417 = vunpack.c.h.b16 %v328
        %v418 = vunpack.c.l.b16 %v329
        %v419 = vunpack.c.h.b16 %v329
        %v420 = vunpack.c.l.b16 %v330
        %v421 = vunpack.c.h.b16 %v330
        %v422 = vunpack.c.l.b16 %v331
        %v423 = vunpack.c.h.b16 %v331
        %v424 = vunpack.c.l.b16 %v332
        %v425 = vunpack.c.h.b16 %v332
        %v426 = vunpack.c.l.b16 %v333
        %v427 = vunpack.c.h.b16 %v333
        %v428 = vunpack.c.l.b16 %v334
        %v429 = vunpack.c.h.b16 %v334
        %v430 = vunpack.c.l.b16 %v335
        %v431 = vunpack.c.h.b16 %v335
        %v432 = vunpack.c.l.b16 %v336
        %v433 = vunpack.c.h.b16 %v336
        %v434 = vunpack.c.l.b16 %v337
        %v435 = vunpack.c.h.b16 %v337
        %v436 = vunpack.c.l.b16 %v338
        %v437 = vunpack.c.h.b16 %v338
        %v438 = vunpack.c.l.b16 %v339
        %v439 = vunpack.c.h.b16 %v339
        %v440 = vunpack.c.l.b16 %v340
        %v441 = vunpack.c.h.b16 %v340
        %v442 = vunpack.c.l.b16 %v341
        %v443 = vunpack.c.h.b16 %v341
        %v444 = vunpack.c.l.b16 %v342
        %v445 = vunpack.c.h.b16 %v342
        %v446 = vunpack.c.l.b16 %v343
        %v447 = vunpack.c.h.b16 %v343
        %v448 = vunpack.c.l.b16 %v344
        %v449 = vunpack.c.h.b16 %v344
        %v450 = vunpack.c.l.b16 %v345
        %v451 = vunpack.c.h.b16 %v345
        %v452 = vpack.c.b16 %v390, %v388
        %v453 = vpack.c.b16 %v391, %v389
        %v454 = vpack.c.b16 %v394, %v392
        %v455 = vpack.c.b16 %v395, %v393
        %v456 = vpack.c.b16 %v398, %v396
        %v457 = vpack.c.b16 %v399, %v397
        %v458 = vpack.c.b16 %v402, %v400
        %v459 = vpack.c.b16 %v403, %v401
        %v460 = vpack.c.b16 %v406, %v404
        %v461 = vpack.c.b16 %v407, %v405
        %v462 = vpack.c.b16 %v410, %v408
        %v463 = vpack.c.b16 %v411, %v409
        %v464 = vpack.c.b16 %v414, %v412
        %v465 = vpack.c.b16 %v415, %v413
        %v466 = vpack.c.b16 %v418, %v416
        %v467 = vpack.c.b16 %v419, %v417
        %v468 = vpack.c.b16 %v422, %v420
        %v469 = vpack.c.b16 %v423, %v421
        %v470 = vpack.c.b16 %v426, %v424
        %v471 = vpack.c.b16 %v427, %v425
        %v472 = vpack.c.b16 %v430, %v428
        %v473 = vpack.c.b16 %v431, %v429
        %v474 = vpack.c.b16 %v434, %v432
        %v475 = vpack.c.b16 %v435, %v433
        %v476 = vpack.c.b16 %v438, %v436
        %v477 = vpack.c.b16 %v439, %v437
        %v478 = vpack.c.b16 %v442, %v440
        %v479 = vpack.c.b16 %v443, %v441
        %v480 = vpack.c.b16 %v446, %v444
        %v481 = vpack.c.b16 %v447, %v445
        %v482 = vpack.c.b16 %v450, %v448
        %v483 = vpack.c.b16 %v451, %v449
        %516 = vmatprep.subr.bf16.mxu0 %v453
        %517 = vmatpush1.bf16.msra.mxu0 %v452
        %518 = vmatprep.subr.bf16.mxu0 %v455
        %519 = vmatpush1.bf16.msra.mxu0 %v454
        %520 = vmatprep.subr.bf16.mxu0 %v457
        %521 = vmatpush1.bf16.msra.mxu0 %v456
        %522 = vmatprep.subr.bf16.mxu0 %v459
        %523 = vmatpush1.bf16.msra.mxu0 %v458
        %524 = vmatprep.subr.bf16.mxu0 %v461
        %525 = vmatpush1.bf16.msra.mxu0 %v460
        %526 = vmatprep.subr.bf16.mxu0 %v463
        %527 = vmatpush1.bf16.msra.mxu0 %v462
        %528 = vmatprep.subr.bf16.mxu0 %v465
        %529 = vmatpush1.bf16.msra.mxu0 %v464
        %530 = vmatprep.subr.bf16.mxu0 %v467
        %531 = vmatpush1.bf16.msra.mxu0 %v466
        %532 = vmatprep.subr.bf16.mxu0 %v469
        %533 = vmatpush1.bf16.msra.mxu0 %v468
        %534 = vmatprep.subr.bf16.mxu0 %v471
        %535 = vmatpush1.bf16.msra.mxu0 %v470
        %536 = vmatprep.subr.bf16.mxu0 %v473
        %537 = vmatpush1.bf16.msra.mxu0 %v472
        %538 = vmatprep.subr.bf16.mxu0 %v475
        %539 = vmatpush1.bf16.msra.mxu0 %v474
        %540 = vmatprep.subr.bf16.mxu0 %v477
        %541 = vmatpush1.bf16.msra.mxu0 %v476
        %542 = vmatprep.subr.bf16.mxu0 %v479
        %543 = vmatpush1.bf16.msra.mxu0 %v478
        %544 = vmatprep.subr.bf16.mxu0 %v481
        %545 = vmatpush1.bf16.msra.mxu0 %v480
        %546 = vmatprep.subr.bf16.mxu0 %v483
        %547 = vmatpush1.bf16.msra.mxu0 %v482
        %548 = vmatprep.mubr.bf16.mxu0 %v353
        %549 = vmatmul.mubr.bf16.gmra.mrb[0].mxu0 %v352
        %v550 = vpop.f32.mrb[0].mxu0
        %v551 = vadd.f32 0.0, %v550
        %v552 = vpop.f32.mrb[0].mxu0
        %v553 = vadd.f32 0.0, %v552
        %v554 = vpop.f32.mrb[0].mxu0
        %v555 = vadd.f32 0.0, %v554
        %v556 = vpop.f32.mrb[0].mxu0
        %v557 = vadd.f32 0.0, %v556
        %558 = vdwg.mxu0
        %v559 = vadd.f32 %v308, %v551
        %v560 = vadd.f32 %v309, %v553
        %v561 = vadd.f32 %v310, %v555
        %v562 = vadd.f32 %v311, %v557
        %563 = vst [vmem:[#allocation2] sm:$0xff] %v559
        %564 = vst [vmem:[#allocation2 + $0x8] sm:$0xff] %v560
        %565 = vst [vmem:[#allocation2 + $0x10] sm:$0xff] %v561
        %566 = vst [vmem:[#allocation2 + $0x18] sm:$0xff] %v562
        %p567 = scmp.eq.s32.totalorder %s24, 2
        // Predicated region
        $region79: #{bert_forward.12} parent=65 // pred_check
          %p568 = pneg %p567
        $region80: #{bert_forward.12} parent=65 // pred_check_branch
          %570 = sbr.rel (%p568) target = $region82
        $region81: #{bert_forward.12} parent=65 // pred_region
          %v571 = vld [vmem:[#allocation2] sm:$0xff]
          %v572 = vld [vmem:[#allocation2 + $0x8] sm:$0xff]
          %v573 = vld [vmem:[#allocation2 + $0x10] sm:$0xff]
          %v574 = vld [vmem:[#allocation2 + $0x18] sm:$0xff]
          %v575 = vld [vmem:[%s296] sm:$0x3]
          %v577 = vlaneseq
          %v578 = vshrl.u32 %v577, 7
          %v579 = vsub.s32 0, %v578
          %v580 = vrot.slane %v575, %v579
          %v581 = vlaneseq
          %v582 = vshrl.u32 %v581, 7
          %v583 = vsub.s32 1, %v582
          %v584 = vrot.slane %v575, %v583
          %v587 = vadd.f32 %v571, %v580
          %v588 = vadd.f32 %v572, %v584
          %v589 = vadd.f32 %v573, %v580
          %v590 = vadd.f32 %v574, %v584
          %v591 = vpack.c.bf16 %v589, %v587
          %v592 = vpack.c.bf16 %v590, %v588
          %v595 = vunpack.c.l.b16 %v591
          %v596 = vunpack.c.l.b16 %v592
          %v597 = vunpack.c.h.b16 %v591
          %v598 = vunpack.c.h.b16 %v592
          %v599 = vpack.c.b16 %v596, %v595
          %v600 = vpack.c.b16 %v598, %v597
          %603 = vst [vmem:[%s288] sm:$0xff] %v599
          %604 = vst [vmem:[%s288 + $0x8] sm:$0xff] %v600
        $region82: #{bert_forward.12} parent=65 // pred_fallthru
          _
        %s605 = sand.u32 %s128, 1
        %s606 = sand.u32 %s128, 1
        %s607 = smul.addr %s606, 16
        %s608 = scalar_lea.vmem [#allocation6], %s607
        // Predicated region
        $region83: #{bert_forward.12} parent=65 // pred_check
          %p609 = pneg %p138
        $region84: #{bert_forward.12} parent=65 // pred_check_branch
          %611 = sbr.rel (%p609) target = $region86
        $region85: #{bert_forward.12} parent=65 // pred_region
          %s612 = smul.u32 2, %s22
          %s613 = smul.u32 2, %s23
          %s614 = smul.addr %s612, 18
          %s615 = sadd.s32 %s613, %s614
          %s616 = smul.addr %s615, 4
          %s617 = scalar_lea.vmem %s3, %s616
          // Predicated region
          $region87: #{bert_forward.12} parent=85 // pred_check
            _
          $region88: #{bert_forward.12} parent=85 // pred_check_branch
            %619 = sbr.rel (0) target = $region90
          $region89: #{bert_forward.12} parent=85 // pred_region
            // Predicated region
            $region91: #{bert_forward.12} parent=89 // pred_check
              _
            $region92: #{bert_forward.12} parent=89 // pred_check_branch
              %621 = sbr.rel (0) target = $region94
            $region93: #{bert_forward.12} parent=89 // pred_region
              // Predicated region
              $region106: #{bert_forward.12} parent=93 // pred_check
                _
              $region107: #{bert_forward.12} parent=93 // pred_check_branch
                %638 = sbr.rel (0) target = $region109
              $region108: #{bert_forward.12} parent=93 // pred_region
                loop: start=0, step=1, limit=1
                $region110: #{bert_forward.12} parent=108 // loop_pre_header
                  _
                $region111: #{bert_forward.12} parent=108 // loop_header
                  %s640 = sphi 0, %s644
                  %p641 = scmp.ge.s32.totalorder %s640, 1
                  %s645 = sphi %s608, %s608
                  %s646 = sphi %s617, %s617
                $region112: #{bert_forward.12} parent=108 // loop_header_branch
                  %643 = sbr.rel (%p641) target = $region116
                $region113: #{bert_forward.12} parent=108 // loop_body
                  %v647 = vld [vmem:[%s645] sm:$0xff]
                  %648 = vst [vmem:[%s646] sm:$0xff] %v647
                  %v649 = vld [vmem:[%s645 + $0x8] sm:$0xff]
                  %650 = vst [vmem:[%s646 + $0x48] sm:$0xff] %v649
                $region114: #{bert_forward.12} parent=108 // loop_footer
                  %s644 = sadd.s32 1, %s640
                $region115: #{bert_forward.12} parent=108 // loop_footer_branch
                  %639 = sbr.rel target = $region111
                $region116: #{bert_forward.12} parent=108 // loop_exit
                  _
              $region109: #{bert_forward.12} parent=93 // pred_fallthru
                _
              // Predicated region
              $region117: #{bert_forward.12} parent=93 // pred_check
                _
              $region118: #{bert_forward.12} parent=93 // pred_check_branch
                %652 = sbr.rel target = $region120
              $region119: #{bert_forward.12} parent=93 // pred_region
                _
              $region120: #{bert_forward.12} parent=93 // pred_fallthru
                _
            $region94: #{bert_forward.12} parent=89 // pred_fallthru
              _
            // Predicated region
            $region95: #{bert_forward.12} parent=89 // pred_check
              _
            $region96: #{bert_forward.12} parent=89 // pred_check_branch
              %623 = sbr.rel target = $region98
            $region97: #{bert_forward.12} parent=89 // pred_region
              loop: start=0, step=1, limit=1
              $region99: #{bert_forward.12} parent=97 // loop_pre_header
                _
              $region100: #{bert_forward.12} parent=97 // loop_header
                %s626 = sphi 0, %s630
                %p627 = scmp.ge.s32.totalorder %s626, 1
                %s631 = sphi %s608, %s608
                %s632 = sphi %s617, %s617
              $region101: #{bert_forward.12} parent=97 // loop_header_branch
                %629 = sbr.rel (%p627) target = $region105
              $region102: #{bert_forward.12} parent=97 // loop_body
                %v633 = vld [vmem:[%s631] sm:$0xff]
                %634 = vst [vmem:[%s632] sm:$0xff] %v633
                %v635 = vld [vmem:[%s631 + $0x8] sm:$0xff]
                %636 = vst [vmem:[%s632 + $0x48] sm:$0xff] %v635
              $region103: #{bert_forward.12} parent=97 // loop_footer
                %s630 = sadd.s32 1, %s626
              $region104: #{bert_forward.12} parent=97 // loop_footer_branch
                %625 = sbr.rel target = $region100
              $region105: #{bert_forward.12} parent=97 // loop_exit
                _
            $region98: #{bert_forward.12} parent=89 // pred_fallthru
              _
          $region90: #{bert_forward.12} parent=85 // pred_fallthru
            _
          %653 = vnop
        $region86: #{bert_forward.12} parent=65 // pred_fallthru
          _
      $region66: #{bert_forward.12} parent=5 // pred_fallthru
        _
      %p654 = scmp.le.s32.totalorder 2, %s12
      // Predicated region
      $region121: #{bert_forward.12} parent=5 // pred_check
        %p655 = pneg %p654
      $region122: #{bert_forward.12} parent=5 // pred_check_branch
        %657 = sbr.rel (%p655) target = $region124
      $region123: #{bert_forward.12} parent=5 // pred_region
        %s658 = ssub.s32 %s12, 2
        // Predicated region
        $region125: #{bert_forward.12} parent=123 // pred_check
          %p659 = pneg %p144
        $region126: #{bert_forward.12} parent=123 // pred_check_branch
          %661 = sbr.rel (%p659) target = $region128
        $region127: #{bert_forward.12} parent=123 // pred_region
          %s662 = sand.u32 %s129, 1
          %s663 = sand.u32 %s129, 1
          %s664 = smul.addr %s663, 16
          %s665 = scalar_lea.vmem [#allocation6], %s664
        $region128: #{bert_forward.12} parent=123 // pred_fallthru
          _
      $region124: #{bert_forward.12} parent=5 // pred_fallthru
        _
    $region6: #{bert_forward.12} parent=1 // loop_footer
      %s16 = sadd.s32 1, %s12
    $region7: #{bert_forward.12} parent=1 // loop_footer_branch
      %11 = sbr.rel target = $region3
    $region8: #{bert_forward.12} parent=1 // loop_exit
      _
    %666 = vsyncpa [#allocation5], 1
    %s667 = scalar_lea.sflag [#allocation5], 1
    %668 = vsyncpa %s667, 1

// kernel: bert_forward.13
$region0: #{bert_forward.13}
  #allocation0 [shape = 'u32[]', space=smem, size = 0x4, offset = 0x4, fixed_abs, tag = 'smem constant byte address 0x4 - core index']
  #allocation1 [shape = 'u32[144,128]{1,0:T(1,128)}', space=vmem, size = 0x12000, scoped, tag = 'internal scratch']
  %s0 = inlined_call_operand.vmem [shape: bf16[24,8,64], index: 0, kind: input, shape index: {}]
  %s1 = inlined_call_operand.vmem [shape: bf16[24,8,64], index: 1, kind: input, shape index: {}]
  %s2 = inlined_call_operand.vmem [shape: bf16[24,8,64], index: 2, kind: input, shape index: {}]
  %s3 = inlined_call_operand.vmem [shape: bf16[24,8,64], index: 3, kind: output, shape index: {}]
  %s4 = sld [smem:[#allocation0]]
  $region45: #{bert_forward.13} parent=0
    _
  %s6 = ssub.s32 1, %s4
  %s7 = scalar_select 0, %s6, %s4
  loop: start=0, step=1, limit=8
  $region2: #{bert_forward.13} parent=0 // loop_pre_header
    _
  $region3: #{bert_forward.13} parent=0 // loop_header
    %s9 = sphi 0, %s13
    %p10 = scmp.ge.s32.totalorder %s9, 8
    %s19 = sphi 0, %s21
    %s22 = sphi 0, %s19
    %s23 = sphi 0, %s22
    %s39 = sphi 0, %s23
    %s45 = sphi 0, %s47
    %s48 = sphi 0, %s45
    %s49 = sphi 0, %s48
    %s65 = sphi 0, %s49
    %s71 = sphi 0, %s73
    %s74 = sphi 0, %s71
    %s75 = sphi 0, %s74
    %s91 = sphi 0, %s75
    %s97 = sphi 0, %s99
    %s100 = sphi 0, %s97
    %s101 = sphi 0, %s100
    %s117 = sphi 0, %s101
  $region4: #{bert_forward.13} parent=0 // loop_header_branch
    %12 = sbr.rel (%p10) target = $region8
  $region5: #{bert_forward.13} parent=0 // loop_body
    %s14 = ssub.s32 %s9, 1
    %s15 = ssub.s32 %s9, 2
    %s16 = sadd.s32 %s9, 1
    %s17 = ssub.s32 %s9, %s16
    %p18 = scmp.eq.s32.totalorder %s17, 0
    %s20 = sadd.s32 %s19, 1
    %s21 = scalar_select %p18, %s19, %s20
    %p24 = pneg %p18
    %p25 = scmp.eq.s32.totalorder %s9, 5
    %p26 = por %p24, %p25
    %p27 = scmp.ne.s32.totalorder %s19, %s22
    %p28 = scmp.eq.s32.totalorder %s9, 0
    %p29 = por %p27, %p28
    %p30 = scmp.ne.s32.totalorder %s19, %s22
    %p31 = scmp.eq.s32.totalorder %s14, 5
    %p32 = por %p30, %p31
    %p33 = scmp.ne.s32.totalorder %s22, %s23
    %p34 = scmp.eq.s32.totalorder %s14, 0
    %p35 = por %p33, %p34
    %p36 = scmp.ne.s32.totalorder %s22, %s23
    %p37 = scmp.eq.s32.totalorder %s15, 5
    %p38 = por %p36, %p37
    %p40 = scmp.ne.s32.totalorder %s23, %s39
    %p41 = scmp.eq.s32.totalorder %s15, 0
    %p42 = por %p40, %p41
    %s43 = ssub.s32 %s9, %s16
    %p44 = scmp.eq.s32.totalorder %s43, 0
    %s46 = sadd.s32 %s45, 1
    %s47 = scalar_select %p44, %s45, %s46
    %p50 = pneg %p44
    %p51 = scmp.eq.s32.totalorder %s9, 5
    %p52 = por %p50, %p51
    %p53 = scmp.ne.s32.totalorder %s45, %s48
    %p54 = scmp.eq.s32.totalorder %s9, 0
    %p55 = por %p53, %p54
    %p56 = scmp.ne.s32.totalorder %s45, %s48
    %p57 = scmp.eq.s32.totalorder %s14, 5
    %p58 = por %p56, %p57
    %p59 = scmp.ne.s32.totalorder %s48, %s49
    %p60 = scmp.eq.s32.totalorder %s14, 0
    %p61 = por %p59, %p60
    %p62 = scmp.ne.s32.totalorder %s48, %s49
    %p63 = scmp.eq.s32.totalorder %s15, 5
    %p64 = por %p62, %p63
    %p66 = scmp.ne.s32.totalorder %s49, %s65
    %p67 = scmp.eq.s32.totalorder %s15, 0
    %p68 = por %p66, %p67
    %s69 = ssub.s32 %s9, %s16
    %p70 = scmp.eq.s32.totalorder %s69, 0
    %s72 = sadd.s32 %s71, 1
    %s73 = scalar_select %p70, %s71, %s72
    %p76 = pneg %p70
    %p77 = scmp.eq.s32.totalorder %s9, 5
    %p78 = por %p76, %p77
    %p79 = scmp.ne.s32.totalorder %s71, %s74
    %p80 = scmp.eq.s32.totalorder %s9, 0
    %p81 = por %p79, %p80
    %p82 = scmp.ne.s32.totalorder %s71, %s74
    %p83 = scmp.eq.s32.totalorder %s14, 5
    %p84 = por %p82, %p83
    %p85 = scmp.ne.s32.totalorder %s74, %s75
    %p86 = scmp.eq.s32.totalorder %s14, 0
    %p87 = por %p85, %p86
    %p88 = scmp.ne.s32.totalorder %s74, %s75
    %p89 = scmp.eq.s32.totalorder %s15, 5
    %p90 = por %p88, %p89
    %p92 = scmp.ne.s32.totalorder %s75, %s91
    %p93 = scmp.eq.s32.totalorder %s15, 0
    %p94 = por %p92, %p93
    %s95 = ssub.s32 %s9, %s16
    %p96 = scmp.eq.s32.totalorder %s95, 0
    %s98 = sadd.s32 %s97, 1
    %s99 = scalar_select %p96, %s97, %s98
    %p102 = pneg %p96
    %p103 = scmp.eq.s32.totalorder %s9, 5
    %p104 = por %p102, %p103
    %p105 = scmp.ne.s32.totalorder %s97, %s100
    %p106 = scmp.eq.s32.totalorder %s9, 0
    %p107 = por %p105, %p106
    %p108 = scmp.ne.s32.totalorder %s97, %s100
    %p109 = scmp.eq.s32.totalorder %s14, 5
    %p110 = por %p108, %p109
    %p111 = scmp.ne.s32.totalorder %s100, %s101
    %p112 = scmp.eq.s32.totalorder %s14, 0
    %p113 = por %p111, %p112
    %p114 = scmp.ne.s32.totalorder %s100, %s101
    %p115 = scmp.eq.s32.totalorder %s15, 5
    %p116 = por %p114, %p115
    %p118 = scmp.ne.s32.totalorder %s101, %s117
    %p119 = scmp.eq.s32.totalorder %s15, 0
    %p120 = por %p118, %p119
    %p121 = scmp.le.s32.totalorder 1, %s9
    %p122 = scmp.lt.s32.totalorder %s9, 7
    %p123 = pnand %p121, %p122
    %p124 = pneg %p123
    // Predicated region
    $region9: #{bert_forward.13} parent=5 // pred_check
      _
    $region10: #{bert_forward.13} parent=5 // pred_check_branch
      %126 = sbr.rel (%p123) target = $region12
    $region11: #{bert_forward.13} parent=5 // pred_region
      %s127 = ssub.s32 %s9, 1
    $region12: #{bert_forward.13} parent=5 // pred_fallthru
      _
    %p128 = scmp.lt.s32.totalorder %s9, 6
    // Predicated region
    $region13: #{bert_forward.13} parent=5 // pred_check
      %p129 = pneg %p128
    $region14: #{bert_forward.13} parent=5 // pred_check_branch
      %131 = sbr.rel (%p129) target = $region16
    $region15: #{bert_forward.13} parent=5 // pred_region
      // Predicated region
      $region17: #{bert_forward.13} parent=15 // pred_check
        %p132 = pneg %p29
      $region18: #{bert_forward.13} parent=15 // pred_check_branch
        %134 = sbr.rel (%p132) target = $region20
      $region19: #{bert_forward.13} parent=15 // pred_region
        %s135 = smul.u32 4, %s9
        %p136 = scmp.lt.s32.totalorder %s135, 23
        %s137 = scalar_select %p136, %s135, 23
        %s138 = smul.addr %s137, 4
        %s139 = scalar_lea.vmem %s0, %s138
        %s140 = smul.u32 4, %s9
      $region20: #{bert_forward.13} parent=15 // pred_fallthru
        _
      // Predicated region
      $region21: #{bert_forward.13} parent=15 // pred_check
        %p141 = pneg %p55
      $region22: #{bert_forward.13} parent=15 // pred_check_branch
        %143 = sbr.rel (%p141) target = $region24
      $region23: #{bert_forward.13} parent=15 // pred_region
        %s144 = smul.u32 4, %s9
        %p145 = scmp.lt.s32.totalorder %s144, 23
        %s146 = scalar_select %p145, %s144, 23
        %s147 = smul.addr %s146, 4
        %s148 = scalar_lea.vmem %s1, %s147
        %s149 = smul.u32 4, %s9
      $region24: #{bert_forward.13} parent=15 // pred_fallthru
        _
      // Predicated region
      $region25: #{bert_forward.13} parent=15 // pred_check
        %p150 = pneg %p81
      $region26: #{bert_forward.13} parent=15 // pred_check_branch
        %152 = sbr.rel (%p150) target = $region28
      $region27: #{bert_forward.13} parent=15 // pred_region
        %s153 = smul.u32 4, %s9
        %p154 = scmp.lt.s32.totalorder %s153, 23
        %s155 = scalar_select %p154, %s153, 23
        %s156 = smul.addr %s155, 4
        %s157 = scalar_lea.vmem %s2, %s156
        %s158 = smul.u32 4, %s9
      $region28: #{bert_forward.13} parent=15 // pred_fallthru
        _
    $region16: #{bert_forward.13} parent=5 // pred_fallthru
      _
    %p159 = scmp.le.s32.totalorder 1, %s9
    %p160 = scmp.lt.s32.totalorder %s9, 7
    %p161 = pnand %p159, %p160
    %p162 = pneg %p161
    // Predicated region
    $region29: #{bert_forward.13} parent=5 // pred_check
      _
    $region30: #{bert_forward.13} parent=5 // pred_check_branch
      %164 = sbr.rel (%p161) target = $region32
    $region31: #{bert_forward.13} parent=5 // pred_region
      %s165 = ssub.s32 %s9, 1
      %s166 = smul.u32 4, %s14
      %p167 = scmp.lt.s32.totalorder %s166, 23
      %s168 = scalar_select %p167, %s166, 23
      %s169 = smul.addr %s168, 4
      %s170 = scalar_lea.vmem %s0, %s169
      %p171 = pneg %p35
      %p172 = pneg %p32
      %s173 = smul.u32 4, %s14
      %p174 = scmp.lt.s32.totalorder %s173, 23
      %s175 = scalar_select %p174, %s173, 23
      %s176 = smul.addr %s175, 4
      %s177 = scalar_lea.vmem %s1, %s176
      %p178 = pneg %p61
      %p179 = pneg %p58
      %s180 = smul.u32 4, %s14
      %p181 = scmp.lt.s32.totalorder %s180, 23
      %s182 = scalar_select %p181, %s180, 23
      %s183 = smul.addr %s182, 4
      %s184 = scalar_lea.vmem %s2, %s183
      %p185 = pneg %p87
      %p186 = pneg %p84
      %p187 = pneg %p113
      %p188 = pneg %p110
      %s189 = smul.u32 4, %s14
      %p190 = scmp.lt.s32.totalorder %s189, 23
      %s191 = scalar_select %p190, %s189, 23
      %s192 = smul.addr %s191, 4
      %s193 = scalar_lea.vmem %s3, %s192
      %s194 = smul.u32 4, %s14
      %p195 = scmp.lt.s32.totalorder %s194, 23
      %s196 = scalar_select %p195, %s194, 23
      %s197 = smul.addr %s196, 4
      %s198 = scalar_lea.vmem %s0, %s197
      %s199 = smul.u32 4, %s14
      %s200 = smul.u32 4, %s14
      %p201 = scmp.lt.s32.totalorder %s200, 23
      %s202 = scalar_select %p201, %s200, 23
      %s203 = smul.addr %s202, 4
      %s204 = scalar_lea.vmem %s1, %s203
      %s205 = smul.u32 4, %s14
      %s206 = smul.u32 4, %s14
      %p207 = scmp.lt.s32.totalorder %s206, 23
      %s208 = scalar_select %p207, %s206, 23
      %s209 = smul.addr %s208, 4
      %s210 = scalar_lea.vmem %s2, %s209
      %s211 = smul.u32 4, %s14
      %s212 = smul.u32 4, %s14
      %p213 = scmp.lt.s32.totalorder %s212, 23
      %s214 = scalar_select %p213, %s212, 23
      %s215 = smul.addr %s214, 4
      %s216 = scalar_lea.vmem %s3, %s215
      %s217 = smul.u32 4, %s14
      %v219 = vld [vmem:[%s198] sm:$0xf]
      %v220 = vld [vmem:[%s198 + $0x4] sm:$0xf]
      %v221 = vld [vmem:[%s198 + $0x8] sm:$0xf]
      %v222 = vld [vmem:[%s198 + $0xc] sm:$0xf]
      %v223 = vld [vmem:[%s204] sm:$0xf]
      %v224 = vld [vmem:[%s204 + $0x4] sm:$0xf]
      %v225 = vld [vmem:[%s204 + $0x8] sm:$0xf]
      %v226 = vld [vmem:[%s204 + $0xc] sm:$0xf]
      %vm227 = vcmask 523264
      %v229 = vsel %vm227, %v219, 0
      %v232 = vsel %vm227, %v223, 0
      %234 = vmatprep.subr.bf16.mxu0 0
      %235 = vmatpush1.bf16.xpose.msra.mxu0 %v232
      %236 = vmatprep.subr.bf16.mxu0 0
      %237 = vmatpush1.bf16.xpose.msra.mxu0 0
      %238 = vmatprep.subr.bf16.mxu0 0
      %239 = vmatpush1.bf16.xpose.msra.mxu0 0
      %240 = vmatprep.subr.bf16.mxu0 0
      %241 = vmatpush1.bf16.xpose.msra.mxu0 0
      %242 = vmatprep.subr.bf16.mxu0 0
      %243 = vmatpush1.bf16.xpose.msra.mxu0 0
      %244 = vmatprep.subr.bf16.mxu0 0
      %245 = vmatpush1.bf16.xpose.msra.mxu0 0
      %246 = vmatprep.subr.bf16.mxu0 0
      %247 = vmatpush1.bf16.xpose.msra.mxu0 0
      %248 = vmatprep.subr.bf16.mxu0 0
      %249 = vmatpush1.bf16.xpose.msra.mxu0 0
      %250 = vmatprep.subr.bf16.mxu0 0
      %251 = vmatpush1.bf16.xpose.msra.mxu0 0
      %252 = vmatprep.subr.bf16.mxu0 0
      %253 = vmatpush1.bf16.xpose.msra.mxu0 0
      %254 = vmatprep.subr.bf16.mxu0 0
      %255 = vmatpush1.bf16.xpose.msra.mxu0 0
      %256 = vmatprep.subr.bf16.mxu0 0
      %257 = vmatpush1.bf16.xpose.msra.mxu0 0
      %258 = vmatprep.subr.bf16.mxu0 0
      %259 = vmatpush1.bf16.xpose.msra.mxu0 0
      %260 = vmatprep.subr.bf16.mxu0 0
      %261 = vmatpush1.bf16.xpose.msra.mxu0 0
      %262 = vmatprep.subr.bf16.mxu0 0
      %263 = vmatpush1.bf16.xpose.msra.mxu0 0
      %264 = vmatprep.subr.bf16.mxu0 0
      %265 = vmatpush1.bf16.xpose.msra.mxu0 0
      %266 = vmatprep.mubr.bf16.mxu0 0
      %267 = vmatmul.mubr.bf16.gmra.mrb[0].mxu0 %v229
      %v268 = vpop.f32.mrb[0].mxu0
      %v269 = vadd.f32 0.0, %v268
      %v270 = vpop.f32.mrb[0].mxu0
      %v271 = vpop.f32.mrb[0].mxu0
      %v272 = vpop.f32.mrb[0].mxu0
      %273 = vdwg.mxu0
      %v275 = vsel %vm227, %v220, 0
      %v278 = vsel %vm227, %v224, 0
      %280 = vmatprep.subr.bf16.mxu0 0
      %281 = vmatpush1.bf16.xpose.msra.mxu0 %v278
      %282 = vmatprep.subr.bf16.mxu0 0
      %283 = vmatpush1.bf16.xpose.msra.mxu0 0
      %284 = vmatprep.subr.bf16.mxu0 0
      %285 = vmatpush1.bf16.xpose.msra.mxu0 0
      %286 = vmatprep.subr.bf16.mxu0 0
      %287 = vmatpush1.bf16.xpose.msra.mxu0 0
      %288 = vmatprep.subr.bf16.mxu0 0
      %289 = vmatpush1.bf16.xpose.msra.mxu0 0
      %290 = vmatprep.subr.bf16.mxu0 0
      %291 = vmatpush1.bf16.xpose.msra.mxu0 0
      %292 = vmatprep.subr.bf16.mxu0 0
      %293 = vmatpush1.bf16.xpose.msra.mxu0 0
      %294 = vmatprep.subr.bf16.mxu0 0
      %295 = vmatpush1.bf16.xpose.msra.mxu0 0
      %296 = vmatprep.subr.bf16.mxu0 0
      %297 = vmatpush1.bf16.xpose.msra.mxu0 0
      %298 = vmatprep.subr.bf16.mxu0 0
      %299 = vmatpush1.bf16.xpose.msra.mxu0 0
      %300 = vmatprep.subr.bf16.mxu0 0
      %301 = vmatpush1.bf16.xpose.msra.mxu0 0
      %302 = vmatprep.subr.bf16.mxu0 0
      %303 = vmatpush1.bf16.xpose.msra.mxu0 0
      %304 = vmatprep.subr.bf16.mxu0 0
      %305 = vmatpush1.bf16.xpose.msra.mxu0 0
      %306 = vmatprep.subr.bf16.mxu0 0
      %307 = vmatpush1.bf16.xpose.msra.mxu0 0
      %308 = vmatprep.subr.bf16.mxu0 0
      %309 = vmatpush1.bf16.xpose.msra.mxu0 0
      %310 = vmatprep.subr.bf16.mxu0 0
      %311 = vmatpush1.bf16.xpose.msra.mxu0 0
      %312 = vmatprep.mubr.bf16.mxu0 0
      %313 = vmatmul.mubr.bf16.gmra.mrb[0].mxu0 %v275
      %v314 = vpop.f32.mrb[0].mxu0
      %v315 = vadd.f32 0.0, %v314
      %v316 = vpop.f32.mrb[0].mxu0
      %v317 = vpop.f32.mrb[0].mxu0
      %v318 = vpop.f32.mrb[0].mxu0
      %319 = vdwg.mxu0
      %v321 = vsel %vm227, %v221, 0
      %v324 = vsel %vm227, %v225, 0
      %326 = vmatprep.subr.bf16.mxu0 0
      %327 = vmatpush1.bf16.xpose.msra.mxu0 %v324
      %328 = vmatprep.subr.bf16.mxu0 0
      %329 = vmatpush1.bf16.xpose.msra.mxu0 0
      %330 = vmatprep.subr.bf16.mxu0 0
      %331 = vmatpush1.bf16.xpose.msra.mxu0 0
      %332 = vmatprep.subr.bf16.mxu0 0
      %333 = vmatpush1.bf16.xpose.msra.mxu0 0
      %334 = vmatprep.subr.bf16.mxu0 0
      %335 = vmatpush1.bf16.xpose.msra.mxu0 0
      %336 = vmatprep.subr.bf16.mxu0 0
      %337 = vmatpush1.bf16.xpose.msra.mxu0 0
      %338 = vmatprep.subr.bf16.mxu0 0
      %339 = vmatpush1.bf16.xpose.msra.mxu0 0
      %340 = vmatprep.subr.bf16.mxu0 0
      %341 = vmatpush1.bf16.xpose.msra.mxu0 0
      %342 = vmatprep.subr.bf16.mxu0 0
      %343 = vmatpush1.bf16.xpose.msra.mxu0 0
      %344 = vmatprep.subr.bf16.mxu0 0
      %345 = vmatpush1.bf16.xpose.msra.mxu0 0
      %346 = vmatprep.subr.bf16.mxu0 0
      %347 = vmatpush1.bf16.xpose.msra.mxu0 0
      %348 = vmatprep.subr.bf16.mxu0 0
      %349 = vmatpush1.bf16.xpose.msra.mxu0 0
      %350 = vmatprep.subr.bf16.mxu0 0
      %351 = vmatpush1.bf16.xpose.msra.mxu0 0
      %352 = vmatprep.subr.bf16.mxu0 0
      %353 = vmatpush1.bf16.xpose.msra.mxu0 0
      %354 = vmatprep.subr.bf16.mxu0 0
      %355 = vmatpush1.bf16.xpose.msra.mxu0 0
      %356 = vmatprep.subr.bf16.mxu0 0
      %357 = vmatpush1.bf16.xpose.msra.mxu0 0
      %358 = vmatprep.mubr.bf16.mxu0 0
      %359 = vmatmul.mubr.bf16.gmra.mrb[0].mxu0 %v321
      %v360 = vpop.f32.mrb[0].mxu0
      %v361 = vadd.f32 0.0, %v360
      %v362 = vpop.f32.mrb[0].mxu0
      %v363 = vpop.f32.mrb[0].mxu0
      %v364 = vpop.f32.mrb[0].mxu0
      %365 = vdwg.mxu0
      %v367 = vsel %vm227, %v222, 0
      %v370 = vsel %vm227, %v226, 0
      %372 = vmatprep.subr.bf16.mxu0 0
      %373 = vmatpush1.bf16.xpose.msra.mxu0 %v370
      %374 = vmatprep.subr.bf16.mxu0 0
      %375 = vmatpush1.bf16.xpose.msra.mxu0 0
      %376 = vmatprep.subr.bf16.mxu0 0
      %377 = vmatpush1.bf16.xpose.msra.mxu0 0
      %378 = vmatprep.subr.bf16.mxu0 0
      %379 = vmatpush1.bf16.xpose.msra.mxu0 0
      %380 = vmatprep.subr.bf16.mxu0 0
      %381 = vmatpush1.bf16.xpose.msra.mxu0 0
      %382 = vmatprep.subr.bf16.mxu0 0
      %383 = vmatpush1.bf16.xpose.msra.mxu0 0
      %384 = vmatprep.subr.bf16.mxu0 0
      %385 = vmatpush1.bf16.xpose.msra.mxu0 0
      %386 = vmatprep.subr.bf16.mxu0 0
      %387 = vmatpush1.bf16.xpose.msra.mxu0 0
      %388 = vmatprep.subr.bf16.mxu0 0
      %389 = vmatpush1.bf16.xpose.msra.mxu0 0
      %390 = vmatprep.subr.bf16.mxu0 0
      %391 = vmatpush1.bf16.xpose.msra.mxu0 0
      %392 = vmatprep.subr.bf16.mxu0 0
      %393 = vmatpush1.bf16.xpose.msra.mxu0 0
      %394 = vmatprep.subr.bf16.mxu0 0
      %395 = vmatpush1.bf16.xpose.msra.mxu0 0
      %396 = vmatprep.subr.bf16.mxu0 0
      %397 = vmatpush1.bf16.xpose.msra.mxu0 0
      %398 = vmatprep.subr.bf16.mxu0 0
      %399 = vmatpush1.bf16.xpose.msra.mxu0 0
      %400 = vmatprep.subr.bf16.mxu0 0
      %401 = vmatpush1.bf16.xpose.msra.mxu0 0
      %402 = vmatprep.subr.bf16.mxu0 0
      %403 = vmatpush1.bf16.xpose.msra.mxu0 0
      %404 = vmatprep.mubr.bf16.mxu0 0
      %405 = vmatmul.mubr.bf16.gmra.mrb[0].mxu0 %v367
      %v406 = vpop.f32.mrb[0].mxu0
      %v407 = vadd.f32 0.0, %v406
      %v408 = vpop.f32.mrb[0].mxu0
      %v409 = vpop.f32.mrb[0].mxu0
      %v410 = vpop.f32.mrb[0].mxu0
      %411 = vdwg.mxu0
      %v412 = vmul.f32 %v269, 0.125
      %v413 = vmul.f32 %v315, 0.125
      %v414 = vmul.f32 %v361, 0.125
      %v415 = vmul.f32 %v407, 0.125
      %vm416 = vcmask 64512
      %v417 = vsel %vm416, %v412, -inf
      %418 = vmax.xlane.f32.xlu0 %v417
      %v419 = vpop.xlane.xlu0 %418
      %v420 = vsel %vm416, %v413, -inf
      %421 = vmax.xlane.f32.xlu0 %v420
      %v422 = vpop.xlane.xlu0 %421
      %v423 = vsel %vm416, %v414, -inf
      %424 = vmax.xlane.f32.xlu0 %v423
      %v425 = vpop.xlane.xlu0 %424
      %v426 = vsel %vm416, %v415, -inf
      %427 = vmax.xlane.f32.xlu0 %v426
      %v428 = vpop.xlane.xlu0 %427
      %v429 = vsub.f32 %v412, %v419
      %v430 = vsub.f32 %v413, %v422
      %v431 = vsub.f32 %v414, %v425
      %v432 = vsub.f32 %v415, %v428
      %v433 = vmul.f32 %v429, 1.442695
      %v434 = vpow.pop %v433
      %v435 = vmul.f32 %v430, 1.442695
      %v436 = vpow.pop %v435
      %v437 = vmul.f32 %v431, 1.442695
      %v438 = vpow.pop %v437
      %v439 = vmul.f32 %v432, 1.442695
      %v440 = vpow.pop %v439
      %v441 = vsel %vm416, %v434, 0.0
      %442 = vadd.xlane.f32.xlu0 %v441
      %v443 = vpop.xlane.xlu0 %442
      %v444 = vsel %vm416, %v436, 0.0
      %445 = vadd.xlane.f32.xlu0 %v444
      %v446 = vpop.xlane.xlu0 %445
      %v447 = vsel %vm416, %v438, 0.0
      %448 = vadd.xlane.f32.xlu0 %v447
      %v449 = vpop.xlane.xlu0 %448
      %v450 = vsel %vm416, %v440, 0.0
      %451 = vadd.xlane.f32.xlu0 %v450
      %v452 = vpop.xlane.xlu0 %451
      %v453 = vrcp.pop %v443
      %v454 = vrcp.pop %v446
      %v455 = vrcp.pop %v449
      %v456 = vrcp.pop %v452
      %v457 = vpack.c.bf16 %v434, %v434
      %v458 = vpack.c.bf16 %v436, %v436
      %v459 = vpack.c.bf16 %v438, %v438
      %v460 = vpack.c.bf16 %v440, %v440
      %v461 = vld [vmem:[%s210] sm:$0xf]
      %v462 = vld [vmem:[%s210 + $0x4] sm:$0xf]
      %v463 = vld [vmem:[%s210 + $0x8] sm:$0xf]
      %v464 = vld [vmem:[%s210 + $0xc] sm:$0xf]
      %v466 = vsel %vm416, %v457, 0
      %vm468 = vcmask 1043456
      %v470 = vsel %vm468, %v461, 0
      %472 = vmatprep.subr.bf16.mxu0 0
      %473 = vmatpush1.bf16.msra.mxu0 %v470
      %474 = vmatprep.subr.bf16.mxu0 0
      %475 = vmatpush1.bf16.msra.mxu0 0
      %476 = vmatprep.subr.bf16.mxu0 0
      %477 = vmatpush1.bf16.msra.mxu0 0
      %478 = vmatprep.subr.bf16.mxu0 0
      %479 = vmatpush1.bf16.msra.mxu0 0
      %480 = vmatprep.subr.bf16.mxu0 0
      %481 = vmatpush1.bf16.msra.mxu0 0
      %482 = vmatprep.subr.bf16.mxu0 0
      %483 = vmatpush1.bf16.msra.mxu0 0
      %484 = vmatprep.subr.bf16.mxu0 0
      %485 = vmatpush1.bf16.msra.mxu0 0
      %486 = vmatprep.subr.bf16.mxu0 0
      %487 = vmatpush1.bf16.msra.mxu0 0
      %488 = vmatprep.subr.bf16.mxu0 0
      %489 = vmatpush1.bf16.msra.mxu0 0
      %490 = vmatprep.subr.bf16.mxu0 0
      %491 = vmatpush1.bf16.msra.mxu0 0
      %492 = vmatprep.subr.bf16.mxu0 0
      %493 = vmatpush1.bf16.msra.mxu0 0
      %494 = vmatprep.subr.bf16.mxu0 0
      %495 = vmatpush1.bf16.msra.mxu0 0
      %496 = vmatprep.subr.bf16.mxu0 0
      %497 = vmatpush1.bf16.msra.mxu0 0
      %498 = vmatprep.subr.bf16.mxu0 0
      %499 = vmatpush1.bf16.msra.mxu0 0
      %500 = vmatprep.subr.bf16.mxu0 0
      %501 = vmatpush1.bf16.msra.mxu0 0
      %502 = vmatprep.subr.bf16.mxu0 0
      %503 = vmatpush1.bf16.msra.mxu0 0
      %504 = vmatprep.mubr.bf16.mxu0 0
      %505 = vmatmul.mubr.bf16.gmra.mrb[0].mxu0 %v466
      %v506 = vpop.f32.mrb[0].mxu0
      %v507 = vadd.f32 0.0, %v506
      %v508 = vpop.f32.mrb[0].mxu0
      %v509 = vpop.f32.mrb[0].mxu0
      %v510 = vpop.f32.mrb[0].mxu0
      %511 = vdwg.mxu0
      %v513 = vsel %vm416, %v458, 0
      %v516 = vsel %vm468, %v462, 0
      %518 = vmatprep.subr.bf16.mxu0 0
      %519 = vmatpush1.bf16.msra.mxu0 %v516
      %520 = vmatprep.subr.bf16.mxu0 0
      %521 = vmatpush1.bf16.msra.mxu0 0
      %522 = vmatprep.subr.bf16.mxu0 0
      %523 = vmatpush1.bf16.msra.mxu0 0
      %524 = vmatprep.subr.bf16.mxu0 0
      %525 = vmatpush1.bf16.msra.mxu0 0
      %526 = vmatprep.subr.bf16.mxu0 0
      %527 = vmatpush1.bf16.msra.mxu0 0
      %528 = vmatprep.subr.bf16.mxu0 0
      %529 = vmatpush1.bf16.msra.mxu0 0
      %530 = vmatprep.subr.bf16.mxu0 0
      %531 = vmatpush1.bf16.msra.mxu0 0
      %532 = vmatprep.subr.bf16.mxu0 0
      %533 = vmatpush1.bf16.msra.mxu0 0
      %534 = vmatprep.subr.bf16.mxu0 0
      %535 = vmatpush1.bf16.msra.mxu0 0
      %536 = vmatprep.subr.bf16.mxu0 0
      %537 = vmatpush1.bf16.msra.mxu0 0
      %538 = vmatprep.subr.bf16.mxu0 0
      %539 = vmatpush1.bf16.msra.mxu0 0
      %540 = vmatprep.subr.bf16.mxu0 0
      %541 = vmatpush1.bf16.msra.mxu0 0
      %542 = vmatprep.subr.bf16.mxu0 0
      %543 = vmatpush1.bf16.msra.mxu0 0
      %544 = vmatprep.subr.bf16.mxu0 0
      %545 = vmatpush1.bf16.msra.mxu0 0
      %546 = vmatprep.subr.bf16.mxu0 0
      %547 = vmatpush1.bf16.msra.mxu0 0
      %548 = vmatprep.subr.bf16.mxu0 0
      %549 = vmatpush1.bf16.msra.mxu0 0
      %550 = vmatprep.mubr.bf16.mxu0 0
      %551 = vmatmul.mubr.bf16.gmra.mrb[0].mxu0 %v513
      %v552 = vpop.f32.mrb[0].mxu0
      %v553 = vadd.f32 0.0, %v552
      %v554 = vpop.f32.mrb[0].mxu0
      %v555 = vpop.f32.mrb[0].mxu0
      %v556 = vpop.f32.mrb[0].mxu0
      %557 = vdwg.mxu0
      %v559 = vsel %vm416, %v459, 0
      %v562 = vsel %vm468, %v463, 0
      %564 = vmatprep.subr.bf16.mxu0 0
      %565 = vmatpush1.bf16.msra.mxu0 %v562
      %566 = vmatprep.subr.bf16.mxu0 0
      %567 = vmatpush1.bf16.msra.mxu0 0
      %568 = vmatprep.subr.bf16.mxu0 0
      %569 = vmatpush1.bf16.msra.mxu0 0
      %570 = vmatprep.subr.bf16.mxu0 0
      %571 = vmatpush1.bf16.msra.mxu0 0
      %572 = vmatprep.subr.bf16.mxu0 0
      %573 = vmatpush1.bf16.msra.mxu0 0
      %574 = vmatprep.subr.bf16.mxu0 0
      %575 = vmatpush1.bf16.msra.mxu0 0
      %576 = vmatprep.subr.bf16.mxu0 0
      %577 = vmatpush1.bf16.msra.mxu0 0
      %578 = vmatprep.subr.bf16.mxu0 0
      %579 = vmatpush1.bf16.msra.mxu0 0
      %580 = vmatprep.subr.bf16.mxu0 0
      %581 = vmatpush1.bf16.msra.mxu0 0
      %582 = vmatprep.subr.bf16.mxu0 0
      %583 = vmatpush1.bf16.msra.mxu0 0
      %584 = vmatprep.subr.bf16.mxu0 0
      %585 = vmatpush1.bf16.msra.mxu0 0
      %586 = vmatprep.subr.bf16.mxu0 0
      %587 = vmatpush1.bf16.msra.mxu0 0
      %588 = vmatprep.subr.bf16.mxu0 0
      %589 = vmatpush1.bf16.msra.mxu0 0
      %590 = vmatprep.subr.bf16.mxu0 0
      %591 = vmatpush1.bf16.msra.mxu0 0
      %592 = vmatprep.subr.bf16.mxu0 0
      %593 = vmatpush1.bf16.msra.mxu0 0
      %594 = vmatprep.subr.bf16.mxu0 0
      %595 = vmatpush1.bf16.msra.mxu0 0
      %596 = vmatprep.mubr.bf16.mxu0 0
      %597 = vmatmul.mubr.bf16.gmra.mrb[0].mxu0 %v559
      %v598 = vpop.f32.mrb[0].mxu0
      %v599 = vadd.f32 0.0, %v598
      %v600 = vpop.f32.mrb[0].mxu0
      %v601 = vpop.f32.mrb[0].mxu0
      %v602 = vpop.f32.mrb[0].mxu0
      %603 = vdwg.mxu0
      %v605 = vsel %vm416, %v460, 0
      %v608 = vsel %vm468, %v464, 0
      %610 = vmatprep.subr.bf16.mxu0 0
      %611 = vmatpush1.bf16.msra.mxu0 %v608
      %612 = vmatprep.subr.bf16.mxu0 0
      %613 = vmatpush1.bf16.msra.mxu0 0
      %614 = vmatprep.subr.bf16.mxu0 0
      %615 = vmatpush1.bf16.msra.mxu0 0
      %616 = vmatprep.subr.bf16.mxu0 0
      %617 = vmatpush1.bf16.msra.mxu0 0
      %618 = vmatprep.subr.bf16.mxu0 0
      %619 = vmatpush1.bf16.msra.mxu0 0
      %620 = vmatprep.subr.bf16.mxu0 0
      %621 = vmatpush1.bf16.msra.mxu0 0
      %622 = vmatprep.subr.bf16.mxu0 0
      %623 = vmatpush1.bf16.msra.mxu0 0
      %624 = vmatprep.subr.bf16.mxu0 0
      %625 = vmatpush1.bf16.msra.mxu0 0
      %626 = vmatprep.subr.bf16.mxu0 0
      %627 = vmatpush1.bf16.msra.mxu0 0
      %628 = vmatprep.subr.bf16.mxu0 0
      %629 = vmatpush1.bf16.msra.mxu0 0
      %630 = vmatprep.subr.bf16.mxu0 0
      %631 = vmatpush1.bf16.msra.mxu0 0
      %632 = vmatprep.subr.bf16.mxu0 0
      %633 = vmatpush1.bf16.msra.mxu0 0
      %634 = vmatprep.subr.bf16.mxu0 0
      %635 = vmatpush1.bf16.msra.mxu0 0
      %636 = vmatprep.subr.bf16.mxu0 0
      %637 = vmatpush1.bf16.msra.mxu0 0
      %638 = vmatprep.subr.bf16.mxu0 0
      %639 = vmatpush1.bf16.msra.mxu0 0
      %640 = vmatprep.subr.bf16.mxu0 0
      %641 = vmatpush1.bf16.msra.mxu0 0
      %642 = vmatprep.mubr.bf16.mxu0 0
      %643 = vmatmul.mubr.bf16.gmra.mrb[0].mxu0 %v605
      %v644 = vpop.f32.mrb[0].mxu0
      %v645 = vadd.f32 0.0, %v644
      %v646 = vpop.f32.mrb[0].mxu0
      %v647 = vpop.f32.mrb[0].mxu0
      %v648 = vpop.f32.mrb[0].mxu0
      %649 = vdwg.mxu0
      %v650 = vmul.f32 %v507, %v453
      %v651 = vmul.f32 %v553, %v454
      %v652 = vmul.f32 %v599, %v455
      %v653 = vmul.f32 %v645, %v456
      %v654 = vpack.c.bf16 %v650, %v650
      %v655 = vpack.c.bf16 %v651, %v651
      %v656 = vpack.c.bf16 %v652, %v652
      %v657 = vpack.c.bf16 %v653, %v653
      %vm658 = vcmask 519168
      %659 = vst.msk [vmem:[%s216] sm:$0xf] %vm658, %v654
      %660 = vst.msk [vmem:[%s216 + $0x4] sm:$0xf] %vm658, %v655
      %661 = vst.msk [vmem:[%s216 + $0x8] sm:$0xf] %vm658, %v656
      %662 = vst.msk [vmem:[%s216 + $0xc] sm:$0xf] %vm658, %v657
      %s663 = smul.u32 4, %s14
      %p664 = scmp.lt.s32.totalorder %s663, 23
      %s665 = scalar_select %p664, %s663, 23
      %s666 = smul.addr %s665, 4
      %s667 = scalar_lea.vmem %s3, %s666
      // Predicated region
      $region33: #{bert_forward.13} parent=31 // pred_check
        %p668 = pneg %p110
      $region34: #{bert_forward.13} parent=31 // pred_check_branch
        %670 = sbr.rel (%p668) target = $region36
      $region35: #{bert_forward.13} parent=31 // pred_region
        %s671 = smul.u32 4, %s14
      $region36: #{bert_forward.13} parent=31 // pred_fallthru
        _
    $region32: #{bert_forward.13} parent=5 // pred_fallthru
      _
    %p672 = scmp.le.s32.totalorder 2, %s9
    // Predicated region
    $region37: #{bert_forward.13} parent=5 // pred_check
      %p673 = pneg %p672
    $region38: #{bert_forward.13} parent=5 // pred_check_branch
      %675 = sbr.rel (%p673) target = $region40
    $region39: #{bert_forward.13} parent=5 // pred_region
      %s676 = ssub.s32 %s9, 2
      // Predicated region
      $region41: #{bert_forward.13} parent=39 // pred_check
        %p677 = pneg %p116
      $region42: #{bert_forward.13} parent=39 // pred_check_branch
        %679 = sbr.rel (%p677) target = $region44
      $region43: #{bert_forward.13} parent=39 // pred_region
        %s680 = smul.u32 4, %s15
        %p681 = scmp.lt.s32.totalorder %s680, 23
        %s682 = scalar_select %p681, %s680, 23
        %s683 = smul.addr %s682, 4
        %s684 = scalar_lea.vmem %s3, %s683
      $region44: #{bert_forward.13} parent=39 // pred_fallthru
        _
    $region40: #{bert_forward.13} parent=5 // pred_fallthru
      _
  $region6: #{bert_forward.13} parent=0 // loop_footer
    %s13 = sadd.s32 1, %s9
  $region7: #{bert_forward.13} parent=0 // loop_footer_branch
    %8 = sbr.rel target = $region3
  $region8: #{bert_forward.13} parent=0 // loop_exit
    _

// kernel: bert_forward.16
$region0: #{bert_forward.16}
  #allocation0 [shape = 'u32[]', space=smem, size = 0x4, offset = 0x4, fixed_abs, tag = 'smem constant byte address 0x4 - core index']
  #allocation1 [shape = 'u32[144,128]{1,0:T(1,128)}', space=vmem, size = 0x12000, scoped, tag = 'internal scratch']
  #allocation2 [shape = 'f32[16,768]{1,0:T(8,128)}', space=vmem, size = 0xc000, scoped, tag = 'scratch operand']
  %s0 = inlined_call_operand.vmem [shape: bf16[16,3072], index: 0, kind: input, shape index: {}]
  %s1 = inlined_call_operand.vmem [shape: bf16[3072,768], index: 1, kind: input, shape index: {}]
  %s2 = inlined_call_operand.vmem [shape: f32[1,768], index: 2, kind: input, shape index: {}]
  %s3 = inlined_call_operand.vmem [shape: bf16[16,768], index: 3, kind: input, shape index: {}]
  %s4 = inlined_call_operand.vmem [shape: f32[1,768], index: 4, kind: input, shape index: {}]
  %s5 = inlined_call_operand.vmem [shape: f32[1,768], index: 5, kind: input, shape index: {}]
  %s6 = inlined_call_operand.vmem [shape: bf16[16,768], index: 6, kind: output, shape index: {}]
  %s7 = sld [smem:[#allocation0]]
  $region103: #{bert_forward.16} parent=0
    _
  %s9 = ssub.s32 1, %s7
  %s10 = scalar_select 0, %s9, %s7
  $region1: #{bert_forward.16} parent=0
    #allocation3 [shape = 'u8[16384]{0}', space=vmem, size = 0x4000, scoped, tag = 'input window, operand 0']
    loop: start=0, step=1, limit=14
    $region2: #{bert_forward.16} parent=1 // loop_pre_header
      _
    $region3: #{bert_forward.16} parent=1 // loop_header
      %s12 = sphi 0, %s16
      %p13 = scmp.ge.s32.totalorder %s12, 14
      %s19 = sphi 0, %s31
      %s20 = sphi 0, %s27
      %s21 = sphi 0, %s19
      %s22 = sphi 0, %s20
      %s23 = sphi 0, %s21
      %s24 = sphi 0, %s22
      %s36 = sphi 0, %s38
      %s39 = sphi 0, %s36
      %s40 = sphi 0, %s39
      %s56 = sphi 0, %s40
      %s62 = sphi 0, %s64
      %s65 = sphi 0, %s62
      %s66 = sphi 0, %s65
      %s82 = sphi 0, %s66
      %s86 = sphi 0, %s86
      %s88 = sphi 0, %s86
      %s89 = sphi 0, %s88
      %s103 = sphi 0, %s89
      %s109 = sphi 0, %s111
      %s112 = sphi 0, %s109
      %s113 = sphi 0, %s112
      %s129 = sphi 0, %s113
      %s133 = sphi 0, %s133
      %s135 = sphi 0, %s133
      %s136 = sphi 0, %s135
      %s150 = sphi 0, %s136
      %s154 = sphi 0, %s154
      %s156 = sphi 0, %s154
      %s157 = sphi 0, %s156
      %s171 = sphi 0, %s157
      %s177 = sphi 0, %s179
      %s180 = sphi 0, %s177
      %s181 = sphi 0, %s180
      %s197 = sphi 0, %s181
    $region4: #{bert_forward.16} parent=1 // loop_header_branch
      %15 = sbr.rel (%p13) target = $region8
    $region5: #{bert_forward.16} parent=1 // loop_body
      %s17 = ssub.s32 %s12, 1
      %s18 = ssub.s32 %s12, 2
      %s25 = sadd.s32 1, %s20
      %p26 = scmp.ge.s32.totalorder %s25, 12
      %s27 = scalar_select %p26, 0, %s25
      %s28 = sadd.s32 1, %s19
      %s29 = scalar_select %p26, %s28, %s19
      %p30 = scmp.ge.s32.totalorder %s29, 1
      %s31 = scalar_select %p30, 0, %s29
      %s32 = ssub.s32 %s19, %s31
      %s33 = ssub.s32 %s20, %s27
      %s34 = sor.u32 %s32, %s33
      %p35 = scmp.eq.s32.totalorder %s34, 0
      %s37 = sadd.s32 %s36, 1
      %s38 = scalar_select %p35, %s36, %s37
      %p41 = pneg %p35
      %p42 = scmp.eq.s32.totalorder %s12, 11
      %p43 = por %p41, %p42
      %p44 = scmp.ne.s32.totalorder %s36, %s39
      %p45 = scmp.eq.s32.totalorder %s12, 0
      %p46 = por %p44, %p45
      %p47 = scmp.ne.s32.totalorder %s36, %s39
      %p48 = scmp.eq.s32.totalorder %s17, 11
      %p49 = por %p47, %p48
      %p50 = scmp.ne.s32.totalorder %s39, %s40
      %p51 = scmp.eq.s32.totalorder %s17, 0
      %p52 = por %p50, %p51
      %p53 = scmp.ne.s32.totalorder %s39, %s40
      %p54 = scmp.eq.s32.totalorder %s18, 11
      %p55 = por %p53, %p54
      %p57 = scmp.ne.s32.totalorder %s40, %s56
      %p58 = scmp.eq.s32.totalorder %s18, 0
      %p59 = por %p57, %p58
      %s60 = ssub.s32 %s20, %s27
      %p61 = scmp.eq.s32.totalorder %s60, 0
      %s63 = sadd.s32 %s62, 1
      %s64 = scalar_select %p61, %s62, %s63
      %p67 = pneg %p61
      %p68 = scmp.eq.s32.totalorder %s12, 11
      %p69 = por %p67, %p68
      %p70 = scmp.ne.s32.totalorder %s62, %s65
      %p71 = scmp.eq.s32.totalorder %s12, 0
      %p72 = por %p70, %p71
      %p73 = scmp.ne.s32.totalorder %s62, %s65
      %p74 = scmp.eq.s32.totalorder %s17, 11
      %p75 = por %p73, %p74
      %p76 = scmp.ne.s32.totalorder %s65, %s66
      %p77 = scmp.eq.s32.totalorder %s17, 0
      %p78 = por %p76, %p77
      %p79 = scmp.ne.s32.totalorder %s65, %s66
      %p80 = scmp.eq.s32.totalorder %s18, 11
      %p81 = por %p79, %p80
      %p83 = scmp.ne.s32.totalorder %s66, %s82
      %p84 = scmp.eq.s32.totalorder %s18, 0
      %p85 = por %p83, %p84
      %s87 = sadd.s32 %s86, 1
      %p90 = scmp.eq.s32.totalorder %s12, 11
      %p91 = scmp.ne.s32.totalorder %s86, %s88
      %p92 = scmp.eq.s32.totalorder %s12, 0
      %p93 = por %p91, %p92
      %p94 = scmp.ne.s32.totalorder %s86, %s88
      %p95 = scmp.eq.s32.totalorder %s17, 11
      %p96 = por %p94, %p95
      %p97 = scmp.ne.s32.totalorder %s88, %s89
      %p98 = scmp.eq.s32.totalorder %s17, 0
      %p99 = por %p97, %p98
      %p100 = scmp.ne.s32.totalorder %s88, %s89
      %p101 = scmp.eq.s32.totalorder %s18, 11
      %p102 = por %p100, %p101
      %p104 = scmp.ne.s32.totalorder %s89, %s103
      %p105 = scmp.eq.s32.totalorder %s18, 0
      %p106 = por %p104, %p105
      %s107 = ssub.s32 %s19, %s31
      %p108 = scmp.eq.s32.totalorder %s107, 0
      %s110 = sadd.s32 %s109, 1
      %s111 = scalar_select %p108, %s109, %s110
      %p114 = pneg %p108
      %p115 = scmp.eq.s32.totalorder %s12, 11
      %p116 = por %p114, %p115
      %p117 = scmp.ne.s32.totalorder %s109, %s112
      %p118 = scmp.eq.s32.totalorder %s12, 0
      %p119 = por %p117, %p118
      %p120 = scmp.ne.s32.totalorder %s109, %s112
      %p121 = scmp.eq.s32.totalorder %s17, 11
      %p122 = por %p120, %p121
      %p123 = scmp.ne.s32.totalorder %s112, %s113
      %p124 = scmp.eq.s32.totalorder %s17, 0
      %p125 = por %p123, %p124
      %p126 = scmp.ne.s32.totalorder %s112, %s113
      %p127 = scmp.eq.s32.totalorder %s18, 11
      %p128 = por %p126, %p127
      %p130 = scmp.ne.s32.totalorder %s113, %s129
      %p131 = scmp.eq.s32.totalorder %s18, 0
      %p132 = por %p130, %p131
      %s134 = sadd.s32 %s133, 1
      %p137 = scmp.eq.s32.totalorder %s12, 11
      %p138 = scmp.ne.s32.totalorder %s133, %s135
      %p139 = scmp.eq.s32.totalorder %s12, 0
      %p140 = por %p138, %p139
      %p141 = scmp.ne.s32.totalorder %s133, %s135
      %p142 = scmp.eq.s32.totalorder %s17, 11
      %p143 = por %p141, %p142
      %p144 = scmp.ne.s32.totalorder %s135, %s136
      %p145 = scmp.eq.s32.totalorder %s17, 0
      %p146 = por %p144, %p145
      %p147 = scmp.ne.s32.totalorder %s135, %s136
      %p148 = scmp.eq.s32.totalorder %s18, 11
      %p149 = por %p147, %p148
      %p151 = scmp.ne.s32.totalorder %s136, %s150
      %p152 = scmp.eq.s32.totalorder %s18, 0
      %p153 = por %p151, %p152
      %s155 = sadd.s32 %s154, 1
      %p158 = scmp.eq.s32.totalorder %s12, 11
      %p159 = scmp.ne.s32.totalorder %s154, %s156
      %p160 = scmp.eq.s32.totalorder %s12, 0
      %p161 = por %p159, %p160
      %p162 = scmp.ne.s32.totalorder %s154, %s156
      %p163 = scmp.eq.s32.totalorder %s17, 11
      %p164 = por %p162, %p163
      %p165 = scmp.ne.s32.totalorder %s156, %s157
      %p166 = scmp.eq.s32.totalorder %s17, 0
      %p167 = por %p165, %p166
      %p168 = scmp.ne.s32.totalorder %s156, %s157
      %p169 = scmp.eq.s32.totalorder %s18, 11
      %p170 = por %p168, %p169
      %p172 = scmp.ne.s32.totalorder %s157, %s171
      %p173 = scmp.eq.s32.totalorder %s18, 0
      %p174 = por %p172, %p173
      %s175 = ssub.s32 %s19, %s31
      %p176 = scmp.eq.s32.totalorder %s175, 0
      %s178 = sadd.s32 %s177, 1
      %s179 = scalar_select %p176, %s177, %s178
      %p182 = pneg %p176
      %p183 = scmp.eq.s32.totalorder %s12, 11
      %p184 = por %p182, %p183
      %p185 = scmp.ne.s32.totalorder %s177, %s180
      %p186 = scmp.eq.s32.totalorder %s12, 0
      %p187 = por %p185, %p186
      %p188 = scmp.ne.s32.totalorder %s177, %s180
      %p189 = scmp.eq.s32.totalorder %s17, 11
      %p190 = por %p188, %p189
      %p191 = scmp.ne.s32.totalorder %s180, %s181
      %p192 = scmp.eq.s32.totalorder %s17, 0
      %p193 = por %p191, %p192
      %p194 = scmp.ne.s32.totalorder %s180, %s181
      %p195 = scmp.eq.s32.totalorder %s18, 11
      %p196 = por %p194, %p195
      %p198 = scmp.ne.s32.totalorder %s181, %s197
      %p199 = scmp.eq.s32.totalorder %s18, 0
      %p200 = por %p198, %p199
      %p201 = scmp.le.s32.totalorder 1, %s12
      %p202 = scmp.lt.s32.totalorder %s12, 13
      %p203 = pnand %p201, %p202
      %p204 = pneg %p203
      // Predicated region
      $region9: #{bert_forward.16} parent=5 // pred_check
        _
      $region10: #{bert_forward.16} parent=5 // pred_check_branch
        %206 = sbr.rel (%p203) target = $region12
      $region11: #{bert_forward.16} parent=5 // pred_region
        %s207 = ssub.s32 %s12, 1
        // Predicated region
        $region13: #{bert_forward.16} parent=11 // pred_check
          %p208 = pneg %p99
        $region14: #{bert_forward.16} parent=11 // pred_check_branch
          %210 = sbr.rel (%p208) target = $region16
        $region15: #{bert_forward.16} parent=11 // pred_region
          _
        $region16: #{bert_forward.16} parent=11 // pred_fallthru
          _
        // Predicated region
        $region17: #{bert_forward.16} parent=11 // pred_check
          %p211 = pneg %p125
        $region18: #{bert_forward.16} parent=11 // pred_check_branch
          %213 = sbr.rel (%p211) target = $region20
        $region19: #{bert_forward.16} parent=11 // pred_region
          %s214 = smul.u32 2, %s21
          %p215 = scmp.lt.s32.totalorder %s214, 1
          %s216 = scalar_select %p215, %s214, 1
          %s217 = smul.addr %s216, 6
          %s218 = smul.addr %s217, 4
          %s219 = scalar_lea.vmem %s3, %s218
          %s220 = smul.u32 2, %s21
        $region20: #{bert_forward.16} parent=11 // pred_fallthru
          _
        // Predicated region
        $region21: #{bert_forward.16} parent=11 // pred_check
          %p221 = pneg %p146
        $region22: #{bert_forward.16} parent=11 // pred_check_branch
          %223 = sbr.rel (%p221) target = $region24
        $region23: #{bert_forward.16} parent=11 // pred_region
          _
        $region24: #{bert_forward.16} parent=11 // pred_fallthru
          _
        // Predicated region
        $region25: #{bert_forward.16} parent=11 // pred_check
          %p224 = pneg %p167
        $region26: #{bert_forward.16} parent=11 // pred_check_branch
          %226 = sbr.rel (%p224) target = $region28
        $region27: #{bert_forward.16} parent=11 // pred_region
          _
        $region28: #{bert_forward.16} parent=11 // pred_fallthru
          _
      $region12: #{bert_forward.16} parent=5 // pred_fallthru
        _
      %p227 = scmp.lt.s32.totalorder %s12, 12
      // Predicated region
      $region29: #{bert_forward.16} parent=5 // pred_check
        %p228 = pneg %p227
      $region30: #{bert_forward.16} parent=5 // pred_check_branch
        %230 = sbr.rel (%p228) target = $region32
      $region31: #{bert_forward.16} parent=5 // pred_region
        // Predicated region
        $region33: #{bert_forward.16} parent=31 // pred_check
          %p231 = pneg %p46
        $region34: #{bert_forward.16} parent=31 // pred_check_branch
          %233 = sbr.rel (%p231) target = $region36
        $region35: #{bert_forward.16} parent=31 // pred_region
          %s234 = sand.u32 %s36, 1
          %s235 = sand.u32 %s36, 1
          %s236 = smul.addr %s235, 16
          %s237 = scalar_lea.vmem [#allocation3], %s236
          %s238 = smul.u32 2, %s19
          %s239 = smul.u32 2, %s20
          %s240 = smul.addr %s238, 24
          %s241 = sadd.s32 %s239, %s240
          %s242 = smul.addr %s241, 4
          %s243 = scalar_lea.vmem %s0, %s242
          // Predicated region
          $region37: #{bert_forward.16} parent=35 // pred_check
            _
          $region38: #{bert_forward.16} parent=35 // pred_check_branch
            %245 = sbr.rel (0) target = $region40
          $region39: #{bert_forward.16} parent=35 // pred_region
            // Predicated region
            $region41: #{bert_forward.16} parent=39 // pred_check
              _
            $region42: #{bert_forward.16} parent=39 // pred_check_branch
              %247 = sbr.rel (0) target = $region44
            $region43: #{bert_forward.16} parent=39 // pred_region
              // Predicated region
              $region56: #{bert_forward.16} parent=43 // pred_check
                _
              $region57: #{bert_forward.16} parent=43 // pred_check_branch
                %264 = sbr.rel (0) target = $region59
              $region58: #{bert_forward.16} parent=43 // pred_region
                loop: start=0, step=1, limit=1
                $region60: #{bert_forward.16} parent=58 // loop_pre_header
                  _
                $region61: #{bert_forward.16} parent=58 // loop_header
                  %s266 = sphi 0, %s270
                  %p267 = scmp.ge.s32.totalorder %s266, 1
                  %s271 = sphi %s243, %s243
                  %s272 = sphi %s237, %s237
                $region62: #{bert_forward.16} parent=58 // loop_header_branch
                  %269 = sbr.rel (%p267) target = $region66
                $region63: #{bert_forward.16} parent=58 // loop_body
                  %v273 = vld [vmem:[%s271] sm:$0xff]
                  %274 = vst [vmem:[%s272] sm:$0xff] %v273
                  %v275 = vld [vmem:[%s271 + $0x60] sm:$0xff]
                  %276 = vst [vmem:[%s272 + $0x8] sm:$0xff] %v275
                $region64: #{bert_forward.16} parent=58 // loop_footer
                  %s270 = sadd.s32 1, %s266
                $region65: #{bert_forward.16} parent=58 // loop_footer_branch
                  %265 = sbr.rel target = $region61
                $region66: #{bert_forward.16} parent=58 // loop_exit
                  _
              $region59: #{bert_forward.16} parent=43 // pred_fallthru
                _
              // Predicated region
              $region67: #{bert_forward.16} parent=43 // pred_check
                _
              $region68: #{bert_forward.16} parent=43 // pred_check_branch
                %278 = sbr.rel target = $region70
              $region69: #{bert_forward.16} parent=43 // pred_region
                _
              $region70: #{bert_forward.16} parent=43 // pred_fallthru
                _
            $region44: #{bert_forward.16} parent=39 // pred_fallthru
              _
            // Predicated region
            $region45: #{bert_forward.16} parent=39 // pred_check
              _
            $region46: #{bert_forward.16} parent=39 // pred_check_branch
              %249 = sbr.rel target = $region48
            $region47: #{bert_forward.16} parent=39 // pred_region
              loop: start=0, step=1, limit=1
              $region49: #{bert_forward.16} parent=47 // loop_pre_header
                _
              $region50: #{bert_forward.16} parent=47 // loop_header
                %s252 = sphi 0, %s256
                %p253 = scmp.ge.s32.totalorder %s252, 1
                %s257 = sphi %s243, %s243
                %s258 = sphi %s237, %s237
              $region51: #{bert_forward.16} parent=47 // loop_header_branch
                %255 = sbr.rel (%p253) target = $region55
              $region52: #{bert_forward.16} parent=47 // loop_body
                %v259 = vld [vmem:[%s257] sm:$0xff]
                %260 = vst [vmem:[%s258] sm:$0xff] %v259
                %v261 = vld [vmem:[%s257 + $0x60] sm:$0xff]
                %262 = vst [vmem:[%s258 + $0x8] sm:$0xff] %v261
              $region53: #{bert_forward.16} parent=47 // loop_footer
                %s256 = sadd.s32 1, %s252
              $region54: #{bert_forward.16} parent=47 // loop_footer_branch
                %251 = sbr.rel target = $region50
              $region55: #{bert_forward.16} parent=47 // loop_exit
                _
            $region48: #{bert_forward.16} parent=39 // pred_fallthru
              _
          $region40: #{bert_forward.16} parent=35 // pred_fallthru
            _
          %279 = vnop
        $region36: #{bert_forward.16} parent=31 // pred_fallthru
          _
        // Predicated region
        $region71: #{bert_forward.16} parent=31 // pred_check
          %p280 = pneg %p72
        $region72: #{bert_forward.16} parent=31 // pred_check_branch
          %282 = sbr.rel (%p280) target = $region74
        $region73: #{bert_forward.16} parent=31 // pred_region
          %s283 = smul.u32 32, %s20
          %p284 = scmp.lt.s32.totalorder %s283, 383
          %s285 = scalar_select %p284, %s283, 383
          %s286 = smul.addr %s285, 6
          %s287 = smul.addr %s286, 4
          %s288 = scalar_lea.vmem %s1, %s287
          %s289 = smul.u32 32, %s20
        $region74: #{bert_forward.16} parent=31 // pred_fallthru
          _
      $region32: #{bert_forward.16} parent=5 // pred_fallthru
        _
      %p290 = scmp.le.s32.totalorder 1, %s12
      %p291 = scmp.lt.s32.totalorder %s12, 13
      %p292 = pnand %p290, %p291
      %p293 = pneg %p292
      // Predicated region
      $region75: #{bert_forward.16} parent=5 // pred_check
        _
      $region76: #{bert_forward.16} parent=5 // pred_check_branch
        %295 = sbr.rel (%p292) target = $region78
      $region77: #{bert_forward.16} parent=5 // pred_region
        %s296 = ssub.s32 %s12, 1
        %s297 = sand.u32 %s39, 1
        %s298 = sand.u32 %s39, 1
        %s299 = smul.addr %s298, 16
        %s300 = scalar_lea.vmem [#allocation3], %s299
        // Predicated region
        $region79: #{bert_forward.16} parent=77 // pred_check
          %p301 = pneg %p52
        $region80: #{bert_forward.16} parent=77 // pred_check_branch
          %303 = sbr.rel (%p301) target = $region82
        $region81: #{bert_forward.16} parent=77 // pred_region
          _
        $region82: #{bert_forward.16} parent=77 // pred_fallthru
          _
        %s304 = sand.u32 %s39, 1
        %s305 = sand.u32 %s39, 1
        %s306 = smul.addr %s305, 16
        %s307 = scalar_lea.vmem [#allocation3], %s306
        %p308 = pneg %p52
        %p309 = pneg %p49
        %s310 = smul.u32 32, %s22
        %p311 = scmp.lt.s32.totalorder %s310, 383
        %s312 = scalar_select %p311, %s310, 383
        %s313 = smul.addr %s312, 6
        %s314 = smul.addr %s313, 4
        %s315 = scalar_lea.vmem %s1, %s314
        %p316 = pneg %p78
        %p317 = pneg %p75
        %p318 = pneg %p99
        %p319 = pneg %p96
        %s320 = smul.u32 2, %s21
        %p321 = scmp.lt.s32.totalorder %s320, 1
        %s322 = scalar_select %p321, %s320, 1
        %s323 = smul.addr %s322, 6
        %s324 = smul.addr %s323, 4
        %s325 = scalar_lea.vmem %s3, %s324
        %p326 = pneg %p125
        %p327 = pneg %p122
        %p328 = pneg %p146
        %p329 = pneg %p143
        %p330 = pneg %p167
        %p331 = pneg %p164
        %p332 = pneg %p193
        %p333 = pneg %p190
        %s334 = smul.u32 2, %s21
        %p335 = scmp.lt.s32.totalorder %s334, 1
        %s336 = scalar_select %p335, %s334, 1
        %s337 = smul.addr %s336, 6
        %s338 = smul.addr %s337, 4
        %s339 = scalar_lea.vmem %s6, %s338
        %s340 = smul.u32 2, %s21
        %s341 = smul.u32 2, %s22
        %s342 = smul.u32 32, %s22
        %p343 = scmp.lt.s32.totalorder %s342, 383
        %s344 = scalar_select %p343, %s342, 383
        %s345 = smul.addr %s344, 6
        %s346 = smul.addr %s345, 4
        %s347 = scalar_lea.vmem %s1, %s346
        %s348 = smul.u32 32, %s22
        %s349 = smul.u32 2, %s21
        %p350 = scmp.lt.s32.totalorder %s349, 1
        %s351 = scalar_select %p350, %s349, 1
        %s352 = smul.addr %s351, 6
        %s353 = smul.addr %s352, 4
        %s354 = scalar_lea.vmem %s3, %s353
        %s355 = smul.u32 2, %s21
        %s356 = smul.u32 2, %s21
        %p357 = scmp.lt.s32.totalorder %s356, 1
        %s358 = scalar_select %p357, %s356, 1
        %s359 = smul.addr %s358, 6
        %s360 = smul.addr %s359, 4
        %s361 = scalar_lea.vmem %s6, %s360
        %s362 = smul.u32 2, %s21
        %p363 = scmp.eq.s32.totalorder %s22, 0
        // Predicated region
        $region83: #{bert_forward.16} parent=77 // pred_check
          %p364 = pneg %p363
        $region84: #{bert_forward.16} parent=77 // pred_check_branch
          %366 = sbr.rel (%p364) target = $region86
        $region85: #{bert_forward.16} parent=77 // pred_region
          %367 = vst [vmem:[#allocation2] sm:$0xff] 0.0
          %368 = vst [vmem:[#allocation2 + $0x8] sm:$0xff] 0.0
          %369 = vst [vmem:[#allocation2 + $0x10] sm:$0xff] 0.0
          %370 = vst [vmem:[#allocation2 + $0x18] sm:$0xff] 0.0
          %371 = vst [vmem:[#allocation2 + $0x20] sm:$0xff] 0.0
          %372 = vst [vmem:[#allocation2 + $0x28] sm:$0xff] 0.0
          %373 = vst [vmem:[#allocation2 + $0x30] sm:$0xff] 0.0
          %374 = vst [vmem:[#allocation2 + $0x38] sm:$0xff] 0.0
          %375 = vst [vmem:[#allocation2 + $0x40] sm:$0xff] 0.0
          %376 = vst [vmem:[#allocation2 + $0x48] sm:$0xff] 0.0
          %377 = vst [vmem:[#allocation2 + $0x50] sm:$0xff] 0.0
          %378 = vst [vmem:[#allocation2 + $0x58] sm:$0xff] 0.0
        $region86: #{bert_forward.16} parent=77 // pred_fallthru
          _
        %v379 = vld [vmem:[#allocation2] sm:$0xff]
        %v380 = vld [vmem:[#allocation2 + $0x8] sm:$0xff]
        %v381 = vld [vmem:[#allocation2 + $0x10] sm:$0xff]
        %v382 = vld [vmem:[#allocation2 + $0x18] sm:$0xff]
        %v383 = vld [vmem:[#allocation2 + $0x20] sm:$0xff]
        %v384 = vld [vmem:[#allocation2 + $0x28] sm:$0xff]
        %v385 = vld [vmem:[#allocation2 + $0x30] sm:$0xff]
        %v386 = vld [vmem:[#allocation2 + $0x38] sm:$0xff]
        %v387 = vld [vmem:[#allocation2 + $0x40] sm:$0xff]
        %v388 = vld [vmem:[#allocation2 + $0x48] sm:$0xff]
        %v389 = vld [vmem:[#allocation2 + $0x50] sm:$0xff]
        %v390 = vld [vmem:[#allocation2 + $0x58] sm:$0xff]
        %v391 = vld [vmem:[%s300] sm:$0xff]
        %v392 = vld [vmem:[%s300 + $0x8] sm:$0xff]
        %v393 = vld [vmem:[%s347] sm:$0xff]
        %v394 = vld [vmem:[%s347 + $0x8] sm:$0xff]
        %v395 = vld [vmem:[%s347 + $0x10] sm:$0xff]
        %v396 = vld [vmem:[%s347 + $0x18] sm:$0xff]
        %v397 = vld [vmem:[%s347 + $0x20] sm:$0xff]
        %v398 = vld [vmem:[%s347 + $0x28] sm:$0xff]
        %v399 = vld [vmem:[%s347 + $0x30] sm:$0xff]
        %v400 = vld [vmem:[%s347 + $0x38] sm:$0xff]
        %v401 = vld [vmem:[%s347 + $0x40] sm:$0xff]
        %v402 = vld [vmem:[%s347 + $0x48] sm:$0xff]
        %v403 = vld [vmem:[%s347 + $0x50] sm:$0xff]
        %v404 = vld [vmem:[%s347 + $0x58] sm:$0xff]
        %v405 = vld [vmem:[%s347 + $0x60] sm:$0xff]
        %v406 = vld [vmem:[%s347 + $0x68] sm:$0xff]
        %v407 = vld [vmem:[%s347 + $0x70] sm:$0xff]
        %v408 = vld [vmem:[%s347 + $0x78] sm:$0xff]
        %v409 = vld [vmem:[%s347 + $0x80] sm:$0xff]
        %v410 = vld [vmem:[%s347 + $0x88] sm:$0xff]
        %v411 = vld [vmem:[%s347 + $0x90] sm:$0xff]
        %v412 = vld [vmem:[%s347 + $0x98] sm:$0xff]
        %v413 = vld [vmem:[%s347 + $0xa0] sm:$0xff]
        %v414 = vld [vmem:[%s347 + $0xa8] sm:$0xff]
        %v415 = vld [vmem:[%s347 + $0xb0] sm:$0xff]
        %v416 = vld [vmem:[%s347 + $0xb8] sm:$0xff]
        %v417 = vld [vmem:[%s347 + $0xc0] sm:$0xff]
        %v418 = vld [vmem:[%s347 + $0xc8] sm:$0xff]
        %v419 = vld [vmem:[%s347 + $0xd0] sm:$0xff]
        %v420 = vld [vmem:[%s347 + $0xd8] sm:$0xff]
        %v421 = vld [vmem:[%s347 + $0xe0] sm:$0xff]
        %v422 = vld [vmem:[%s347 + $0xe8] sm:$0xff]
        %v423 = vld [vmem:[%s347 + $0xf0] sm:$0xff]
        %v424 = vld [vmem:[%s347 + $0xf8] sm:$0xff]
        %v425 = vld [vmem:[%s347 + $0x100] sm:$0xff]
        %v426 = vld [vmem:[%s347 + $0x108] sm:$0xff]
        %v427 = vld [vmem:[%s347 + $0x110] sm:$0xff]
        %v428 = vld [vmem:[%s347 + $0x118] sm:$0xff]
        %v429 = vld [vmem:[%s347 + $0x120] sm:$0xff]
        %v430 = vld [vmem:[%s347 + $0x128] sm:$0xff]
        %v431 = vld [vmem:[%s347 + $0x130] sm:$0xff]
        %v432 = vld [vmem:[%s347 + $0x138] sm:$0xff]
        %v433 = vld [vmem:[%s347 + $0x140] sm:$0xff]
        %v434 = vld [vmem:[%s347 + $0x148] sm:$0xff]
        %v435 = vld [vmem:[%s347 + $0x150] sm:$0xff]
        %v436 = vld [vmem:[%s347 + $0x158] sm:$0xff]
        %v437 = vld [vmem:[%s347 + $0x160] sm:$0xff]
        %v438 = vld [vmem:[%s347 + $0x168] sm:$0xff]
        %v439 = vld [vmem:[%s347 + $0x170] sm:$0xff]
        %v440 = vld [vmem:[%s347 + $0x178] sm:$0xff]
        %v441 = vld [vmem:[%s347 + $0x180] sm:$0xff]
        %v442 = vld [vmem:[%s347 + $0x188] sm:$0xff]
        %v443 = vld [vmem:[%s347 + $0x190] sm:$0xff]
        %v444 = vld [vmem:[%s347 + $0x198] sm:$0xff]
        %v445 = vld [vmem:[%s347 + $0x1a0] sm:$0xff]
        %v446 = vld [vmem:[%s347 + $0x1a8] sm:$0xff]
        %v447 = vld [vmem:[%s347 + $0x1b0] sm:$0xff]
        %v448 = vld [vmem:[%s347 + $0x1b8] sm:$0xff]
        %v449 = vld [vmem:[%s347 + $0x1c0] sm:$0xff]
        %v450 = vld [vmem:[%s347 + $0x1c8] sm:$0xff]
        %v451 = vld [vmem:[%s347 + $0x1d0] sm:$0xff]
        %v452 = vld [vmem:[%s347 + $0x1d8] sm:$0xff]
        %v453 = vld [vmem:[%s347 + $0x1e0] sm:$0xff]
        %v454 = vld [vmem:[%s347 + $0x1e8] sm:$0xff]
        %v455 = vld [vmem:[%s347 + $0x1f0] sm:$0xff]
        %v456 = vld [vmem:[%s347 + $0x1f8] sm:$0xff]
        %v457 = vld [vmem:[%s347 + $0x200] sm:$0xff]
        %v458 = vld [vmem:[%s347 + $0x208] sm:$0xff]
        %v459 = vld [vmem:[%s347 + $0x210] sm:$0xff]
        %v460 = vld [vmem:[%s347 + $0x218] sm:$0xff]
        %v461 = vld [vmem:[%s347 + $0x220] sm:$0xff]
        %v462 = vld [vmem:[%s347 + $0x228] sm:$0xff]
        %v463 = vld [vmem:[%s347 + $0x230] sm:$0xff]
        %v464 = vld [vmem:[%s347 + $0x238] sm:$0xff]
        %v465 = vld [vmem:[%s347 + $0x240] sm:$0xff]
        %v466 = vld [vmem:[%s347 + $0x248] sm:$0xff]
        %v467 = vld [vmem:[%s347 + $0x250] sm:$0xff]
        %v468 = vld [vmem:[%s347 + $0x258] sm:$0xff]
        %v469 = vld [vmem:[%s347 + $0x260] sm:$0xff]
        %v470 = vld [vmem:[%s347 + $0x268] sm:$0xff]
        %v471 = vld [vmem:[%s347 + $0x270] sm:$0xff]
        %v472 = vld [vmem:[%s347 + $0x278] sm:$0xff]
        %v473 = vld [vmem:[%s347 + $0x280] sm:$0xff]
        %v474 = vld [vmem:[%s347 + $0x288] sm:$0xff]
        %v475 = vld [vmem:[%s347 + $0x290] sm:$0xff]
        %v476 = vld [vmem:[%s347 + $0x298] sm:$0xff]
        %v477 = vld [vmem:[%s347 + $0x2a0] sm:$0xff]
        %v478 = vld [vmem:[%s347 + $0x2a8] sm:$0xff]
        %v479 = vld [vmem:[%s347 + $0x2b0] sm:$0xff]
        %v480 = vld [vmem:[%s347 + $0x2b8] sm:$0xff]
        %v481 = vld [vmem:[%s347 + $0x2c0] sm:$0xff]
        %v482 = vld [vmem:[%s347 + $0x2c8] sm:$0xff]
        %v483 = vld [vmem:[%s347 + $0x2d0] sm:$0xff]
        %v484 = vld [vmem:[%s347 + $0x2d8] sm:$0xff]
        %v485 = vld [vmem:[%s347 + $0x2e0] sm:$0xff]
        %v486 = vld [vmem:[%s347 + $0x2e8] sm:$0xff]
        %v487 = vld [vmem:[%s347 + $0x2f0] sm:$0xff]
        %v488 = vld [vmem:[%s347 + $0x2f8] sm:$0xff]
        %v491 = vunpack.c.l.b16 %v391
        %v492 = vunpack.c.h.b16 %v391
        %v493 = vunpack.c.l.b16 %v392
        %v494 = vunpack.c.h.b16 %v392
        %v495 = vpack.c.b16 %v493, %v491
        %v496 = vpack.c.b16 %v494, %v492
        %v595 = vunpack.c.l.b16 %v393
        %v596 = vunpack.c.h.b16 %v393
        %v597 = vunpack.c.l.b16 %v394
        %v598 = vunpack.c.h.b16 %v394
        %v599 = vunpack.c.l.b16 %v395
        %v600 = vunpack.c.h.b16 %v395
        %v601 = vunpack.c.l.b16 %v396
        %v602 = vunpack.c.h.b16 %v396
        %v603 = vunpack.c.l.b16 %v397
        %v604 = vunpack.c.h.b16 %v397
        %v605 = vunpack.c.l.b16 %v398
        %v606 = vunpack.c.h.b16 %v398
        %v607 = vunpack.c.l.b16 %v399
        %v608 = vunpack.c.h.b16 %v399
        %v609 = vunpack.c.l.b16 %v400
        %v610 = vunpack.c.h.b16 %v400
        %v611 = vunpack.c.l.b16 %v401
        %v612 = vunpack.c.h.b16 %v401
        %v613 = vunpack.c.l.b16 %v402
        %v614 = vunpack.c.h.b16 %v402
        %v615 = vunpack.c.l.b16 %v403
        %v616 = vunpack.c.h.b16 %v403
        %v617 = vunpack.c.l.b16 %v404
        %v618 = vunpack.c.h.b16 %v404
        %v619 = vunpack.c.l.b16 %v405
        %v620 = vunpack.c.h.b16 %v405
        %v621 = vunpack.c.l.b16 %v406
        %v622 = vunpack.c.h.b16 %v406
        %v623 = vunpack.c.l.b16 %v407
        %v624 = vunpack.c.h.b16 %v407
        %v625 = vunpack.c.l.b16 %v408
        %v626 = vunpack.c.h.b16 %v408
        %v627 = vunpack.c.l.b16 %v409
        %v628 = vunpack.c.h.b16 %v409
        %v629 = vunpack.c.l.b16 %v410
        %v630 = vunpack.c.h.b16 %v410
        %v631 = vunpack.c.l.b16 %v411
        %v632 = vunpack.c.h.b16 %v411
        %v633 = vunpack.c.l.b16 %v412
        %v634 = vunpack.c.h.b16 %v412
        %v635 = vunpack.c.l.b16 %v413
        %v636 = vunpack.c.h.b16 %v413
        %v637 = vunpack.c.l.b16 %v414
        %v638 = vunpack.c.h.b16 %v414
        %v639 = vunpack.c.l.b16 %v415
        %v640 = vunpack.c.h.b16 %v415
        %v641 = vunpack.c.l.b16 %v416
        %v642 = vunpack.c.h.b16 %v416
        %v643 = vunpack.c.l.b16 %v417
        %v644 = vunpack.c.h.b16 %v417
        %v645 = vunpack.c.l.b16 %v418
        %v646 = vunpack.c.h.b16 %v418
        %v647 = vunpack.c.l.b16 %v419
        %v648 = vunpack.c.h.b16 %v419
        %v649 = vunpack.c.l.b16 %v420
        %v650 = vunpack.c.h.b16 %v420
        %v651 = vunpack.c.l.b16 %v421
        %v652 = vunpack.c.h.b16 %v421
        %v653 = vunpack.c.l.b16 %v422
        %v654 = vunpack.c.h.b16 %v422
        %v655 = vunpack.c.l.b16 %v423
        %v656 = vunpack.c.h.b16 %v423
        %v657 = vunpack.c.l.b16 %v424
        %v658 = vunpack.c.h.b16 %v424
        %v659 = vunpack.c.l.b16 %v425
        %v660 = vunpack.c.h.b16 %v425
        %v661 = vunpack.c.l.b16 %v426
        %v662 = vunpack.c.h.b16 %v426
        %v663 = vunpack.c.l.b16 %v427
        %v664 = vunpack.c.h.b16 %v427
        %v665 = vunpack.c.l.b16 %v428
        %v666 = vunpack.c.h.b16 %v428
        %v667 = vunpack.c.l.b16 %v429
        %v668 = vunpack.c.h.b16 %v429
        %v669 = vunpack.c.l.b16 %v430
        %v670 = vunpack.c.h.b16 %v430
        %v671 = vunpack.c.l.b16 %v431
        %v672 = vunpack.c.h.b16 %v431
        %v673 = vunpack.c.l.b16 %v432
        %v674 = vunpack.c.h.b16 %v432
        %v675 = vunpack.c.l.b16 %v433
        %v676 = vunpack.c.h.b16 %v433
        %v677 = vunpack.c.l.b16 %v434
        %v678 = vunpack.c.h.b16 %v434
        %v679 = vunpack.c.l.b16 %v435
        %v680 = vunpack.c.h.b16 %v435
        %v681 = vunpack.c.l.b16 %v436
        %v682 = vunpack.c.h.b16 %v436
        %v683 = vunpack.c.l.b16 %v437
        %v684 = vunpack.c.h.b16 %v437
        %v685 = vunpack.c.l.b16 %v438
        %v686 = vunpack.c.h.b16 %v438
        %v687 = vunpack.c.l.b16 %v439
        %v688 = vunpack.c.h.b16 %v439
        %v689 = vunpack.c.l.b16 %v440
        %v690 = vunpack.c.h.b16 %v440
        %v691 = vunpack.c.l.b16 %v441
        %v692 = vunpack.c.h.b16 %v441
        %v693 = vunpack.c.l.b16 %v442
        %v694 = vunpack.c.h.b16 %v442
        %v695 = vunpack.c.l.b16 %v443
        %v696 = vunpack.c.h.b16 %v443
        %v697 = vunpack.c.l.b16 %v444
        %v698 = vunpack.c.h.b16 %v444
        %v699 = vunpack.c.l.b16 %v445
        %v700 = vunpack.c.h.b16 %v445
        %v701 = vunpack.c.l.b16 %v446
        %v702 = vunpack.c.h.b16 %v446
        %v703 = vunpack.c.l.b16 %v447
        %v704 = vunpack.c.h.b16 %v447
        %v705 = vunpack.c.l.b16 %v448
        %v706 = vunpack.c.h.b16 %v448
        %v707 = vunpack.c.l.b16 %v449
        %v708 = vunpack.c.h.b16 %v449
        %v709 = vunpack.c.l.b16 %v450
        %v710 = vunpack.c.h.b16 %v450
        %v711 = vunpack.c.l.b16 %v451
        %v712 = vunpack.c.h.b16 %v451
        %v713 = vunpack.c.l.b16 %v452
        %v714 = vunpack.c.h.b16 %v452
        %v715 = vunpack.c.l.b16 %v453
        %v716 = vunpack.c.h.b16 %v453
        %v717 = vunpack.c.l.b16 %v454
        %v718 = vunpack.c.h.b16 %v454
        %v719 = vunpack.c.l.b16 %v455
        %v720 = vunpack.c.h.b16 %v455
        %v721 = vunpack.c.l.b16 %v456
        %v722 = vunpack.c.h.b16 %v456
        %v723 = vunpack.c.l.b16 %v457
        %v724 = vunpack.c.h.b16 %v457
        %v725 = vunpack.c.l.b16 %v458
        %v726 = vunpack.c.h.b16 %v458
        %v727 = vunpack.c.l.b16 %v459
        %v728 = vunpack.c.h.b16 %v459
        %v729 = vunpack.c.l.b16 %v460
        %v730 = vunpack.c.h.b16 %v460
        %v731 = vunpack.c.l.b16 %v461
        %v732 = vunpack.c.h.b16 %v461
        %v733 = vunpack.c.l.b16 %v462
        %v734 = vunpack.c.h.b16 %v462
        %v735 = vunpack.c.l.b16 %v463
        %v736 = vunpack.c.h.b16 %v463
        %v737 = vunpack.c.l.b16 %v464
        %v738 = vunpack.c.h.b16 %v464
        %v739 = vunpack.c.l.b16 %v465
        %v740 = vunpack.c.h.b16 %v465
        %v741 = vunpack.c.l.b16 %v466
        %v742 = vunpack.c.h.b16 %v466
        %v743 = vunpack.c.l.b16 %v467
        %v744 = vunpack.c.h.b16 %v467
        %v745 = vunpack.c.l.b16 %v468
        %v746 = vunpack.c.h.b16 %v468
        %v747 = vunpack.c.l.b16 %v469
        %v748 = vunpack.c.h.b16 %v469
        %v749 = vunpack.c.l.b16 %v470
        %v750 = vunpack.c.h.b16 %v470
        %v751 = vunpack.c.l.b16 %v471
        %v752 = vunpack.c.h.b16 %v471
        %v753 = vunpack.c.l.b16 %v472
        %v754 = vunpack.c.h.b16 %v472
        %v755 = vunpack.c.l.b16 %v473
        %v756 = vunpack.c.h.b16 %v473
        %v757 = vunpack.c.l.b16 %v474
        %v758 = vunpack.c.h.b16 %v474
        %v759 = vunpack.c.l.b16 %v475
        %v760 = vunpack.c.h.b16 %v475
        %v761 = vunpack.c.l.b16 %v476
        %v762 = vunpack.c.h.b16 %v476
        %v763 = vunpack.c.l.b16 %v477
        %v764 = vunpack.c.h.b16 %v477
        %v765 = vunpack.c.l.b16 %v478
        %v766 = vunpack.c.h.b16 %v478
        %v767 = vunpack.c.l.b16 %v479
        %v768 = vunpack.c.h.b16 %v479
        %v769 = vunpack.c.l.b16 %v480
        %v770 = vunpack.c.h.b16 %v480
        %v771 = vunpack.c.l.b16 %v481
        %v772 = vunpack.c.h.b16 %v481
        %v773 = vunpack.c.l.b16 %v482
        %v774 = vunpack.c.h.b16 %v482
        %v775 = vunpack.c.l.b16 %v483
        %v776 = vunpack.c.h.b16 %v483
        %v777 = vunpack.c.l.b16 %v484
        %v778 = vunpack.c.h.b16 %v484
        %v779 = vunpack.c.l.b16 %v485
        %v780 = vunpack.c.h.b16 %v485
        %v781 = vunpack.c.l.b16 %v486
        %v782 = vunpack.c.h.b16 %v486
        %v783 = vunpack.c.l.b16 %v487
        %v784 = vunpack.c.h.b16 %v487
        %v785 = vunpack.c.l.b16 %v488
        %v786 = vunpack.c.h.b16 %v488
        %v787 = vpack.c.b16 %v601, %v595
        %v788 = vpack.c.b16 %v602, %v596
        %v789 = vpack.c.b16 %v603, %v597
        %v790 = vpack.c.b16 %v604, %v598
        %v791 = vpack.c.b16 %v605, %v599
        %v792 = vpack.c.b16 %v606, %v600
        %v793 = vpack.c.b16 %v613, %v607
        %v794 = vpack.c.b16 %v614, %v608
        %v795 = vpack.c.b16 %v615, %v609
        %v796 = vpack.c.b16 %v616, %v610
        %v797 = vpack.c.b16 %v617, %v611
        %v798 = vpack.c.b16 %v618, %v612
        %v799 = vpack.c.b16 %v625, %v619
        %v800 = vpack.c.b16 %v626, %v620
        %v801 = vpack.c.b16 %v627, %v621
        %v802 = vpack.c.b16 %v628, %v622
        %v803 = vpack.c.b16 %v629, %v623
        %v804 = vpack.c.b16 %v630, %v624
        %v805 = vpack.c.b16 %v637, %v631
        %v806 = vpack.c.b16 %v638, %v632
        %v807 = vpack.c.b16 %v639, %v633
        %v808 = vpack.c.b16 %v640, %v634
        %v809 = vpack.c.b16 %v641, %v635
        %v810 = vpack.c.b16 %v642, %v636
        %v811 = vpack.c.b16 %v649, %v643
        %v812 = vpack.c.b16 %v650, %v644
        %v813 = vpack.c.b16 %v651, %v645
        %v814 = vpack.c.b16 %v652, %v646
        %v815 = vpack.c.b16 %v653, %v647
        %v816 = vpack.c.b16 %v654, %v648
        %v817 = vpack.c.b16 %v661, %v655
        %v818 = vpack.c.b16 %v662, %v656
        %v819 = vpack.c.b16 %v663, %v657
        %v820 = vpack.c.b16 %v664, %v658
        %v821 = vpack.c.b16 %v665, %v659
        %v822 = vpack.c.b16 %v666, %v660
        %v823 = vpack.c.b16 %v673, %v667
        %v824 = vpack.c.b16 %v674, %v668
        %v825 = vpack.c.b16 %v675, %v669
        %v826 = vpack.c.b16 %v676, %v670
        %v827 = vpack.c.b16 %v677, %v671
        %v828 = vpack.c.b16 %v678, %v672
        %v829 = vpack.c.b16 %v685, %v679
        %v830 = vpack.c.b16 %v686, %v680
        %v831 = vpack.c.b16 %v687, %v681
        %v832 = vpack.c.b16 %v688, %v682
        %v833 = vpack.c.b16 %v689, %v683
        %v834 = vpack.c.b16 %v690, %v684
        %v835 = vpack.c.b16 %v697, %v691
        %v836 = vpack.c.b16 %v698, %v692
        %v837 = vpack.c.b16 %v699, %v693
        %v838 = vpack.c.b16 %v700, %v694
        %v839 = vpack.c.b16 %v701, %v695
        %v840 = vpack.c.b16 %v702, %v696
        %v841 = vpack.c.b16 %v709, %v703
        %v842 = vpack.c.b16 %v710, %v704
        %v843 = vpack.c.b16 %v711, %v705
        %v844 = vpack.c.b16 %v712, %v706
        %v845 = vpack.c.b16 %v713, %v707
        %v846 = vpack.c.b16 %v714, %v708
        %v847 = vpack.c.b16 %v721, %v715
        %v848 = vpack.c.b16 %v722, %v716
        %v849 = vpack.c.b16 %v723, %v717
        %v850 = vpack.c.b16 %v724, %v718
        %v851 = vpack.c.b16 %v725, %v719
        %v852 = vpack.c.b16 %v726, %v720
        %v853 = vpack.c.b16 %v733, %v727
        %v854 = vpack.c.b16 %v734, %v728
        %v855 = vpack.c.b16 %v735, %v729
        %v856 = vpack.c.b16 %v736, %v730
        %v857 = vpack.c.b16 %v737, %v731
        %v858 = vpack.c.b16 %v738, %v732
        %v859 = vpack.c.b16 %v745, %v739
        %v860 = vpack.c.b16 %v746, %v740
        %v861 = vpack.c.b16 %v747, %v741
        %v862 = vpack.c.b16 %v748, %v742
        %v863 = vpack.c.b16 %v749, %v743
        %v864 = vpack.c.b16 %v750, %v744
        %v865 = vpack.c.b16 %v757, %v751
        %v866 = vpack.c.b16 %v758, %v752
        %v867 = vpack.c.b16 %v759, %v753
        %v868 = vpack.c.b16 %v760, %v754
        %v869 = vpack.c.b16 %v761, %v755
        %v870 = vpack.c.b16 %v762, %v756
        %v871 = vpack.c.b16 %v769, %v763
        %v872 = vpack.c.b16 %v770, %v764
        %v873 = vpack.c.b16 %v771, %v765
        %v874 = vpack.c.b16 %v772, %v766
        %v875 = vpack.c.b16 %v773, %v767
        %v876 = vpack.c.b16 %v774, %v768
        %v877 = vpack.c.b16 %v781, %v775
        %v878 = vpack.c.b16 %v782, %v776
        %v879 = vpack.c.b16 %v783, %v777
        %v880 = vpack.c.b16 %v784, %v778
        %v881 = vpack.c.b16 %v785, %v779
        %v882 = vpack.c.b16 %v786, %v780
        %979 = vmatprep.subr.bf16.mxu0 %v788
        %980 = vmatpush1.bf16.msra.mxu0 %v787
        %981 = vmatprep.subr.bf16.mxu0 %v794
        %982 = vmatpush1.bf16.msra.mxu0 %v793
        %983 = vmatprep.subr.bf16.mxu0 %v800
        %984 = vmatpush1.bf16.msra.mxu0 %v799
        %985 = vmatprep.subr.bf16.mxu0 %v806
        %986 = vmatpush1.bf16.msra.mxu0 %v805
        %987 = vmatprep.subr.bf16.mxu0 %v812
        %988 = vmatpush1.bf16.msra.mxu0 %v811
        %989 = vmatprep.subr.bf16.mxu0 %v818
        %990 = vmatpush1.bf16.msra.mxu0 %v817
        %991 = vmatprep.subr.bf16.mxu0 %v824
        %992 = vmatpush1.bf16.msra.mxu0 %v823
        %993 = vmatprep.subr.bf16.mxu0 %v830
        %994 = vmatpush1.bf16.msra.mxu0 %v829
        %995 = vmatprep.subr.bf16.mxu0 %v836
        %996 = vmatpush1.bf16.msra.mxu0 %v835
        %997 = vmatprep.subr.bf16.mxu0 %v842
        %998 = vmatpush1.bf16.msra.mxu0 %v841
        %999 = vmatprep.subr.bf16.mxu0 %v848
        %1000 = vmatpush1.bf16.msra.mxu0 %v847
        %1001 = vmatprep.subr.bf16.mxu0 %v854
        %1002 = vmatpush1.bf16.msra.mxu0 %v853
        %1003 = vmatprep.subr.bf16.mxu0 %v860
        %1004 = vmatpush1.bf16.msra.mxu0 %v859
        %1005 = vmatprep.subr.bf16.mxu0 %v866
        %1006 = vmatpush1.bf16.msra.mxu0 %v865
        %1007 = vmatprep.subr.bf16.mxu0 %v872
        %1008 = vmatpush1.bf16.msra.mxu0 %v871
        %1009 = vmatprep.subr.bf16.mxu0 %v878
        %1010 = vmatpush1.bf16.msra.mxu0 %v877
        %1011 = vmatprep.mubr.bf16.mxu0 %v496
        %1012 = vmatmul.mubr.bf16.gmra.mrb[0].mxu0 %v495
        %v1013 = vpop.f32.mrb[0].mxu0
        %v1014 = vadd.f32 0.0, %v1013
        %v1015 = vpop.f32.mrb[0].mxu0
        %v1016 = vadd.f32 0.0, %v1015
        %v1017 = vpop.f32.mrb[0].mxu0
        %v1018 = vadd.f32 0.0, %v1017
        %v1019 = vpop.f32.mrb[0].mxu0
        %v1020 = vadd.f32 0.0, %v1019
        %1021 = vdwg.mxu0
        %1022 = vmatprep.subr.bf16.mxu0 %v790
        %1023 = vmatpush1.bf16.msra.mxu0 %v789
        %1024 = vmatprep.subr.bf16.mxu0 %v796
        %1025 = vmatpush1.bf16.msra.mxu0 %v795
        %1026 = vmatprep.subr.bf16.mxu0 %v802
        %1027 = vmatpush1.bf16.msra.mxu0 %v801
        %1028 = vmatprep.subr.bf16.mxu0 %v808
        %1029 = vmatpush1.bf16.msra.mxu0 %v807
        %1030 = vmatprep.subr.bf16.mxu0 %v814
        %1031 = vmatpush1.bf16.msra.mxu0 %v813
        %1032 = vmatprep.subr.bf16.mxu0 %v820
        %1033 = vmatpush1.bf16.msra.mxu0 %v819
        %1034 = vmatprep.subr.bf16.mxu0 %v826
        %1035 = vmatpush1.bf16.msra.mxu0 %v825
        %1036 = vmatprep.subr.bf16.mxu0 %v832
        %1037 = vmatpush1.bf16.msra.mxu0 %v831
        %1038 = vmatprep.subr.bf16.mxu0 %v838
        %1039 = vmatpush1.bf16.msra.mxu0 %v837
        %1040 = vmatprep.subr.bf16.mxu0 %v844
        %1041 = vmatpush1.bf16.msra.mxu0 %v843
        %1042 = vmatprep.subr.bf16.mxu0 %v850
        %1043 = vmatpush1.bf16.msra.mxu0 %v849
        %1044 = vmatprep.subr.bf16.mxu0 %v856
        %1045 = vmatpush1.bf16.msra.mxu0 %v855
        %1046 = vmatprep.subr.bf16.mxu0 %v862
        %1047 = vmatpush1.bf16.msra.mxu0 %v861
        %1048 = vmatprep.subr.bf16.mxu0 %v868
        %1049 = vmatpush1.bf16.msra.mxu0 %v867
        %1050 = vmatprep.subr.bf16.mxu0 %v874
        %1051 = vmatpush1.bf16.msra.mxu0 %v873
        %1052 = vmatprep.subr.bf16.mxu0 %v880
        %1053 = vmatpush1.bf16.msra.mxu0 %v879
        %1054 = vmatprep.mubr.bf16.mxu0 %v496
        %1055 = vmatmul.mubr.bf16.gmra.mrb[0].mxu0 %v495
        %v1056 = vpop.f32.mrb[0].mxu0
        %v1057 = vadd.f32 0.0, %v1056
        %v1058 = vpop.f32.mrb[0].mxu0
        %v1059 = vadd.f32 0.0, %v1058
        %v1060 = vpop.f32.mrb[0].mxu0
        %v1061 = vadd.f32 0.0, %v1060
        %v1062 = vpop.f32.mrb[0].mxu0
        %v1063 = vadd.f32 0.0, %v1062
        %1064 = vdwg.mxu0
        %1065 = vmatprep.subr.bf16.mxu0 %v792
        %1066 = vmatpush1.bf16.msra.mxu0 %v791
        %1067 = vmatprep.subr.bf16.mxu0 %v798
        %1068 = vmatpush1.bf16.msra.mxu0 %v797
        %1069 = vmatprep.subr.bf16.mxu0 %v804
        %1070 = vmatpush1.bf16.msra.mxu0 %v803
        %1071 = vmatprep.subr.bf16.mxu0 %v810
        %1072 = vmatpush1.bf16.msra.mxu0 %v809
        %1073 = vmatprep.subr.bf16.mxu0 %v816
        %1074 = vmatpush1.bf16.msra.mxu0 %v815
        %1075 = vmatprep.subr.bf16.mxu0 %v822
        %1076 = vmatpush1.bf16.msra.mxu0 %v821
        %1077 = vmatprep.subr.bf16.mxu0 %v828
        %1078 = vmatpush1.bf16.msra.mxu0 %v827
        %1079 = vmatprep.subr.bf16.mxu0 %v834
        %1080 = vmatpush1.bf16.msra.mxu0 %v833
        %1081 = vmatprep.subr.bf16.mxu0 %v840
        %1082 = vmatpush1.bf16.msra.mxu0 %v839
        %1083 = vmatprep.subr.bf16.mxu0 %v846
        %1084 = vmatpush1.bf16.msra.mxu0 %v845
        %1085 = vmatprep.subr.bf16.mxu0 %v852
        %1086 = vmatpush1.bf16.msra.mxu0 %v851
        %1087 = vmatprep.subr.bf16.mxu0 %v858
        %1088 = vmatpush1.bf16.msra.mxu0 %v857
        %1089 = vmatprep.subr.bf16.mxu0 %v864
        %1090 = vmatpush1.bf16.msra.mxu0 %v863
        %1091 = vmatprep.subr.bf16.mxu0 %v870
        %1092 = vmatpush1.bf16.msra.mxu0 %v869
        %1093 = vmatprep.subr.bf16.mxu0 %v876
        %1094 = vmatpush1.bf16.msra.mxu0 %v875
        %1095 = vmatprep.subr.bf16.mxu0 %v882
        %1096 = vmatpush1.bf16.msra.mxu0 %v881
        %1097 = vmatprep.mubr.bf16.mxu0 %v496
        %1098 = vmatmul.mubr.bf16.gmra.mrb[0].mxu0 %v495
        %v1099 = vpop.f32.mrb[0].mxu0
        %v1100 = vadd.f32 0.0, %v1099
        %v1101 = vpop.f32.mrb[0].mxu0
        %v1102 = vadd.f32 0.0, %v1101
        %v1103 = vpop.f32.mrb[0].mxu0
        %v1104 = vadd.f32 0.0, %v1103
        %v1105 = vpop.f32.mrb[0].mxu0
        %v1106 = vadd.f32 0.0, %v1105
        %1107 = vdwg.mxu0
        %v1108 = vadd.f32 %v379, %v1014
        %v1109 = vadd.f32 %v380, %v1016
        %v1110 = vadd.f32 %v381, %v1057
        %v1111 = vadd.f32 %v382, %v1059
        %v1112 = vadd.f32 %v383, %v1100
        %v1113 = vadd.f32 %v384, %v1102
        %v1114 = vadd.f32 %v385, %v1018
        %v1115 = vadd.f32 %v386, %v1020
        %v1116 = vadd.f32 %v387, %v1061
        %v1117 = vadd.f32 %v388, %v1063
        %v1118 = vadd.f32 %v389, %v1104
        %v1119 = vadd.f32 %v390, %v1106
        %1120 = vst [vmem:[#allocation2] sm:$0xff] %v1108
        %1121 = vst [vmem:[#allocation2 + $0x8] sm:$0xff] %v1109
        %1122 = vst [vmem:[#allocation2 + $0x10] sm:$0xff] %v1110
        %1123 = vst [vmem:[#allocation2 + $0x18] sm:$0xff] %v1111
        %1124 = vst [vmem:[#allocation2 + $0x20] sm:$0xff] %v1112
        %1125 = vst [vmem:[#allocation2 + $0x28] sm:$0xff] %v1113
        %1126 = vst [vmem:[#allocation2 + $0x30] sm:$0xff] %v1114
        %1127 = vst [vmem:[#allocation2 + $0x38] sm:$0xff] %v1115
        %1128 = vst [vmem:[#allocation2 + $0x40] sm:$0xff] %v1116
        %1129 = vst [vmem:[#allocation2 + $0x48] sm:$0xff] %v1117
        %1130 = vst [vmem:[#allocation2 + $0x50] sm:$0xff] %v1118
        %1131 = vst [vmem:[#allocation2 + $0x58] sm:$0xff] %v1119
        %p1132 = scmp.eq.s32.totalorder %s22, 11
        // Predicated region
        $region87: #{bert_forward.16} parent=77 // pred_check
          %p1133 = pneg %p1132
        $region88: #{bert_forward.16} parent=77 // pred_check_branch
          %1135 = sbr.rel (%p1133) target = $region90
        $region89: #{bert_forward.16} parent=77 // pred_region
          %v1136 = vld [vmem:[#allocation2] sm:$0xff]
          %v1137 = vld [vmem:[#allocation2 + $0x8] sm:$0xff]
          %v1138 = vld [vmem:[#allocation2 + $0x10] sm:$0xff]
          %v1139 = vld [vmem:[#allocation2 + $0x18] sm:$0xff]
          %v1140 = vld [vmem:[#allocation2 + $0x20] sm:$0xff]
          %v1141 = vld [vmem:[#allocation2 + $0x28] sm:$0xff]
          %v1142 = vld [vmem:[#allocation2 + $0x30] sm:$0xff]
          %v1143 = vld [vmem:[#allocation2 + $0x38] sm:$0xff]
          %v1144 = vld [vmem:[#allocation2 + $0x40] sm:$0xff]
          %v1145 = vld [vmem:[#allocation2 + $0x48] sm:$0xff]
          %v1146 = vld [vmem:[#allocation2 + $0x50] sm:$0xff]
          %v1147 = vld [vmem:[#allocation2 + $0x58] sm:$0xff]
          %v1148 = vld [vmem:[%s2] sm:$0x3f]
          %v1150 = vlaneseq
          %v1151 = vshrl.u32 %v1150, 7
          %v1152 = vsub.s32 0, %v1151
          %v1153 = vrot.slane %v1148, %v1152
          %v1154 = vlaneseq
          %v1155 = vshrl.u32 %v1154, 7
          %v1156 = vsub.s32 1, %v1155
          %v1157 = vrot.slane %v1148, %v1156
          %v1158 = vlaneseq
          %v1159 = vshrl.u32 %v1158, 7
          %v1160 = vsub.s32 2, %v1159
          %v1161 = vrot.slane %v1148, %v1160
          %v1162 = vlaneseq
          %v1163 = vshrl.u32 %v1162, 7
          %v1164 = vsub.s32 3, %v1163
          %v1165 = vrot.slane %v1148, %v1164
          %v1166 = vlaneseq
          %v1167 = vshrl.u32 %v1166, 7
          %v1168 = vsub.s32 4, %v1167
          %v1169 = vrot.slane %v1148, %v1168
          %v1170 = vlaneseq
          %v1171 = vshrl.u32 %v1170, 7
          %v1172 = vsub.s32 5, %v1171
          %v1173 = vrot.slane %v1148, %v1172
          %v1180 = vadd.f32 %v1136, %v1153
          %v1181 = vadd.f32 %v1137, %v1157
          %v1182 = vadd.f32 %v1138, %v1161
          %v1183 = vadd.f32 %v1139, %v1165
          %v1184 = vadd.f32 %v1140, %v1169
          %v1185 = vadd.f32 %v1141, %v1173
          %v1186 = vadd.f32 %v1142, %v1153
          %v1187 = vadd.f32 %v1143, %v1157
          %v1188 = vadd.f32 %v1144, %v1161
          %v1189 = vadd.f32 %v1145, %v1165
          %v1190 = vadd.f32 %v1146, %v1169
          %v1191 = vadd.f32 %v1147, %v1173
          %v1192 = vld [vmem:[%s354] sm:$0xff]
          %v1193 = vld [vmem:[%s354 + $0x8] sm:$0xff]
          %v1194 = vld [vmem:[%s354 + $0x10] sm:$0xff]
          %v1195 = vld [vmem:[%s354 + $0x18] sm:$0xff]
          %v1196 = vld [vmem:[%s354 + $0x20] sm:$0xff]
          %v1197 = vld [vmem:[%s354 + $0x28] sm:$0xff]
          %v1198 = vunpack.c.l.bf16 %v1192
          %v1199 = vunpack.c.h.bf16 %v1192
          %v1200 = vunpack.c.l.bf16 %v1193
          %v1201 = vunpack.c.h.bf16 %v1193
          %v1202 = vunpack.c.l.bf16 %v1194
          %v1203 = vunpack.c.h.bf16 %v1194
          %v1204 = vunpack.c.l.bf16 %v1195
          %v1205 = vunpack.c.h.bf16 %v1195
          %v1206 = vunpack.c.l.bf16 %v1196
          %v1207 = vunpack.c.h.bf16 %v1196
          %v1208 = vunpack.c.l.bf16 %v1197
          %v1209 = vunpack.c.h.bf16 %v1197
          %v1210 = vadd.f32 %v1180, %v1198
          %v1211 = vadd.f32 %v1181, %v1199
          %v1212 = vadd.f32 %v1182, %v1200
          %v1213 = vadd.f32 %v1183, %v1201
          %v1214 = vadd.f32 %v1184, %v1202
          %v1215 = vadd.f32 %v1185, %v1203
          %v1216 = vadd.f32 %v1186, %v1204
          %v1217 = vadd.f32 %v1187, %v1205
          %v1218 = vadd.f32 %v1188, %v1206
          %v1219 = vadd.f32 %v1189, %v1207
          %v1220 = vadd.f32 %v1190, %v1208
          %v1221 = vadd.f32 %v1191, %v1209
          %v1222 = vadd.f32 %v1210, %v1211
          %v1223 = vadd.f32 %v1222, %v1212
          %v1224 = vadd.f32 %v1223, %v1213
          %v1225 = vadd.f32 %v1224, %v1214
          %v1226 = vadd.f32 %v1225, %v1215
          %1227 = vadd.xlane.f32.xlu0 %v1226
          %v1228 = vpop.xlane.xlu0 %1227
          %v1229 = vadd.f32 %v1216, %v1217
          %v1230 = vadd.f32 %v1229, %v1218
          %v1231 = vadd.f32 %v1230, %v1219
          %v1232 = vadd.f32 %v1231, %v1220
          %v1233 = vadd.f32 %v1232, %v1221
          %1234 = vadd.xlane.f32.xlu0 %v1233
          %v1235 = vpop.xlane.xlu0 %1234
          %v1236 = vrcp.pop 768.0
          %v1237 = vmul.f32 %v1228, %v1236
          %v1238 = vmul.f32 %v1235, %v1236
          %v1239 = vsub.f32 %v1210, %v1237
          %v1240 = vsub.f32 %v1211, %v1237
          %v1241 = vsub.f32 %v1212, %v1237
          %v1242 = vsub.f32 %v1213, %v1237
          %v1243 = vsub.f32 %v1214, %v1237
          %v1244 = vsub.f32 %v1215, %v1237
          %v1245 = vsub.f32 %v1216, %v1238
          %v1246 = vsub.f32 %v1217, %v1238
          %v1247 = vsub.f32 %v1218, %v1238
          %v1248 = vsub.f32 %v1219, %v1238
          %v1249 = vsub.f32 %v1220, %v1238
          %v1250 = vsub.f32 %v1221, %v1238
          %v1251 = vmul.f32 %v1239, %v1239
          %v1252 = vmul.f32 %v1240, %v1240
          %v1253 = vmul.f32 %v1241, %v1241
          %v1254 = vmul.f32 %v1242, %v1242
          %v1255 = vmul.f32 %v1243, %v1243
          %v1256 = vmul.f32 %v1244, %v1244
          %v1257 = vmul.f32 %v1245, %v1245
          %v1258 = vmul.f32 %v1246, %v1246
          %v1259 = vmul.f32 %v1247, %v1247
          %v1260 = vmul.f32 %v1248, %v1248
          %v1261 = vmul.f32 %v1249, %v1249
          %v1262 = vmul.f32 %v1250, %v1250
          %v1263 = vadd.f32 %v1251, %v1252
          %v1264 = vadd.f32 %v1263, %v1253
          %v1265 = vadd.f32 %v1264, %v1254
          %v1266 = vadd.f32 %v1265, %v1255
          %v1267 = vadd.f32 %v1266, %v1256
          %1268 = vadd.xlane.f32.xlu0 %v1267
          %v1269 = vpop.xlane.xlu0 %1268
          %v1270 = vadd.f32 %v1257, %v1258
          %v1271 = vadd.f32 %v1270, %v1259
          %v1272 = vadd.f32 %v1271, %v1260
          %v1273 = vadd.f32 %v1272, %v1261
          %v1274 = vadd.f32 %v1273, %v1262
          %1275 = vadd.xlane.f32.xlu0 %v1274
          %v1276 = vpop.xlane.xlu0 %1275
          %v1277 = vmul.f32 %v1269, %v1236
          %v1278 = vmul.f32 %v1276, %v1236
          %v1279 = vadd.f32 %v1277, 1e-12
          %v1280 = vadd.f32 %v1278, 1e-12
          %v1281 = vrsqrt.pop %v1279
          %v1282 = vrsqrt.pop %v1280
          %v1283 = vmul.f32 %v1239, %v1281
          %v1284 = vmul.f32 %v1240, %v1281
          %v1285 = vmul.f32 %v1241, %v1281
          %v1286 = vmul.f32 %v1242, %v1281
          %v1287 = vmul.f32 %v1243, %v1281
          %v1288 = vmul.f32 %v1244, %v1281
          %v1289 = vmul.f32 %v1245, %v1282
          %v1290 = vmul.f32 %v1246, %v1282
          %v1291 = vmul.f32 %v1247, %v1282
          %v1292 = vmul.f32 %v1248, %v1282
          %v1293 = vmul.f32 %v1249, %v1282
          %v1294 = vmul.f32 %v1250, %v1282
          %v1295 = vld [vmem:[%s4] sm:$0x3f]
          %v1297 = vlaneseq
          %v1298 = vshrl.u32 %v1297, 7
          %v1299 = vsub.s32 0, %v1298
          %v1300 = vrot.slane %v1295, %v1299
          %v1301 = vlaneseq
          %v1302 = vshrl.u32 %v1301, 7
          %v1303 = vsub.s32 1, %v1302
          %v1304 = vrot.slane %v1295, %v1303
          %v1305 = vlaneseq
          %v1306 = vshrl.u32 %v1305, 7
          %v1307 = vsub.s32 2, %v1306
          %v1308 = vrot.slane %v1295, %v1307
          %v1309 = vlaneseq
          %v1310 = vshrl.u32 %v1309, 7
          %v1311 = vsub.s32 3, %v1310
          %v1312 = vrot.slane %v1295, %v1311
          %v1313 = vlaneseq
          %v1314 = vshrl.u32 %v1313, 7
          %v1315 = vsub.s32 4, %v1314
          %v1316 = vrot.slane %v1295, %v1315
          %v1317 = vlaneseq
          %v1318 = vshrl.u32 %v1317, 7
          %v1319 = vsub.s32 5, %v1318
          %v1320 = vrot.slane %v1295, %v1319
          %v1327 = vmul.f32 %v1283, %v1300
          %v1328 = vmul.f32 %v1284, %v1304
          %v1329 = vmul.f32 %v1285, %v1308
          %v1330 = vmul.f32 %v1286, %v1312
          %v1331 = vmul.f32 %v1287, %v1316
          %v1332 = vmul.f32 %v1288, %v1320
          %v1333 = vmul.f32 %v1289, %v1300
          %v1334 = vmul.f32 %v1290, %v1304
          %v1335 = vmul.f32 %v1291, %v1308
          %v1336 = vmul.f32 %v1292, %v1312
          %v1337 = vmul.f32 %v1293, %v1316
          %v1338 = vmul.f32 %v1294, %v1320
          %v1339 = vld [vmem:[%s5] sm:$0x3f]
          %v1341 = vlaneseq
          %v1342 = vshrl.u32 %v1341, 7
          %v1343 = vsub.s32 0, %v1342
          %v1344 = vrot.slane %v1339, %v1343
          %v1345 = vlaneseq
          %v1346 = vshrl.u32 %v1345, 7
          %v1347 = vsub.s32 1, %v1346
          %v1348 = vrot.slane %v1339, %v1347
          %v1349 = vlaneseq
          %v1350 = vshrl.u32 %v1349, 7
          %v1351 = vsub.s32 2, %v1350
          %v1352 = vrot.slane %v1339, %v1351
          %v1353 = vlaneseq
          %v1354 = vshrl.u32 %v1353, 7
          %v1355 = vsub.s32 3, %v1354
          %v1356 = vrot.slane %v1339, %v1355
          %v1357 = vlaneseq
          %v1358 = vshrl.u32 %v1357, 7
          %v1359 = vsub.s32 4, %v1358
          %v1360 = vrot.slane %v1339, %v1359
          %v1361 = vlaneseq
          %v1362 = vshrl.u32 %v1361, 7
          %v1363 = vsub.s32 5, %v1362
          %v1364 = vrot.slane %v1339, %v1363
          %v1371 = vadd.f32 %v1327, %v1344
          %v1372 = vadd.f32 %v1328, %v1348
          %v1373 = vadd.f32 %v1329, %v1352
          %v1374 = vadd.f32 %v1330, %v1356
          %v1375 = vadd.f32 %v1331, %v1360
          %v1376 = vadd.f32 %v1332, %v1364
          %v1377 = vadd.f32 %v1333, %v1344
          %v1378 = vadd.f32 %v1334, %v1348
          %v1379 = vadd.f32 %v1335, %v1352
          %v1380 = vadd.f32 %v1336, %v1356
          %v1381 = vadd.f32 %v1337, %v1360
          %v1382 = vadd.f32 %v1338, %v1364
          %v1383 = vpack.c.bf16 %v1377, %v1371
          %v1384 = vpack.c.bf16 %v1378, %v1372
          %v1385 = vpack.c.bf16 %v1379, %v1373
          %v1386 = vpack.c.bf16 %v1380, %v1374
          %v1387 = vpack.c.bf16 %v1381, %v1375
          %v1388 = vpack.c.bf16 %v1382, %v1376
          %v1395 = vunpack.c.l.b16 %v1383
          %v1396 = vunpack.c.l.b16 %v1384
          %v1397 = vunpack.c.l.b16 %v1385
          %v1398 = vunpack.c.l.b16 %v1386
          %v1399 = vunpack.c.l.b16 %v1387
          %v1400 = vunpack.c.l.b16 %v1388
          %v1401 = vunpack.c.h.b16 %v1383
          %v1402 = vunpack.c.h.b16 %v1384
          %v1403 = vunpack.c.h.b16 %v1385
          %v1404 = vunpack.c.h.b16 %v1386
          %v1405 = vunpack.c.h.b16 %v1387
          %v1406 = vunpack.c.h.b16 %v1388
          %v1407 = vpack.c.b16 %v1396, %v1395
          %v1408 = vpack.c.b16 %v1398, %v1397
          %v1409 = vpack.c.b16 %v1400, %v1399
          %v1410 = vpack.c.b16 %v1402, %v1401
          %v1411 = vpack.c.b16 %v1404, %v1403
          %v1412 = vpack.c.b16 %v1406, %v1405
          %1419 = vst [vmem:[%s361] sm:$0xff] %v1407
          %1420 = vst [vmem:[%s361 + $0x8] sm:$0xff] %v1408
          %1421 = vst [vmem:[%s361 + $0x10] sm:$0xff] %v1409
          %1422 = vst [vmem:[%s361 + $0x18] sm:$0xff] %v1410
          %1423 = vst [vmem:[%s361 + $0x20] sm:$0xff] %v1411
          %1424 = vst [vmem:[%s361 + $0x28] sm:$0xff] %v1412
        $region90: #{bert_forward.16} parent=77 // pred_fallthru
          _
        %s1425 = smul.u32 2, %s21
        %p1426 = scmp.lt.s32.totalorder %s1425, 1
        %s1427 = scalar_select %p1426, %s1425, 1
        %s1428 = smul.addr %s1427, 6
        %s1429 = smul.addr %s1428, 4
        %s1430 = scalar_lea.vmem %s6, %s1429
        // Predicated region
        $region91: #{bert_forward.16} parent=77 // pred_check
          %p1431 = pneg %p190
        $region92: #{bert_forward.16} parent=77 // pred_check_branch
          %1433 = sbr.rel (%p1431) target = $region94
        $region93: #{bert_forward.16} parent=77 // pred_region
          %s1434 = smul.u32 2, %s21
        $region94: #{bert_forward.16} parent=77 // pred_fallthru
          _
        // Predicated region
        $region95: #{bert_forward.16} parent=77 // pred_check
          %p1435 = pneg %p190
        $region96: #{bert_forward.16} parent=77 // pred_check_branch
          %1437 = sbr.rel (%p1435) target = $region98
        $region97: #{bert_forward.16} parent=77 // pred_region
          %s1438 = smul.u32 2, %s21
          %p1439 = scmp.lt.s32.totalorder %s1438, 1
          %s1440 = scalar_select %p1439, %s1438, 1
          %s1441 = smul.addr %s1440, 6
          %s1442 = smul.addr %s1441, 4
          %s1443 = scalar_lea.vmem %s6, %s1442
        $region98: #{bert_forward.16} parent=77 // pred_fallthru
          _
      $region78: #{bert_forward.16} parent=5 // pred_fallthru
        _
      %p1444 = scmp.le.s32.totalorder 2, %s12
      // Predicated region
      $region99: #{bert_forward.16} parent=5 // pred_check
        %p1445 = pneg %p1444
      $region100: #{bert_forward.16} parent=5 // pred_check_branch
        %1447 = sbr.rel (%p1445) target = $region102
      $region101: #{bert_forward.16} parent=5 // pred_region
        %s1448 = ssub.s32 %s12, 2
      $region102: #{bert_forward.16} parent=5 // pred_fallthru
        _
    $region6: #{bert_forward.16} parent=1 // loop_footer
      %s16 = sadd.s32 1, %s12
    $region7: #{bert_forward.16} parent=1 // loop_footer_branch
      %11 = sbr.rel target = $region3
    $region8: #{bert_forward.16} parent=1 // loop_exit
      _

// kernel: bert_forward.14
$region0: #{bert_forward.14}
  #allocation0 [shape = 'u32[]', space=smem, size = 0x4, offset = 0x4, fixed_abs, tag = 'smem constant byte address 0x4 - core index']
  #allocation1 [shape = 'u32[144,128]{1,0:T(1,128)}', space=vmem, size = 0x12000, scoped, tag = 'internal scratch']
  #allocation2 [shape = 'f32[16,768]{1,0:T(8,128)}', space=vmem, size = 0xc000, scoped, tag = 'scratch operand']
  %s0 = inlined_call_operand.vmem [shape: bf16[16,768], index: 0, kind: input, shape index: {}]
  %s1 = inlined_call_operand.vmem [shape: bf16[768,768], index: 1, kind: input, shape index: {}]
  %s2 = inlined_call_operand.vmem [shape: f32[1,768], index: 2, kind: input, shape index: {}]
  %s3 = inlined_call_operand.vmem [shape: bf16[16,768], index: 3, kind: input, shape index: {}]
  %s4 = inlined_call_operand.vmem [shape: f32[1,768], index: 4, kind: input, shape index: {}]
  %s5 = inlined_call_operand.vmem [shape: f32[1,768], index: 5, kind: input, shape index: {}]
  %s6 = inlined_call_operand.vmem [shape: bf16[16,768], index: 6, kind: output, shape index: {}]
  %s7 = sld [smem:[#allocation0]]
  $region103: #{bert_forward.14} parent=0
    _
  %s9 = ssub.s32 1, %s7
  %s10 = scalar_select 0, %s9, %s7
  $region1: #{bert_forward.14} parent=0
    #allocation3 [shape = 'u8[16384]{0}', space=vmem, size = 0x4000, scoped, tag = 'input window, operand 0']
    loop: start=0, step=1, limit=5
    $region2: #{bert_forward.14} parent=1 // loop_pre_header
      _
    $region3: #{bert_forward.14} parent=1 // loop_header
      %s12 = sphi 0, %s16
      %p13 = scmp.ge.s32.totalorder %s12, 5
      %s19 = sphi 0, %s31
      %s20 = sphi 0, %s27
      %s21 = sphi 0, %s19
      %s22 = sphi 0, %s20
      %s23 = sphi 0, %s21
      %s24 = sphi 0, %s22
      %s36 = sphi 0, %s38
      %s39 = sphi 0, %s36
      %s40 = sphi 0, %s39
      %s56 = sphi 0, %s40
      %s62 = sphi 0, %s64
      %s65 = sphi 0, %s62
      %s66 = sphi 0, %s65
      %s82 = sphi 0, %s66
      %s86 = sphi 0, %s86
      %s88 = sphi 0, %s86
      %s89 = sphi 0, %s88
      %s103 = sphi 0, %s89
      %s109 = sphi 0, %s111
      %s112 = sphi 0, %s109
      %s113 = sphi 0, %s112
      %s129 = sphi 0, %s113
      %s133 = sphi 0, %s133
      %s135 = sphi 0, %s133
      %s136 = sphi 0, %s135
      %s150 = sphi 0, %s136
      %s154 = sphi 0, %s154
      %s156 = sphi 0, %s154
      %s157 = sphi 0, %s156
      %s171 = sphi 0, %s157
      %s177 = sphi 0, %s179
      %s180 = sphi 0, %s177
      %s181 = sphi 0, %s180
      %s197 = sphi 0, %s181
    $region4: #{bert_forward.14} parent=1 // loop_header_branch
      %15 = sbr.rel (%p13) target = $region8
    $region5: #{bert_forward.14} parent=1 // loop_body
      %s17 = ssub.s32 %s12, 1
      %s18 = ssub.s32 %s12, 2
      %s25 = sadd.s32 1, %s20
      %p26 = scmp.ge.s32.totalorder %s25, 3
      %s27 = scalar_select %p26, 0, %s25
      %s28 = sadd.s32 1, %s19
      %s29 = scalar_select %p26, %s28, %s19
      %p30 = scmp.ge.s32.totalorder %s29, 1
      %s31 = scalar_select %p30, 0, %s29
      %s32 = ssub.s32 %s19, %s31
      %s33 = ssub.s32 %s20, %s27
      %s34 = sor.u32 %s32, %s33
      %p35 = scmp.eq.s32.totalorder %s34, 0
      %s37 = sadd.s32 %s36, 1
      %s38 = scalar_select %p35, %s36, %s37
      %p41 = pneg %p35
      %p42 = scmp.eq.s32.totalorder %s12, 2
      %p43 = por %p41, %p42
      %p44 = scmp.ne.s32.totalorder %s36, %s39
      %p45 = scmp.eq.s32.totalorder %s12, 0
      %p46 = por %p44, %p45
      %p47 = scmp.ne.s32.totalorder %s36, %s39
      %p48 = scmp.eq.s32.totalorder %s17, 2
      %p49 = por %p47, %p48
      %p50 = scmp.ne.s32.totalorder %s39, %s40
      %p51 = scmp.eq.s32.totalorder %s17, 0
      %p52 = por %p50, %p51
      %p53 = scmp.ne.s32.totalorder %s39, %s40
      %p54 = scmp.eq.s32.totalorder %s18, 2
      %p55 = por %p53, %p54
      %p57 = scmp.ne.s32.totalorder %s40, %s56
      %p58 = scmp.eq.s32.totalorder %s18, 0
      %p59 = por %p57, %p58
      %s60 = ssub.s32 %s20, %s27
      %p61 = scmp.eq.s32.totalorder %s60, 0
      %s63 = sadd.s32 %s62, 1
      %s64 = scalar_select %p61, %s62, %s63
      %p67 = pneg %p61
      %p68 = scmp.eq.s32.totalorder %s12, 2
      %p69 = por %p67, %p68
      %p70 = scmp.ne.s32.totalorder %s62, %s65
      %p71 = scmp.eq.s32.totalorder %s12, 0
      %p72 = por %p70, %p71
      %p73 = scmp.ne.s32.totalorder %s62, %s65
      %p74 = scmp.eq.s32.totalorder %s17, 2
      %p75 = por %p73, %p74
      %p76 = scmp.ne.s32.totalorder %s65, %s66
      %p77 = scmp.eq.s32.totalorder %s17, 0
      %p78 = por %p76, %p77
      %p79 = scmp.ne.s32.totalorder %s65, %s66
      %p80 = scmp.eq.s32.totalorder %s18, 2
      %p81 = por %p79, %p80
      %p83 = scmp.ne.s32.totalorder %s66, %s82
      %p84 = scmp.eq.s32.totalorder %s18, 0
      %p85 = por %p83, %p84
      %s87 = sadd.s32 %s86, 1
      %p90 = scmp.eq.s32.totalorder %s12, 2
      %p91 = scmp.ne.s32.totalorder %s86, %s88
      %p92 = scmp.eq.s32.totalorder %s12, 0
      %p93 = por %p91, %p92
      %p94 = scmp.ne.s32.totalorder %s86, %s88
      %p95 = scmp.eq.s32.totalorder %s17, 2
      %p96 = por %p94, %p95
      %p97 = scmp.ne.s32.totalorder %s88, %s89
      %p98 = scmp.eq.s32.totalorder %s17, 0
      %p99 = por %p97, %p98
      %p100 = scmp.ne.s32.totalorder %s88, %s89
      %p101 = scmp.eq.s32.totalorder %s18, 2
      %p102 = por %p100, %p101
      %p104 = scmp.ne.s32.totalorder %s89, %s103
      %p105 = scmp.eq.s32.totalorder %s18, 0
      %p106 = por %p104, %p105
      %s107 = ssub.s32 %s19, %s31
      %p108 = scmp.eq.s32.totalorder %s107, 0
      %s110 = sadd.s32 %s109, 1
      %s111 = scalar_select %p108, %s109, %s110
      %p114 = pneg %p108
      %p115 = scmp.eq.s32.totalorder %s12, 2
      %p116 = por %p114, %p115
      %p117 = scmp.ne.s32.totalorder %s109, %s112
      %p118 = scmp.eq.s32.totalorder %s12, 0
      %p119 = por %p117, %p118
      %p120 = scmp.ne.s32.totalorder %s109, %s112
      %p121 = scmp.eq.s32.totalorder %s17, 2
      %p122 = por %p120, %p121
      %p123 = scmp.ne.s32.totalorder %s112, %s113
      %p124 = scmp.eq.s32.totalorder %s17, 0
      %p125 = por %p123, %p124
      %p126 = scmp.ne.s32.totalorder %s112, %s113
      %p127 = scmp.eq.s32.totalorder %s18, 2
      %p128 = por %p126, %p127
      %p130 = scmp.ne.s32.totalorder %s113, %s129
      %p131 = scmp.eq.s32.totalorder %s18, 0
      %p132 = por %p130, %p131
      %s134 = sadd.s32 %s133, 1
      %p137 = scmp.eq.s32.totalorder %s12, 2
      %p138 = scmp.ne.s32.totalorder %s133, %s135
      %p139 = scmp.eq.s32.totalorder %s12, 0
      %p140 = por %p138, %p139
      %p141 = scmp.ne.s32.totalorder %s133, %s135
      %p142 = scmp.eq.s32.totalorder %s17, 2
      %p143 = por %p141, %p142
      %p144 = scmp.ne.s32.totalorder %s135, %s136
      %p145 = scmp.eq.s32.totalorder %s17, 0
      %p146 = por %p144, %p145
      %p147 = scmp.ne.s32.totalorder %s135, %s136
      %p148 = scmp.eq.s32.totalorder %s18, 2
      %p149 = por %p147, %p148
      %p151 = scmp.ne.s32.totalorder %s136, %s150
      %p152 = scmp.eq.s32.totalorder %s18, 0
      %p153 = por %p151, %p152
      %s155 = sadd.s32 %s154, 1
      %p158 = scmp.eq.s32.totalorder %s12, 2
      %p159 = scmp.ne.s32.totalorder %s154, %s156
      %p160 = scmp.eq.s32.totalorder %s12, 0
      %p161 = por %p159, %p160
      %p162 = scmp.ne.s32.totalorder %s154, %s156
      %p163 = scmp.eq.s32.totalorder %s17, 2
      %p164 = por %p162, %p163
      %p165 = scmp.ne.s32.totalorder %s156, %s157
      %p166 = scmp.eq.s32.totalorder %s17, 0
      %p167 = por %p165, %p166
      %p168 = scmp.ne.s32.totalorder %s156, %s157
      %p169 = scmp.eq.s32.totalorder %s18, 2
      %p170 = por %p168, %p169
      %p172 = scmp.ne.s32.totalorder %s157, %s171
      %p173 = scmp.eq.s32.totalorder %s18, 0
      %p174 = por %p172, %p173
      %s175 = ssub.s32 %s19, %s31
      %p176 = scmp.eq.s32.totalorder %s175, 0
      %s178 = sadd.s32 %s177, 1
      %s179 = scalar_select %p176, %s177, %s178
      %p182 = pneg %p176
      %p183 = scmp.eq.s32.totalorder %s12, 2
      %p184 = por %p182, %p183
      %p185 = scmp.ne.s32.totalorder %s177, %s180
      %p186 = scmp.eq.s32.totalorder %s12, 0
      %p187 = por %p185, %p186
      %p188 = scmp.ne.s32.totalorder %s177, %s180
      %p189 = scmp.eq.s32.totalorder %s17, 2
      %p190 = por %p188, %p189
      %p191 = scmp.ne.s32.totalorder %s180, %s181
      %p192 = scmp.eq.s32.totalorder %s17, 0
      %p193 = por %p191, %p192
      %p194 = scmp.ne.s32.totalorder %s180, %s181
      %p195 = scmp.eq.s32.totalorder %s18, 2
      %p196 = por %p194, %p195
      %p198 = scmp.ne.s32.totalorder %s181, %s197
      %p199 = scmp.eq.s32.totalorder %s18, 0
      %p200 = por %p198, %p199
      %p201 = scmp.le.s32.totalorder 1, %s12
      %p202 = scmp.lt.s32.totalorder %s12, 4
      %p203 = pnand %p201, %p202
      %p204 = pneg %p203
      // Predicated region
      $region9: #{bert_forward.14} parent=5 // pred_check
        _
      $region10: #{bert_forward.14} parent=5 // pred_check_branch
        %206 = sbr.rel (%p203) target = $region12
      $region11: #{bert_forward.14} parent=5 // pred_region
        %s207 = ssub.s32 %s12, 1
        // Predicated region
        $region13: #{bert_forward.14} parent=11 // pred_check
          %p208 = pneg %p99
        $region14: #{bert_forward.14} parent=11 // pred_check_branch
          %210 = sbr.rel (%p208) target = $region16
        $region15: #{bert_forward.14} parent=11 // pred_region
          _
        $region16: #{bert_forward.14} parent=11 // pred_fallthru
          _
        // Predicated region
        $region17: #{bert_forward.14} parent=11 // pred_check
          %p211 = pneg %p125
        $region18: #{bert_forward.14} parent=11 // pred_check_branch
          %213 = sbr.rel (%p211) target = $region20
        $region19: #{bert_forward.14} parent=11 // pred_region
          %s214 = smul.u32 2, %s21
          %p215 = scmp.lt.s32.totalorder %s214, 1
          %s216 = scalar_select %p215, %s214, 1
          %s217 = smul.addr %s216, 6
          %s218 = smul.addr %s217, 4
          %s219 = scalar_lea.vmem %s3, %s218
          %s220 = smul.u32 2, %s21
        $region20: #{bert_forward.14} parent=11 // pred_fallthru
          _
        // Predicated region
        $region21: #{bert_forward.14} parent=11 // pred_check
          %p221 = pneg %p146
        $region22: #{bert_forward.14} parent=11 // pred_check_branch
          %223 = sbr.rel (%p221) target = $region24
        $region23: #{bert_forward.14} parent=11 // pred_region
          _
        $region24: #{bert_forward.14} parent=11 // pred_fallthru
          _
        // Predicated region
        $region25: #{bert_forward.14} parent=11 // pred_check
          %p224 = pneg %p167
        $region26: #{bert_forward.14} parent=11 // pred_check_branch
          %226 = sbr.rel (%p224) target = $region28
        $region27: #{bert_forward.14} parent=11 // pred_region
          _
        $region28: #{bert_forward.14} parent=11 // pred_fallthru
          _
      $region12: #{bert_forward.14} parent=5 // pred_fallthru
        _
      %p227 = scmp.lt.s32.totalorder %s12, 3
      // Predicated region
      $region29: #{bert_forward.14} parent=5 // pred_check
        %p228 = pneg %p227
      $region30: #{bert_forward.14} parent=5 // pred_check_branch
        %230 = sbr.rel (%p228) target = $region32
      $region31: #{bert_forward.14} parent=5 // pred_region
        // Predicated region
        $region33: #{bert_forward.14} parent=31 // pred_check
          %p231 = pneg %p46
        $region34: #{bert_forward.14} parent=31 // pred_check_branch
          %233 = sbr.rel (%p231) target = $region36
        $region35: #{bert_forward.14} parent=31 // pred_region
          %s234 = sand.u32 %s36, 1
          %s235 = sand.u32 %s36, 1
          %s236 = smul.addr %s235, 16
          %s237 = scalar_lea.vmem [#allocation3], %s236
          %s238 = smul.u32 2, %s19
          %s239 = smul.u32 2, %s20
          %s240 = smul.addr %s238, 6
          %s241 = sadd.s32 %s239, %s240
          %s242 = smul.addr %s241, 4
          %s243 = scalar_lea.vmem %s0, %s242
          // Predicated region
          $region37: #{bert_forward.14} parent=35 // pred_check
            _
          $region38: #{bert_forward.14} parent=35 // pred_check_branch
            %245 = sbr.rel (0) target = $region40
          $region39: #{bert_forward.14} parent=35 // pred_region
            // Predicated region
            $region41: #{bert_forward.14} parent=39 // pred_check
              _
            $region42: #{bert_forward.14} parent=39 // pred_check_branch
              %247 = sbr.rel (0) target = $region44
            $region43: #{bert_forward.14} parent=39 // pred_region
              // Predicated region
              $region56: #{bert_forward.14} parent=43 // pred_check
                _
              $region57: #{bert_forward.14} parent=43 // pred_check_branch
                %264 = sbr.rel (0) target = $region59
              $region58: #{bert_forward.14} parent=43 // pred_region
                loop: start=0, step=1, limit=1
                $region60: #{bert_forward.14} parent=58 // loop_pre_header
                  _
                $region61: #{bert_forward.14} parent=58 // loop_header
                  %s266 = sphi 0, %s270
                  %p267 = scmp.ge.s32.totalorder %s266, 1
                  %s271 = sphi %s243, %s243
                  %s272 = sphi %s237, %s237
                $region62: #{bert_forward.14} parent=58 // loop_header_branch
                  %269 = sbr.rel (%p267) target = $region66
                $region63: #{bert_forward.14} parent=58 // loop_body
                  %v273 = vld [vmem:[%s271] sm:$0xff]
                  %274 = vst [vmem:[%s272] sm:$0xff] %v273
                  %v275 = vld [vmem:[%s271 + $0x18] sm:$0xff]
                  %276 = vst [vmem:[%s272 + $0x8] sm:$0xff] %v275
                $region64: #{bert_forward.14} parent=58 // loop_footer
                  %s270 = sadd.s32 1, %s266
                $region65: #{bert_forward.14} parent=58 // loop_footer_branch
                  %265 = sbr.rel target = $region61
                $region66: #{bert_forward.14} parent=58 // loop_exit
                  _
              $region59: #{bert_forward.14} parent=43 // pred_fallthru
                _
              // Predicated region
              $region67: #{bert_forward.14} parent=43 // pred_check
                _
              $region68: #{bert_forward.14} parent=43 // pred_check_branch
                %278 = sbr.rel target = $region70
              $region69: #{bert_forward.14} parent=43 // pred_region
                _
              $region70: #{bert_forward.14} parent=43 // pred_fallthru
                _
            $region44: #{bert_forward.14} parent=39 // pred_fallthru
              _
            // Predicated region
            $region45: #{bert_forward.14} parent=39 // pred_check
              _
            $region46: #{bert_forward.14} parent=39 // pred_check_branch
              %249 = sbr.rel target = $region48
            $region47: #{bert_forward.14} parent=39 // pred_region
              loop: start=0, step=1, limit=1
              $region49: #{bert_forward.14} parent=47 // loop_pre_header
                _
              $region50: #{bert_forward.14} parent=47 // loop_header
                %s252 = sphi 0, %s256
                %p253 = scmp.ge.s32.totalorder %s252, 1
                %s257 = sphi %s243, %s243
                %s258 = sphi %s237, %s237
              $region51: #{bert_forward.14} parent=47 // loop_header_branch
                %255 = sbr.rel (%p253) target = $region55
              $region52: #{bert_forward.14} parent=47 // loop_body
                %v259 = vld [vmem:[%s257] sm:$0xff]
                %260 = vst [vmem:[%s258] sm:$0xff] %v259
                %v261 = vld [vmem:[%s257 + $0x18] sm:$0xff]
                %262 = vst [vmem:[%s258 + $0x8] sm:$0xff] %v261
              $region53: #{bert_forward.14} parent=47 // loop_footer
                %s256 = sadd.s32 1, %s252
              $region54: #{bert_forward.14} parent=47 // loop_footer_branch
                %251 = sbr.rel target = $region50
              $region55: #{bert_forward.14} parent=47 // loop_exit
                _
            $region48: #{bert_forward.14} parent=39 // pred_fallthru
              _
          $region40: #{bert_forward.14} parent=35 // pred_fallthru
            _
          %279 = vnop
        $region36: #{bert_forward.14} parent=31 // pred_fallthru
          _
        // Predicated region
        $region71: #{bert_forward.14} parent=31 // pred_check
          %p280 = pneg %p72
        $region72: #{bert_forward.14} parent=31 // pred_check_branch
          %282 = sbr.rel (%p280) target = $region74
        $region73: #{bert_forward.14} parent=31 // pred_region
          %s283 = smul.u32 32, %s20
          %p284 = scmp.lt.s32.totalorder %s283, 95
          %s285 = scalar_select %p284, %s283, 95
          %s286 = smul.addr %s285, 6
          %s287 = smul.addr %s286, 4
          %s288 = scalar_lea.vmem %s1, %s287
          %s289 = smul.u32 32, %s20
        $region74: #{bert_forward.14} parent=31 // pred_fallthru
          _
      $region32: #{bert_forward.14} parent=5 // pred_fallthru
        _
      %p290 = scmp.le.s32.totalorder 1, %s12
      %p291 = scmp.lt.s32.totalorder %s12, 4
      %p292 = pnand %p290, %p291
      %p293 = pneg %p292
      // Predicated region
      $region75: #{bert_forward.14} parent=5 // pred_check
        _
      $region76: #{bert_forward.14} parent=5 // pred_check_branch
        %295 = sbr.rel (%p292) target = $region78
      $region77: #{bert_forward.14} parent=5 // pred_region
        %s296 = ssub.s32 %s12, 1
        %s297 = sand.u32 %s39, 1
        %s298 = sand.u32 %s39, 1
        %s299 = smul.addr %s298, 16
        %s300 = scalar_lea.vmem [#allocation3], %s299
        // Predicated region
        $region79: #{bert_forward.14} parent=77 // pred_check
          %p301 = pneg %p52
        $region80: #{bert_forward.14} parent=77 // pred_check_branch
          %303 = sbr.rel (%p301) target = $region82
        $region81: #{bert_forward.14} parent=77 // pred_region
          _
        $region82: #{bert_forward.14} parent=77 // pred_fallthru
          _
        %s304 = sand.u32 %s39, 1
        %s305 = sand.u32 %s39, 1
        %s306 = smul.addr %s305, 16
        %s307 = scalar_lea.vmem [#allocation3], %s306
        %p308 = pneg %p52
        %p309 = pneg %p49
        %s310 = smul.u32 32, %s22
        %p311 = scmp.lt.s32.totalorder %s310, 95
        %s312 = scalar_select %p311, %s310, 95
        %s313 = smul.addr %s312, 6
        %s314 = smul.addr %s313, 4
        %s315 = scalar_lea.vmem %s1, %s314
        %p316 = pneg %p78
        %p317 = pneg %p75
        %p318 = pneg %p99
        %p319 = pneg %p96
        %s320 = smul.u32 2, %s21
        %p321 = scmp.lt.s32.totalorder %s320, 1
        %s322 = scalar_select %p321, %s320, 1
        %s323 = smul.addr %s322, 6
        %s324 = smul.addr %s323, 4
        %s325 = scalar_lea.vmem %s3, %s324
        %p326 = pneg %p125
        %p327 = pneg %p122
        %p328 = pneg %p146
        %p329 = pneg %p143
        %p330 = pneg %p167
        %p331 = pneg %p164
        %p332 = pneg %p193
        %p333 = pneg %p190
        %s334 = smul.u32 2, %s21
        %p335 = scmp.lt.s32.totalorder %s334, 1
        %s336 = scalar_select %p335, %s334, 1
        %s337 = smul.addr %s336, 6
        %s338 = smul.addr %s337, 4
        %s339 = scalar_lea.vmem %s6, %s338
        %s340 = smul.u32 2, %s21
        %s341 = smul.u32 2, %s22
        %s342 = smul.u32 32, %s22
        %p343 = scmp.lt.s32.totalorder %s342, 95
        %s344 = scalar_select %p343, %s342, 95
        %s345 = smul.addr %s344, 6
        %s346 = smul.addr %s345, 4
        %s347 = scalar_lea.vmem %s1, %s346
        %s348 = smul.u32 32, %s22
        %s349 = smul.u32 2, %s21
        %p350 = scmp.lt.s32.totalorder %s349, 1
        %s351 = scalar_select %p350, %s349, 1
        %s352 = smul.addr %s351, 6
        %s353 = smul.addr %s352, 4
        %s354 = scalar_lea.vmem %s3, %s353
        %s355 = smul.u32 2, %s21
        %s356 = smul.u32 2, %s21
        %p357 = scmp.lt.s32.totalorder %s356, 1
        %s358 = scalar_select %p357, %s356, 1
        %s359 = smul.addr %s358, 6
        %s360 = smul.addr %s359, 4
        %s361 = scalar_lea.vmem %s6, %s360
        %s362 = smul.u32 2, %s21
        %p363 = scmp.eq.s32.totalorder %s22, 0
        // Predicated region
        $region83: #{bert_forward.14} parent=77 // pred_check
          %p364 = pneg %p363
        $region84: #{bert_forward.14} parent=77 // pred_check_branch
          %366 = sbr.rel (%p364) target = $region86
        $region85: #{bert_forward.14} parent=77 // pred_region
          %367 = vst [vmem:[#allocation2] sm:$0xff] 0.0
          %368 = vst [vmem:[#allocation2 + $0x8] sm:$0xff] 0.0
          %369 = vst [vmem:[#allocation2 + $0x10] sm:$0xff] 0.0
          %370 = vst [vmem:[#allocation2 + $0x18] sm:$0xff] 0.0
          %371 = vst [vmem:[#allocation2 + $0x20] sm:$0xff] 0.0
          %372 = vst [vmem:[#allocation2 + $0x28] sm:$0xff] 0.0
          %373 = vst [vmem:[#allocation2 + $0x30] sm:$0xff] 0.0
          %374 = vst [vmem:[#allocation2 + $0x38] sm:$0xff] 0.0
          %375 = vst [vmem:[#allocation2 + $0x40] sm:$0xff] 0.0
          %376 = vst [vmem:[#allocation2 + $0x48] sm:$0xff] 0.0
          %377 = vst [vmem:[#allocation2 + $0x50] sm:$0xff] 0.0
          %378 = vst [vmem:[#allocation2 + $0x58] sm:$0xff] 0.0
        $region86: #{bert_forward.14} parent=77 // pred_fallthru
          _
        %v379 = vld [vmem:[#allocation2] sm:$0xff]
        %v380 = vld [vmem:[#allocation2 + $0x8] sm:$0xff]
        %v381 = vld [vmem:[#allocation2 + $0x10] sm:$0xff]
        %v382 = vld [vmem:[#allocation2 + $0x18] sm:$0xff]
        %v383 = vld [vmem:[#allocation2 + $0x20] sm:$0xff]
        %v384 = vld [vmem:[#allocation2 + $0x28] sm:$0xff]
        %v385 = vld [vmem:[#allocation2 + $0x30] sm:$0xff]
        %v386 = vld [vmem:[#allocation2 + $0x38] sm:$0xff]
        %v387 = vld [vmem:[#allocation2 + $0x40] sm:$0xff]
        %v388 = vld [vmem:[#allocation2 + $0x48] sm:$0xff]
        %v389 = vld [vmem:[#allocation2 + $0x50] sm:$0xff]
        %v390 = vld [vmem:[#allocation2 + $0x58] sm:$0xff]
        %v391 = vld [vmem:[%s300] sm:$0xff]
        %v392 = vld [vmem:[%s300 + $0x8] sm:$0xff]
        %v393 = vld [vmem:[%s347] sm:$0xff]
        %v394 = vld [vmem:[%s347 + $0x8] sm:$0xff]
        %v395 = vld [vmem:[%s347 + $0x10] sm:$0xff]
        %v396 = vld [vmem:[%s347 + $0x18] sm:$0xff]
        %v397 = vld [vmem:[%s347 + $0x20] sm:$0xff]
        %v398 = vld [vmem:[%s347 + $0x28] sm:$0xff]
        %v399 = vld [vmem:[%s347 + $0x30] sm:$0xff]
        %v400 = vld [vmem:[%s347 + $0x38] sm:$0xff]
        %v401 = vld [vmem:[%s347 + $0x40] sm:$0xff]
        %v402 = vld [vmem:[%s347 + $0x48] sm:$0xff]
        %v403 = vld [vmem:[%s347 + $0x50] sm:$0xff]
        %v404 = vld [vmem:[%s347 + $0x58] sm:$0xff]
        %v405 = vld [vmem:[%s347 + $0x60] sm:$0xff]
        %v406 = vld [vmem:[%s347 + $0x68] sm:$0xff]
        %v407 = vld [vmem:[%s347 + $0x70] sm:$0xff]
        %v408 = vld [vmem:[%s347 + $0x78] sm:$0xff]
        %v409 = vld [vmem:[%s347 + $0x80] sm:$0xff]
        %v410 = vld [vmem:[%s347 + $0x88] sm:$0xff]
        %v411 = vld [vmem:[%s347 + $0x90] sm:$0xff]
        %v412 = vld [vmem:[%s347 + $0x98] sm:$0xff]
        %v413 = vld [vmem:[%s347 + $0xa0] sm:$0xff]
        %v414 = vld [vmem:[%s347 + $0xa8] sm:$0xff]
        %v415 = vld [vmem:[%s347 + $0xb0] sm:$0xff]
        %v416 = vld [vmem:[%s347 + $0xb8] sm:$0xff]
        %v417 = vld [vmem:[%s347 + $0xc0] sm:$0xff]
        %v418 = vld [vmem:[%s347 + $0xc8] sm:$0xff]
        %v419 = vld [vmem:[%s347 + $0xd0] sm:$0xff]
        %v420 = vld [vmem:[%s347 + $0xd8] sm:$0xff]
        %v421 = vld [vmem:[%s347 + $0xe0] sm:$0xff]
        %v422 = vld [vmem:[%s347 + $0xe8] sm:$0xff]
        %v423 = vld [vmem:[%s347 + $0xf0] sm:$0xff]
        %v424 = vld [vmem:[%s347 + $0xf8] sm:$0xff]
        %v425 = vld [vmem:[%s347 + $0x100] sm:$0xff]
        %v426 = vld [vmem:[%s347 + $0x108] sm:$0xff]
        %v427 = vld [vmem:[%s347 + $0x110] sm:$0xff]
        %v428 = vld [vmem:[%s347 + $0x118] sm:$0xff]
        %v429 = vld [vmem:[%s347 + $0x120] sm:$0xff]
        %v430 = vld [vmem:[%s347 + $0x128] sm:$0xff]
        %v431 = vld [vmem:[%s347 + $0x130] sm:$0xff]
        %v432 = vld [vmem:[%s347 + $0x138] sm:$0xff]
        %v433 = vld [vmem:[%s347 + $0x140] sm:$0xff]
        %v434 = vld [vmem:[%s347 + $0x148] sm:$0xff]
        %v435 = vld [vmem:[%s347 + $0x150] sm:$0xff]
        %v436 = vld [vmem:[%s347 + $0x158] sm:$0xff]
        %v437 = vld [vmem:[%s347 + $0x160] sm:$0xff]
        %v438 = vld [vmem:[%s347 + $0x168] sm:$0xff]
        %v439 = vld [vmem:[%s347 + $0x170] sm:$0xff]
        %v440 = vld [vmem:[%s347 + $0x178] sm:$0xff]
        %v441 = vld [vmem:[%s347 + $0x180] sm:$0xff]
        %v442 = vld [vmem:[%s347 + $0x188] sm:$0xff]
        %v443 = vld [vmem:[%s347 + $0x190] sm:$0xff]
        %v444 = vld [vmem:[%s347 + $0x198] sm:$0xff]
        %v445 = vld [vmem:[%s347 + $0x1a0] sm:$0xff]
        %v446 = vld [vmem:[%s347 + $0x1a8] sm:$0xff]
        %v447 = vld [vmem:[%s347 + $0x1b0] sm:$0xff]
        %v448 = vld [vmem:[%s347 + $0x1b8] sm:$0xff]
        %v449 = vld [vmem:[%s347 + $0x1c0] sm:$0xff]
        %v450 = vld [vmem:[%s347 + $0x1c8] sm:$0xff]
        %v451 = vld [vmem:[%s347 + $0x1d0] sm:$0xff]
        %v452 = vld [vmem:[%s347 + $0x1d8] sm:$0xff]
        %v453 = vld [vmem:[%s347 + $0x1e0] sm:$0xff]
        %v454 = vld [vmem:[%s347 + $0x1e8] sm:$0xff]
        %v455 = vld [vmem:[%s347 + $0x1f0] sm:$0xff]
        %v456 = vld [vmem:[%s347 + $0x1f8] sm:$0xff]
        %v457 = vld [vmem:[%s347 + $0x200] sm:$0xff]
        %v458 = vld [vmem:[%s347 + $0x208] sm:$0xff]
        %v459 = vld [vmem:[%s347 + $0x210] sm:$0xff]
        %v460 = vld [vmem:[%s347 + $0x218] sm:$0xff]
        %v461 = vld [vmem:[%s347 + $0x220] sm:$0xff]
        %v462 = vld [vmem:[%s347 + $0x228] sm:$0xff]
        %v463 = vld [vmem:[%s347 + $0x230] sm:$0xff]
        %v464 = vld [vmem:[%s347 + $0x238] sm:$0xff]
        %v465 = vld [vmem:[%s347 + $0x240] sm:$0xff]
        %v466 = vld [vmem:[%s347 + $0x248] sm:$0xff]
        %v467 = vld [vmem:[%s347 + $0x250] sm:$0xff]
        %v468 = vld [vmem:[%s347 + $0x258] sm:$0xff]
        %v469 = vld [vmem:[%s347 + $0x260] sm:$0xff]
        %v470 = vld [vmem:[%s347 + $0x268] sm:$0xff]
        %v471 = vld [vmem:[%s347 + $0x270] sm:$0xff]
        %v472 = vld [vmem:[%s347 + $0x278] sm:$0xff]
        %v473 = vld [vmem:[%s347 + $0x280] sm:$0xff]
        %v474 = vld [vmem:[%s347 + $0x288] sm:$0xff]
        %v475 = vld [vmem:[%s347 + $0x290] sm:$0xff]
        %v476 = vld [vmem:[%s347 + $0x298] sm:$0xff]
        %v477 = vld [vmem:[%s347 + $0x2a0] sm:$0xff]
        %v478 = vld [vmem:[%s347 + $0x2a8] sm:$0xff]
        %v479 = vld [vmem:[%s347 + $0x2b0] sm:$0xff]
        %v480 = vld [vmem:[%s347 + $0x2b8] sm:$0xff]
        %v481 = vld [vmem:[%s347 + $0x2c0] sm:$0xff]
        %v482 = vld [vmem:[%s347 + $0x2c8] sm:$0xff]
        %v483 = vld [vmem:[%s347 + $0x2d0] sm:$0xff]
        %v484 = vld [vmem:[%s347 + $0x2d8] sm:$0xff]
        %v485 = vld [vmem:[%s347 + $0x2e0] sm:$0xff]
        %v486 = vld [vmem:[%s347 + $0x2e8] sm:$0xff]
        %v487 = vld [vmem:[%s347 + $0x2f0] sm:$0xff]
        %v488 = vld [vmem:[%s347 + $0x2f8] sm:$0xff]
        %v491 = vunpack.c.l.b16 %v391
        %v492 = vunpack.c.h.b16 %v391
        %v493 = vunpack.c.l.b16 %v392
        %v494 = vunpack.c.h.b16 %v392
        %v495 = vpack.c.b16 %v493, %v491
        %v496 = vpack.c.b16 %v494, %v492
        %v595 = vunpack.c.l.b16 %v393
        %v596 = vunpack.c.h.b16 %v393
        %v597 = vunpack.c.l.b16 %v394
        %v598 = vunpack.c.h.b16 %v394
        %v599 = vunpack.c.l.b16 %v395
        %v600 = vunpack.c.h.b16 %v395
        %v601 = vunpack.c.l.b16 %v396
        %v602 = vunpack.c.h.b16 %v396
        %v603 = vunpack.c.l.b16 %v397
        %v604 = vunpack.c.h.b16 %v397
        %v605 = vunpack.c.l.b16 %v398
        %v606 = vunpack.c.h.b16 %v398
        %v607 = vunpack.c.l.b16 %v399
        %v608 = vunpack.c.h.b16 %v399
        %v609 = vunpack.c.l.b16 %v400
        %v610 = vunpack.c.h.b16 %v400
        %v611 = vunpack.c.l.b16 %v401
        %v612 = vunpack.c.h.b16 %v401
        %v613 = vunpack.c.l.b16 %v402
        %v614 = vunpack.c.h.b16 %v402
        %v615 = vunpack.c.l.b16 %v403
        %v616 = vunpack.c.h.b16 %v403
        %v617 = vunpack.c.l.b16 %v404
        %v618 = vunpack.c.h.b16 %v404
        %v619 = vunpack.c.l.b16 %v405
        %v620 = vunpack.c.h.b16 %v405
        %v621 = vunpack.c.l.b16 %v406
        %v622 = vunpack.c.h.b16 %v406
        %v623 = vunpack.c.l.b16 %v407
        %v624 = vunpack.c.h.b16 %v407
        %v625 = vunpack.c.l.b16 %v408
        %v626 = vunpack.c.h.b16 %v408
        %v627 = vunpack.c.l.b16 %v409
        %v628 = vunpack.c.h.b16 %v409
        %v629 = vunpack.c.l.b16 %v410
        %v630 = vunpack.c.h.b16 %v410
        %v631 = vunpack.c.l.b16 %v411
        %v632 = vunpack.c.h.b16 %v411
        %v633 = vunpack.c.l.b16 %v412
        %v634 = vunpack.c.h.b16 %v412
        %v635 = vunpack.c.l.b16 %v413
        %v636 = vunpack.c.h.b16 %v413
        %v637 = vunpack.c.l.b16 %v414
        %v638 = vunpack.c.h.b16 %v414
        %v639 = vunpack.c.l.b16 %v415
        %v640 = vunpack.c.h.b16 %v415
        %v641 = vunpack.c.l.b16 %v416
        %v642 = vunpack.c.h.b16 %v416
        %v643 = vunpack.c.l.b16 %v417
        %v644 = vunpack.c.h.b16 %v417
        %v645 = vunpack.c.l.b16 %v418
        %v646 = vunpack.c.h.b16 %v418
        %v647 = vunpack.c.l.b16 %v419
        %v648 = vunpack.c.h.b16 %v419
        %v649 = vunpack.c.l.b16 %v420
        %v650 = vunpack.c.h.b16 %v420
        %v651 = vunpack.c.l.b16 %v421
        %v652 = vunpack.c.h.b16 %v421
        %v653 = vunpack.c.l.b16 %v422
        %v654 = vunpack.c.h.b16 %v422
        %v655 = vunpack.c.l.b16 %v423
        %v656 = vunpack.c.h.b16 %v423
        %v657 = vunpack.c.l.b16 %v424
        %v658 = vunpack.c.h.b16 %v424
        %v659 = vunpack.c.l.b16 %v425
        %v660 = vunpack.c.h.b16 %v425
        %v661 = vunpack.c.l.b16 %v426
        %v662 = vunpack.c.h.b16 %v426
        %v663 = vunpack.c.l.b16 %v427
        %v664 = vunpack.c.h.b16 %v427
        %v665 = vunpack.c.l.b16 %v428
        %v666 = vunpack.c.h.b16 %v428
        %v667 = vunpack.c.l.b16 %v429
        %v668 = vunpack.c.h.b16 %v429
        %v669 = vunpack.c.l.b16 %v430
        %v670 = vunpack.c.h.b16 %v430
        %v671 = vunpack.c.l.b16 %v431
        %v672 = vunpack.c.h.b16 %v431
        %v673 = vunpack.c.l.b16 %v432
        %v674 = vunpack.c.h.b16 %v432
        %v675 = vunpack.c.l.b16 %v433
        %v676 = vunpack.c.h.b16 %v433
        %v677 = vunpack.c.l.b16 %v434
        %v678 = vunpack.c.h.b16 %v434
        %v679 = vunpack.c.l.b16 %v435
        %v680 = vunpack.c.h.b16 %v435
        %v681 = vunpack.c.l.b16 %v436
        %v682 = vunpack.c.h.b16 %v436
        %v683 = vunpack.c.l.b16 %v437
        %v684 = vunpack.c.h.b16 %v437
        %v685 = vunpack.c.l.b16 %v438
        %v686 = vunpack.c.h.b16 %v438
        %v687 = vunpack.c.l.b16 %v439
        %v688 = vunpack.c.h.b16 %v439
        %v689 = vunpack.c.l.b16 %v440
        %v690 = vunpack.c.h.b16 %v440
        %v691 = vunpack.c.l.b16 %v441
        %v692 = vunpack.c.h.b16 %v441
        %v693 = vunpack.c.l.b16 %v442
        %v694 = vunpack.c.h.b16 %v442
        %v695 = vunpack.c.l.b16 %v443
        %v696 = vunpack.c.h.b16 %v443
        %v697 = vunpack.c.l.b16 %v444
        %v698 = vunpack.c.h.b16 %v444
        %v699 = vunpack.c.l.b16 %v445
        %v700 = vunpack.c.h.b16 %v445
        %v701 = vunpack.c.l.b16 %v446
        %v702 = vunpack.c.h.b16 %v446
        %v703 = vunpack.c.l.b16 %v447
        %v704 = vunpack.c.h.b16 %v447
        %v705 = vunpack.c.l.b16 %v448
        %v706 = vunpack.c.h.b16 %v448
        %v707 = vunpack.c.l.b16 %v449
        %v708 = vunpack.c.h.b16 %v449
        %v709 = vunpack.c.l.b16 %v450
        %v710 = vunpack.c.h.b16 %v450
        %v711 = vunpack.c.l.b16 %v451
        %v712 = vunpack.c.h.b16 %v451
        %v713 = vunpack.c.l.b16 %v452
        %v714 = vunpack.c.h.b16 %v452
        %v715 = vunpack.c.l.b16 %v453
        %v716 = vunpack.c.h.b16 %v453
        %v717 = vunpack.c.l.b16 %v454
        %v718 = vunpack.c.h.b16 %v454
        %v719 = vunpack.c.l.b16 %v455
        %v720 = vunpack.c.h.b16 %v455
        %v721 = vunpack.c.l.b16 %v456
        %v722 = vunpack.c.h.b16 %v456
        %v723 = vunpack.c.l.b16 %v457
        %v724 = vunpack.c.h.b16 %v457
        %v725 = vunpack.c.l.b16 %v458
        %v726 = vunpack.c.h.b16 %v458
        %v727 = vunpack.c.l.b16 %v459
        %v728 = vunpack.c.h.b16 %v459
        %v729 = vunpack.c.l.b16 %v460
        %v730 = vunpack.c.h.b16 %v460
        %v731 = vunpack.c.l.b16 %v461
        %v732 = vunpack.c.h.b16 %v461
        %v733 = vunpack.c.l.b16 %v462
        %v734 = vunpack.c.h.b16 %v462
        %v735 = vunpack.c.l.b16 %v463
        %v736 = vunpack.c.h.b16 %v463
        %v737 = vunpack.c.l.b16 %v464
        %v738 = vunpack.c.h.b16 %v464
        %v739 = vunpack.c.l.b16 %v465
        %v740 = vunpack.c.h.b16 %v465
        %v741 = vunpack.c.l.b16 %v466
        %v742 = vunpack.c.h.b16 %v466
        %v743 = vunpack.c.l.b16 %v467
        %v744 = vunpack.c.h.b16 %v467
        %v745 = vunpack.c.l.b16 %v468
        %v746 = vunpack.c.h.b16 %v468
        %v747 = vunpack.c.l.b16 %v469
        %v748 = vunpack.c.h.b16 %v469
        %v749 = vunpack.c.l.b16 %v470
        %v750 = vunpack.c.h.b16 %v470
        %v751 = vunpack.c.l.b16 %v471
        %v752 = vunpack.c.h.b16 %v471
        %v753 = vunpack.c.l.b16 %v472
        %v754 = vunpack.c.h.b16 %v472
        %v755 = vunpack.c.l.b16 %v473
        %v756 = vunpack.c.h.b16 %v473
        %v757 = vunpack.c.l.b16 %v474
        %v758 = vunpack.c.h.b16 %v474
        %v759 = vunpack.c.l.b16 %v475
        %v760 = vunpack.c.h.b16 %v475
        %v761 = vunpack.c.l.b16 %v476
        %v762 = vunpack.c.h.b16 %v476
        %v763 = vunpack.c.l.b16 %v477
        %v764 = vunpack.c.h.b16 %v477
        %v765 = vunpack.c.l.b16 %v478
        %v766 = vunpack.c.h.b16 %v478
        %v767 = vunpack.c.l.b16 %v479
        %v768 = vunpack.c.h.b16 %v479
        %v769 = vunpack.c.l.b16 %v480
        %v770 = vunpack.c.h.b16 %v480
        %v771 = vunpack.c.l.b16 %v481
        %v772 = vunpack.c.h.b16 %v481
        %v773 = vunpack.c.l.b16 %v482
        %v774 = vunpack.c.h.b16 %v482
        %v775 = vunpack.c.l.b16 %v483
        %v776 = vunpack.c.h.b16 %v483
        %v777 = vunpack.c.l.b16 %v484
        %v778 = vunpack.c.h.b16 %v484
        %v779 = vunpack.c.l.b16 %v485
        %v780 = vunpack.c.h.b16 %v485
        %v781 = vunpack.c.l.b16 %v486
        %v782 = vunpack.c.h.b16 %v486
        %v783 = vunpack.c.l.b16 %v487
        %v784 = vunpack.c.h.b16 %v487
        %v785 = vunpack.c.l.b16 %v488
        %v786 = vunpack.c.h.b16 %v488
        %v787 = vpack.c.b16 %v601, %v595
        %v788 = vpack.c.b16 %v602, %v596
        %v789 = vpack.c.b16 %v603, %v597
        %v790 = vpack.c.b16 %v604, %v598
        %v791 = vpack.c.b16 %v605, %v599
        %v792 = vpack.c.b16 %v606, %v600
        %v793 = vpack.c.b16 %v613, %v607
        %v794 = vpack.c.b16 %v614, %v608
        %v795 = vpack.c.b16 %v615, %v609
        %v796 = vpack.c.b16 %v616, %v610
        %v797 = vpack.c.b16 %v617, %v611
        %v798 = vpack.c.b16 %v618, %v612
        %v799 = vpack.c.b16 %v625, %v619
        %v800 = vpack.c.b16 %v626, %v620
        %v801 = vpack.c.b16 %v627, %v621
        %v802 = vpack.c.b16 %v628, %v622
        %v803 = vpack.c.b16 %v629, %v623
        %v804 = vpack.c.b16 %v630, %v624
        %v805 = vpack.c.b16 %v637, %v631
        %v806 = vpack.c.b16 %v638, %v632
        %v807 = vpack.c.b16 %v639, %v633
        %v808 = vpack.c.b16 %v640, %v634
        %v809 = vpack.c.b16 %v641, %v635
        %v810 = vpack.c.b16 %v642, %v636
        %v811 = vpack.c.b16 %v649, %v643
        %v812 = vpack.c.b16 %v650, %v644
        %v813 = vpack.c.b16 %v651, %v645
        %v814 = vpack.c.b16 %v652, %v646
        %v815 = vpack.c.b16 %v653, %v647
        %v816 = vpack.c.b16 %v654, %v648
        %v817 = vpack.c.b16 %v661, %v655
        %v818 = vpack.c.b16 %v662, %v656
        %v819 = vpack.c.b16 %v663, %v657
        %v820 = vpack.c.b16 %v664, %v658
        %v821 = vpack.c.b16 %v665, %v659
        %v822 = vpack.c.b16 %v666, %v660
        %v823 = vpack.c.b16 %v673, %v667
        %v824 = vpack.c.b16 %v674, %v668
        %v825 = vpack.c.b16 %v675, %v669
        %v826 = vpack.c.b16 %v676, %v670
        %v827 = vpack.c.b16 %v677, %v671
        %v828 = vpack.c.b16 %v678, %v672
        %v829 = vpack.c.b16 %v685, %v679
        %v830 = vpack.c.b16 %v686, %v680
        %v831 = vpack.c.b16 %v687, %v681
        %v832 = vpack.c.b16 %v688, %v682
        %v833 = vpack.c.b16 %v689, %v683
        %v834 = vpack.c.b16 %v690, %v684
        %v835 = vpack.c.b16 %v697, %v691
        %v836 = vpack.c.b16 %v698, %v692
        %v837 = vpack.c.b16 %v699, %v693
        %v838 = vpack.c.b16 %v700, %v694
        %v839 = vpack.c.b16 %v701, %v695
        %v840 = vpack.c.b16 %v702, %v696
        %v841 = vpack.c.b16 %v709, %v703
        %v842 = vpack.c.b16 %v710, %v704
        %v843 = vpack.c.b16 %v711, %v705
        %v844 = vpack.c.b16 %v712, %v706
        %v845 = vpack.c.b16 %v713, %v707
        %v846 = vpack.c.b16 %v714, %v708
        %v847 = vpack.c.b16 %v721, %v715
        %v848 = vpack.c.b16 %v722, %v716
        %v849 = vpack.c.b16 %v723, %v717
        %v850 = vpack.c.b16 %v724, %v718
        %v851 = vpack.c.b16 %v725, %v719
        %v852 = vpack.c.b16 %v726, %v720
        %v853 = vpack.c.b16 %v733, %v727
        %v854 = vpack.c.b16 %v734, %v728
        %v855 = vpack.c.b16 %v735, %v729
        %v856 = vpack.c.b16 %v736, %v730
        %v857 = vpack.c.b16 %v737, %v731
        %v858 = vpack.c.b16 %v738, %v732
        %v859 = vpack.c.b16 %v745, %v739
        %v860 = vpack.c.b16 %v746, %v740
        %v861 = vpack.c.b16 %v747, %v741
        %v862 = vpack.c.b16 %v748, %v742
        %v863 = vpack.c.b16 %v749, %v743
        %v864 = vpack.c.b16 %v750, %v744
        %v865 = vpack.c.b16 %v757, %v751
        %v866 = vpack.c.b16 %v758, %v752
        %v867 = vpack.c.b16 %v759, %v753
        %v868 = vpack.c.b16 %v760, %v754
        %v869 = vpack.c.b16 %v761, %v755
        %v870 = vpack.c.b16 %v762, %v756
        %v871 = vpack.c.b16 %v769, %v763
        %v872 = vpack.c.b16 %v770, %v764
        %v873 = vpack.c.b16 %v771, %v765
        %v874 = vpack.c.b16 %v772, %v766
        %v875 = vpack.c.b16 %v773, %v767
        %v876 = vpack.c.b16 %v774, %v768
        %v877 = vpack.c.b16 %v781, %v775
        %v878 = vpack.c.b16 %v782, %v776
        %v879 = vpack.c.b16 %v783, %v777
        %v880 = vpack.c.b16 %v784, %v778
        %v881 = vpack.c.b16 %v785, %v779
        %v882 = vpack.c.b16 %v786, %v780
        %979 = vmatprep.subr.bf16.mxu0 %v788
        %980 = vmatpush1.bf16.msra.mxu0 %v787
        %981 = vmatprep.subr.bf16.mxu0 %v794
        %982 = vmatpush1.bf16.msra.mxu0 %v793
        %983 = vmatprep.subr.bf16.mxu0 %v800
        %984 = vmatpush1.bf16.msra.mxu0 %v799
        %985 = vmatprep.subr.bf16.mxu0 %v806
        %986 = vmatpush1.bf16.msra.mxu0 %v805
        %987 = vmatprep.subr.bf16.mxu0 %v812
        %988 = vmatpush1.bf16.msra.mxu0 %v811
        %989 = vmatprep.subr.bf16.mxu0 %v818
        %990 = vmatpush1.bf16.msra.mxu0 %v817
        %991 = vmatprep.subr.bf16.mxu0 %v824
        %992 = vmatpush1.bf16.msra.mxu0 %v823
        %993 = vmatprep.subr.bf16.mxu0 %v830
        %994 = vmatpush1.bf16.msra.mxu0 %v829
        %995 = vmatprep.subr.bf16.mxu0 %v836
        %996 = vmatpush1.bf16.msra.mxu0 %v835
        %997 = vmatprep.subr.bf16.mxu0 %v842
        %998 = vmatpush1.bf16.msra.mxu0 %v841
        %999 = vmatprep.subr.bf16.mxu0 %v848
        %1000 = vmatpush1.bf16.msra.mxu0 %v847
        %1001 = vmatprep.subr.bf16.mxu0 %v854
        %1002 = vmatpush1.bf16.msra.mxu0 %v853
        %1003 = vmatprep.subr.bf16.mxu0 %v860
        %1004 = vmatpush1.bf16.msra.mxu0 %v859
        %1005 = vmatprep.subr.bf16.mxu0 %v866
        %1006 = vmatpush1.bf16.msra.mxu0 %v865
        %1007 = vmatprep.subr.bf16.mxu0 %v872
        %1008 = vmatpush1.bf16.msra.mxu0 %v871
        %1009 = vmatprep.subr.bf16.mxu0 %v878
        %1010 = vmatpush1.bf16.msra.mxu0 %v877
        %1011 = vmatprep.mubr.bf16.mxu0 %v496
        %1012 = vmatmul.mubr.bf16.gmra.mrb[0].mxu0 %v495
        %v1013 = vpop.f32.mrb[0].mxu0
        %v1014 = vadd.f32 0.0, %v1013
        %v1015 = vpop.f32.mrb[0].mxu0
        %v1016 = vadd.f32 0.0, %v1015
        %v1017 = vpop.f32.mrb[0].mxu0
        %v1018 = vadd.f32 0.0, %v1017
        %v1019 = vpop.f32.mrb[0].mxu0
        %v1020 = vadd.f32 0.0, %v1019
        %1021 = vdwg.mxu0
        %1022 = vmatprep.subr.bf16.mxu0 %v790
        %1023 = vmatpush1.bf16.msra.mxu0 %v789
        %1024 = vmatprep.subr.bf16.mxu0 %v796
        %1025 = vmatpush1.bf16.msra.mxu0 %v795
        %1026 = vmatprep.subr.bf16.mxu0 %v802
        %1027 = vmatpush1.bf16.msra.mxu0 %v801
        %1028 = vmatprep.subr.bf16.mxu0 %v808
        %1029 = vmatpush1.bf16.msra.mxu0 %v807
        %1030 = vmatprep.subr.bf16.mxu0 %v814
        %1031 = vmatpush1.bf16.msra.mxu0 %v813
        %1032 = vmatprep.subr.bf16.mxu0 %v820
        %1033 = vmatpush1.bf16.msra.mxu0 %v819
        %1034 = vmatprep.subr.bf16.mxu0 %v826
        %1035 = vmatpush1.bf16.msra.mxu0 %v825
        %1036 = vmatprep.subr.bf16.mxu0 %v832
        %1037 = vmatpush1.bf16.msra.mxu0 %v831
        %1038 = vmatprep.subr.bf16.mxu0 %v838
        %1039 = vmatpush1.bf16.msra.mxu0 %v837
        %1040 = vmatprep.subr.bf16.mxu0 %v844
        %1041 = vmatpush1.bf16.msra.mxu0 %v843
        %1042 = vmatprep.subr.bf16.mxu0 %v850
        %1043 = vmatpush1.bf16.msra.mxu0 %v849
        %1044 = vmatprep.subr.bf16.mxu0 %v856
        %1045 = vmatpush1.bf16.msra.mxu0 %v855
        %1046 = vmatprep.subr.bf16.mxu0 %v862
        %1047 = vmatpush1.bf16.msra.mxu0 %v861
        %1048 = vmatprep.subr.bf16.mxu0 %v868
        %1049 = vmatpush1.bf16.msra.mxu0 %v867
        %1050 = vmatprep.subr.bf16.mxu0 %v874
        %1051 = vmatpush1.bf16.msra.mxu0 %v873
        %1052 = vmatprep.subr.bf16.mxu0 %v880
        %1053 = vmatpush1.bf16.msra.mxu0 %v879
        %1054 = vmatprep.mubr.bf16.mxu0 %v496
        %1055 = vmatmul.mubr.bf16.gmra.mrb[0].mxu0 %v495
        %v1056 = vpop.f32.mrb[0].mxu0
        %v1057 = vadd.f32 0.0, %v1056
        %v1058 = vpop.f32.mrb[0].mxu0
        %v1059 = vadd.f32 0.0, %v1058
        %v1060 = vpop.f32.mrb[0].mxu0
        %v1061 = vadd.f32 0.0, %v1060
        %v1062 = vpop.f32.mrb[0].mxu0
        %v1063 = vadd.f32 0.0, %v1062
        %1064 = vdwg.mxu0
        %1065 = vmatprep.subr.bf16.mxu0 %v792
        %1066 = vmatpush1.bf16.msra.mxu0 %v791
        %1067 = vmatprep.subr.bf16.mxu0 %v798
        %1068 = vmatpush1.bf16.msra.mxu0 %v797
        %1069 = vmatprep.subr.bf16.mxu0 %v804
        %1070 = vmatpush1.bf16.msra.mxu0 %v803
        %1071 = vmatprep.subr.bf16.mxu0 %v810
        %1072 = vmatpush1.bf16.msra.mxu0 %v809
        %1073 = vmatprep.subr.bf16.mxu0 %v816
        %1074 = vmatpush1.bf16.msra.mxu0 %v815
        %1075 = vmatprep.subr.bf16.mxu0 %v822
        %1076 = vmatpush1.bf16.msra.mxu0 %v821
        %1077 = vmatprep.subr.bf16.mxu0 %v828
        %1078 = vmatpush1.bf16.msra.mxu0 %v827
        %1079 = vmatprep.subr.bf16.mxu0 %v834
        %1080 = vmatpush1.bf16.msra.mxu0 %v833
        %1081 = vmatprep.subr.bf16.mxu0 %v840
        %1082 = vmatpush1.bf16.msra.mxu0 %v839
        %1083 = vmatprep.subr.bf16.mxu0 %v846
        %1084 = vmatpush1.bf16.msra.mxu0 %v845
        %1085 = vmatprep.subr.bf16.mxu0 %v852
        %1086 = vmatpush1.bf16.msra.mxu0 %v851
        %1087 = vmatprep.subr.bf16.mxu0 %v858
        %1088 = vmatpush1.bf16.msra.mxu0 %v857
        %1089 = vmatprep.subr.bf16.mxu0 %v864
        %1090 = vmatpush1.bf16.msra.mxu0 %v863
        %1091 = vmatprep.subr.bf16.mxu0 %v870
        %1092 = vmatpush1.bf16.msra.mxu0 %v869
        %1093 = vmatprep.subr.bf16.mxu0 %v876
        %1094 = vmatpush1.bf16.msra.mxu0 %v875
        %1095 = vmatprep.subr.bf16.mxu0 %v882
        %1096 = vmatpush1.bf16.msra.mxu0 %v881
        %1097 = vmatprep.mubr.bf16.mxu0 %v496
        %1098 = vmatmul.mubr.bf16.gmra.mrb[0].mxu0 %v495
        %v1099 = vpop.f32.mrb[0].mxu0
        %v1100 = vadd.f32 0.0, %v1099
        %v1101 = vpop.f32.mrb[0].mxu0
        %v1102 = vadd.f32 0.0, %v1101
        %v1103 = vpop.f32.mrb[0].mxu0
        %v1104 = vadd.f32 0.0, %v1103
        %v1105 = vpop.f32.mrb[0].mxu0
        %v1106 = vadd.f32 0.0, %v1105
        %1107 = vdwg.mxu0
        %v1108 = vadd.f32 %v379, %v1014
        %v1109 = vadd.f32 %v380, %v1016
        %v1110 = vadd.f32 %v381, %v1057
        %v1111 = vadd.f32 %v382, %v1059
        %v1112 = vadd.f32 %v383, %v1100
        %v1113 = vadd.f32 %v384, %v1102
        %v1114 = vadd.f32 %v385, %v1018
        %v1115 = vadd.f32 %v386, %v1020
        %v1116 = vadd.f32 %v387, %v1061
        %v1117 = vadd.f32 %v388, %v1063
        %v1118 = vadd.f32 %v389, %v1104
        %v1119 = vadd.f32 %v390, %v1106
        %1120 = vst [vmem:[#allocation2] sm:$0xff] %v1108
        %1121 = vst [vmem:[#allocation2 + $0x8] sm:$0xff] %v1109
        %1122 = vst [vmem:[#allocation2 + $0x10] sm:$0xff] %v1110
        %1123 = vst [vmem:[#allocation2 + $0x18] sm:$0xff] %v1111
        %1124 = vst [vmem:[#allocation2 + $0x20] sm:$0xff] %v1112
        %1125 = vst [vmem:[#allocation2 + $0x28] sm:$0xff] %v1113
        %1126 = vst [vmem:[#allocation2 + $0x30] sm:$0xff] %v1114
        %1127 = vst [vmem:[#allocation2 + $0x38] sm:$0xff] %v1115
        %1128 = vst [vmem:[#allocation2 + $0x40] sm:$0xff] %v1116
        %1129 = vst [vmem:[#allocation2 + $0x48] sm:$0xff] %v1117
        %1130 = vst [vmem:[#allocation2 + $0x50] sm:$0xff] %v1118
        %1131 = vst [vmem:[#allocation2 + $0x58] sm:$0xff] %v1119
        %p1132 = scmp.eq.s32.totalorder %s22, 2
        // Predicated region
        $region87: #{bert_forward.14} parent=77 // pred_check
          %p1133 = pneg %p1132
        $region88: #{bert_forward.14} parent=77 // pred_check_branch
          %1135 = sbr.rel (%p1133) target = $region90
        $region89: #{bert_forward.14} parent=77 // pred_region
          %v1136 = vld [vmem:[#allocation2] sm:$0xff]
          %v1137 = vld [vmem:[#allocation2 + $0x8] sm:$0xff]
          %v1138 = vld [vmem:[#allocation2 + $0x10] sm:$0xff]
          %v1139 = vld [vmem:[#allocation2 + $0x18] sm:$0xff]
          %v1140 = vld [vmem:[#allocation2 + $0x20] sm:$0xff]
          %v1141 = vld [vmem:[#allocation2 + $0x28] sm:$0xff]
          %v1142 = vld [vmem:[#allocation2 + $0x30] sm:$0xff]
          %v1143 = vld [vmem:[#allocation2 + $0x38] sm:$0xff]
          %v1144 = vld [vmem:[#allocation2 + $0x40] sm:$0xff]
          %v1145 = vld [vmem:[#allocation2 + $0x48] sm:$0xff]
          %v1146 = vld [vmem:[#allocation2 + $0x50] sm:$0xff]
          %v1147 = vld [vmem:[#allocation2 + $0x58] sm:$0xff]
          %v1148 = vld [vmem:[%s2] sm:$0x3f]
          %v1150 = vlaneseq
          %v1151 = vshrl.u32 %v1150, 7
          %v1152 = vsub.s32 0, %v1151
          %v1153 = vrot.slane %v1148, %v1152
          %v1154 = vlaneseq
          %v1155 = vshrl.u32 %v1154, 7
          %v1156 = vsub.s32 1, %v1155
          %v1157 = vrot.slane %v1148, %v1156
          %v1158 = vlaneseq
          %v1159 = vshrl.u32 %v1158, 7
          %v1160 = vsub.s32 2, %v1159
          %v1161 = vrot.slane %v1148, %v1160
          %v1162 = vlaneseq
          %v1163 = vshrl.u32 %v1162, 7
          %v1164 = vsub.s32 3, %v1163
          %v1165 = vrot.slane %v1148, %v1164
          %v1166 = vlaneseq
          %v1167 = vshrl.u32 %v1166, 7
          %v1168 = vsub.s32 4, %v1167
          %v1169 = vrot.slane %v1148, %v1168
          %v1170 = vlaneseq
          %v1171 = vshrl.u32 %v1170, 7
          %v1172 = vsub.s32 5, %v1171
          %v1173 = vrot.slane %v1148, %v1172
          %v1180 = vadd.f32 %v1136, %v1153
          %v1181 = vadd.f32 %v1137, %v1157
          %v1182 = vadd.f32 %v1138, %v1161
          %v1183 = vadd.f32 %v1139, %v1165
          %v1184 = vadd.f32 %v1140, %v1169
          %v1185 = vadd.f32 %v1141, %v1173
          %v1186 = vadd.f32 %v1142, %v1153
          %v1187 = vadd.f32 %v1143, %v1157
          %v1188 = vadd.f32 %v1144, %v1161
          %v1189 = vadd.f32 %v1145, %v1165
          %v1190 = vadd.f32 %v1146, %v1169
          %v1191 = vadd.f32 %v1147, %v1173
          %v1192 = vld [vmem:[%s354] sm:$0xff]
          %v1193 = vld [vmem:[%s354 + $0x8] sm:$0xff]
          %v1194 = vld [vmem:[%s354 + $0x10] sm:$0xff]
          %v1195 = vld [vmem:[%s354 + $0x18] sm:$0xff]
          %v1196 = vld [vmem:[%s354 + $0x20] sm:$0xff]
          %v1197 = vld [vmem:[%s354 + $0x28] sm:$0xff]
          %v1198 = vunpack.c.l.bf16 %v1192
          %v1199 = vunpack.c.h.bf16 %v1192
          %v1200 = vunpack.c.l.bf16 %v1193
          %v1201 = vunpack.c.h.bf16 %v1193
          %v1202 = vunpack.c.l.bf16 %v1194
          %v1203 = vunpack.c.h.bf16 %v1194
          %v1204 = vunpack.c.l.bf16 %v1195
          %v1205 = vunpack.c.h.bf16 %v1195
          %v1206 = vunpack.c.l.bf16 %v1196
          %v1207 = vunpack.c.h.bf16 %v1196
          %v1208 = vunpack.c.l.bf16 %v1197
          %v1209 = vunpack.c.h.bf16 %v1197
          %v1210 = vadd.f32 %v1180, %v1198
          %v1211 = vadd.f32 %v1181, %v1199
          %v1212 = vadd.f32 %v1182, %v1200
          %v1213 = vadd.f32 %v1183, %v1201
          %v1214 = vadd.f32 %v1184, %v1202
          %v1215 = vadd.f32 %v1185, %v1203
          %v1216 = vadd.f32 %v1186, %v1204
          %v1217 = vadd.f32 %v1187, %v1205
          %v1218 = vadd.f32 %v1188, %v1206
          %v1219 = vadd.f32 %v1189, %v1207
          %v1220 = vadd.f32 %v1190, %v1208
          %v1221 = vadd.f32 %v1191, %v1209
          %v1222 = vadd.f32 %v1210, %v1211
          %v1223 = vadd.f32 %v1222, %v1212
          %v1224 = vadd.f32 %v1223, %v1213
          %v1225 = vadd.f32 %v1224, %v1214
          %v1226 = vadd.f32 %v1225, %v1215
          %1227 = vadd.xlane.f32.xlu0 %v1226
          %v1228 = vpop.xlane.xlu0 %1227
          %v1229 = vadd.f32 %v1216, %v1217
          %v1230 = vadd.f32 %v1229, %v1218
          %v1231 = vadd.f32 %v1230, %v1219
          %v1232 = vadd.f32 %v1231, %v1220
          %v1233 = vadd.f32 %v1232, %v1221
          %1234 = vadd.xlane.f32.xlu0 %v1233
          %v1235 = vpop.xlane.xlu0 %1234
          %v1236 = vrcp.pop 768.0
          %v1237 = vmul.f32 %v1228, %v1236
          %v1238 = vmul.f32 %v1235, %v1236
          %v1239 = vsub.f32 %v1210, %v1237
          %v1240 = vsub.f32 %v1211, %v1237
          %v1241 = vsub.f32 %v1212, %v1237
          %v1242 = vsub.f32 %v1213, %v1237
          %v1243 = vsub.f32 %v1214, %v1237
          %v1244 = vsub.f32 %v1215, %v1237
          %v1245 = vsub.f32 %v1216, %v1238
          %v1246 = vsub.f32 %v1217, %v1238
          %v1247 = vsub.f32 %v1218, %v1238
          %v1248 = vsub.f32 %v1219, %v1238
          %v1249 = vsub.f32 %v1220, %v1238
          %v1250 = vsub.f32 %v1221, %v1238
          %v1251 = vmul.f32 %v1239, %v1239
          %v1252 = vmul.f32 %v1240, %v1240
          %v1253 = vmul.f32 %v1241, %v1241
          %v1254 = vmul.f32 %v1242, %v1242
          %v1255 = vmul.f32 %v1243, %v1243
          %v1256 = vmul.f32 %v1244, %v1244
          %v1257 = vmul.f32 %v1245, %v1245
          %v1258 = vmul.f32 %v1246, %v1246
          %v1259 = vmul.f32 %v1247, %v1247
          %v1260 = vmul.f32 %v1248, %v1248
          %v1261 = vmul.f32 %v1249, %v1249
          %v1262 = vmul.f32 %v1250, %v1250
          %v1263 = vadd.f32 %v1251, %v1252
          %v1264 = vadd.f32 %v1263, %v1253
          %v1265 = vadd.f32 %v1264, %v1254
          %v1266 = vadd.f32 %v1265, %v1255
          %v1267 = vadd.f32 %v1266, %v1256
          %1268 = vadd.xlane.f32.xlu0 %v1267
          %v1269 = vpop.xlane.xlu0 %1268
          %v1270 = vadd.f32 %v1257, %v1258
          %v1271 = vadd.f32 %v1270, %v1259
          %v1272 = vadd.f32 %v1271, %v1260
          %v1273 = vadd.f32 %v1272, %v1261
          %v1274 = vadd.f32 %v1273, %v1262
          %1275 = vadd.xlane.f32.xlu0 %v1274
          %v1276 = vpop.xlane.xlu0 %1275
          %v1277 = vmul.f32 %v1269, %v1236
          %v1278 = vmul.f32 %v1276, %v1236
          %v1279 = vadd.f32 %v1277, 1e-12
          %v1280 = vadd.f32 %v1278, 1e-12
          %v1281 = vrsqrt.pop %v1279
          %v1282 = vrsqrt.pop %v1280
          %v1283 = vmul.f32 %v1239, %v1281
          %v1284 = vmul.f32 %v1240, %v1281
          %v1285 = vmul.f32 %v1241, %v1281
          %v1286 = vmul.f32 %v1242, %v1281
          %v1287 = vmul.f32 %v1243, %v1281
          %v1288 = vmul.f32 %v1244, %v1281
          %v1289 = vmul.f32 %v1245, %v1282
          %v1290 = vmul.f32 %v1246, %v1282
          %v1291 = vmul.f32 %v1247, %v1282
          %v1292 = vmul.f32 %v1248, %v1282
          %v1293 = vmul.f32 %v1249, %v1282
          %v1294 = vmul.f32 %v1250, %v1282
          %v1295 = vld [vmem:[%s4] sm:$0x3f]
          %v1297 = vlaneseq
          %v1298 = vshrl.u32 %v1297, 7
          %v1299 = vsub.s32 0, %v1298
          %v1300 = vrot.slane %v1295, %v1299
          %v1301 = vlaneseq
          %v1302 = vshrl.u32 %v1301, 7
          %v1303 = vsub.s32 1, %v1302
          %v1304 = vrot.slane %v1295, %v1303
          %v1305 = vlaneseq
          %v1306 = vshrl.u32 %v1305, 7
          %v1307 = vsub.s32 2, %v1306
          %v1308 = vrot.slane %v1295, %v1307
          %v1309 = vlaneseq
          %v1310 = vshrl.u32 %v1309, 7
          %v1311 = vsub.s32 3, %v1310
          %v1312 = vrot.slane %v1295, %v1311
          %v1313 = vlaneseq
          %v1314 = vshrl.u32 %v1313, 7
          %v1315 = vsub.s32 4, %v1314
          %v1316 = vrot.slane %v1295, %v1315
          %v1317 = vlaneseq
          %v1318 = vshrl.u32 %v1317, 7
          %v1319 = vsub.s32 5, %v1318
          %v1320 = vrot.slane %v1295, %v1319
          %v1327 = vmul.f32 %v1283, %v1300
          %v1328 = vmul.f32 %v1284, %v1304
          %v1329 = vmul.f32 %v1285, %v1308
          %v1330 = vmul.f32 %v1286, %v1312
          %v1331 = vmul.f32 %v1287, %v1316
          %v1332 = vmul.f32 %v1288, %v1320
          %v1333 = vmul.f32 %v1289, %v1300
          %v1334 = vmul.f32 %v1290, %v1304
          %v1335 = vmul.f32 %v1291, %v1308
          %v1336 = vmul.f32 %v1292, %v1312
          %v1337 = vmul.f32 %v1293, %v1316
          %v1338 = vmul.f32 %v1294, %v1320
          %v1339 = vld [vmem:[%s5] sm:$0x3f]
          %v1341 = vlaneseq
          %v1342 = vshrl.u32 %v1341, 7
          %v1343 = vsub.s32 0, %v1342
          %v1344 = vrot.slane %v1339, %v1343
          %v1345 = vlaneseq
          %v1346 = vshrl.u32 %v1345, 7
          %v1347 = vsub.s32 1, %v1346
          %v1348 = vrot.slane %v1339, %v1347
          %v1349 = vlaneseq
          %v1350 = vshrl.u32 %v1349, 7
          %v1351 = vsub.s32 2, %v1350
          %v1352 = vrot.slane %v1339, %v1351
          %v1353 = vlaneseq
          %v1354 = vshrl.u32 %v1353, 7
          %v1355 = vsub.s32 3, %v1354
          %v1356 = vrot.slane %v1339, %v1355
          %v1357 = vlaneseq
          %v1358 = vshrl.u32 %v1357, 7
          %v1359 = vsub.s32 4, %v1358
          %v1360 = vrot.slane %v1339, %v1359
          %v1361 = vlaneseq
          %v1362 = vshrl.u32 %v1361, 7
          %v1363 = vsub.s32 5, %v1362
          %v1364 = vrot.slane %v1339, %v1363
          %v1371 = vadd.f32 %v1327, %v1344
          %v1372 = vadd.f32 %v1328, %v1348
          %v1373 = vadd.f32 %v1329, %v1352
          %v1374 = vadd.f32 %v1330, %v1356
          %v1375 = vadd.f32 %v1331, %v1360
          %v1376 = vadd.f32 %v1332, %v1364
          %v1377 = vadd.f32 %v1333, %v1344
          %v1378 = vadd.f32 %v1334, %v1348
          %v1379 = vadd.f32 %v1335, %v1352
          %v1380 = vadd.f32 %v1336, %v1356
          %v1381 = vadd.f32 %v1337, %v1360
          %v1382 = vadd.f32 %v1338, %v1364
          %v1383 = vpack.c.bf16 %v1377, %v1371
          %v1384 = vpack.c.bf16 %v1378, %v1372
          %v1385 = vpack.c.bf16 %v1379, %v1373
          %v1386 = vpack.c.bf16 %v1380, %v1374
          %v1387 = vpack.c.bf16 %v1381, %v1375
          %v1388 = vpack.c.bf16 %v1382, %v1376
          %v1395 = vunpack.c.l.b16 %v1383
          %v1396 = vunpack.c.l.b16 %v1384
          %v1397 = vunpack.c.l.b16 %v1385
          %v1398 = vunpack.c.l.b16 %v1386
          %v1399 = vunpack.c.l.b16 %v1387
          %v1400 = vunpack.c.l.b16 %v1388
          %v1401 = vunpack.c.h.b16 %v1383
          %v1402 = vunpack.c.h.b16 %v1384
          %v1403 = vunpack.c.h.b16 %v1385
          %v1404 = vunpack.c.h.b16 %v1386
          %v1405 = vunpack.c.h.b16 %v1387
          %v1406 = vunpack.c.h.b16 %v1388
          %v1407 = vpack.c.b16 %v1396, %v1395
          %v1408 = vpack.c.b16 %v1398, %v1397
          %v1409 = vpack.c.b16 %v1400, %v1399
          %v1410 = vpack.c.b16 %v1402, %v1401
          %v1411 = vpack.c.b16 %v1404, %v1403
          %v1412 = vpack.c.b16 %v1406, %v1405
          %1419 = vst [vmem:[%s361] sm:$0xff] %v1407
          %1420 = vst [vmem:[%s361 + $0x8] sm:$0xff] %v1408
          %1421 = vst [vmem:[%s361 + $0x10] sm:$0xff] %v1409
          %1422 = vst [vmem:[%s361 + $0x18] sm:$0xff] %v1410
          %1423 = vst [vmem:[%s361 + $0x20] sm:$0xff] %v1411
          %1424 = vst [vmem:[%s361 + $0x28] sm:$0xff] %v1412
        $region90: #{bert_forward.14} parent=77 // pred_fallthru
          _
        %s1425 = smul.u32 2, %s21
        %p1426 = scmp.lt.s32.totalorder %s1425, 1
        %s1427 = scalar_select %p1426, %s1425, 1
        %s1428 = smul.addr %s1427, 6
        %s1429 = smul.addr %s1428, 4
        %s1430 = scalar_lea.vmem %s6, %s1429
        // Predicated region
        $region91: #{bert_forward.14} parent=77 // pred_check
          %p1431 = pneg %p190
        $region92: #{bert_forward.14} parent=77 // pred_check_branch
          %1433 = sbr.rel (%p1431) target = $region94
        $region93: #{bert_forward.14} parent=77 // pred_region
          %s1434 = smul.u32 2, %s21
        $region94: #{bert_forward.14} parent=77 // pred_fallthru
          _
        // Predicated region
        $region95: #{bert_forward.14} parent=77 // pred_check
          %p1435 = pneg %p190
        $region96: #{bert_forward.14} parent=77 // pred_check_branch
          %1437 = sbr.rel (%p1435) target = $region98
        $region97: #{bert_forward.14} parent=77 // pred_region
          %s1438 = smul.u32 2, %s21
          %p1439 = scmp.lt.s32.totalorder %s1438, 1
          %s1440 = scalar_select %p1439, %s1438, 1
          %s1441 = smul.addr %s1440, 6
          %s1442 = smul.addr %s1441, 4
          %s1443 = scalar_lea.vmem %s6, %s1442
        $region98: #{bert_forward.14} parent=77 // pred_fallthru
          _
      $region78: #{bert_forward.14} parent=5 // pred_fallthru
        _
      %p1444 = scmp.le.s32.totalorder 2, %s12
      // Predicated region
      $region99: #{bert_forward.14} parent=5 // pred_check
        %p1445 = pneg %p1444
      $region100: #{bert_forward.14} parent=5 // pred_check_branch
        %1447 = sbr.rel (%p1445) target = $region102
      $region101: #{bert_forward.14} parent=5 // pred_region
        %s1448 = ssub.s32 %s12, 2
      $region102: #{bert_forward.14} parent=5 // pred_fallthru
        _
    $region6: #{bert_forward.14} parent=1 // loop_footer
      %s16 = sadd.s32 1, %s12
    $region7: #{bert_forward.14} parent=1 // loop_footer_branch
      %11 = sbr.rel target = $region3
    $region8: #{bert_forward.14} parent=1 // loop_exit
      _

// kernel: bert_forward.15
$region0: #{bert_forward.15}
  #allocation0 [shape = 'u32[]', space=smem, size = 0x4, offset = 0x4, fixed_abs, tag = 'smem constant byte address 0x4 - core index']
  #allocation1 [shape = 'u32[144,128]{1,0:T(1,128)}', space=vmem, size = 0x12000, scoped, tag = 'internal scratch']
  #allocation2 [shape = 'f32[16,256]{1,0:T(8,128)}', space=vmem, size = 0x4000, scoped, tag = 'scratch operand']
  %s0 = inlined_call_operand.vmem [shape: bf16[16,768], index: 0, kind: input, shape index: {}]
  %s1 = inlined_call_operand.vmem [shape: bf16[768,3072], index: 1, kind: input, shape index: {}]
  %s2 = inlined_call_operand.vmem [shape: f32[1,3072], index: 2, kind: input, shape index: {}]
  %s3 = inlined_call_operand.vmem [shape: bf16[16,3072], index: 3, kind: output, shape index: {}]
  %s4 = sld [smem:[#allocation0]]
  $region163: #{bert_forward.15} parent=0
    _
  %s6 = ssub.s32 1, %s4
  %s7 = scalar_select 0, %s6, %s4
  $region1: #{bert_forward.15} parent=0
    #allocation3 [shape = 'u8[16384]{0}', space=vmem, size = 0x4000, scoped, tag = 'input window, operand 0']
    #allocation4 [shape = 'u8[262144]{0}', space=vmem, size = 0x40000, scoped, tag = 'input window, operand 1']
    #allocation5 [shape = 'u8[16384]{0}', space=vmem, size = 0x4000, scoped, tag = 'output window, operand 0']
    loop: start=0, step=1, limit=38
    $region2: #{bert_forward.15} parent=1 // loop_pre_header
      _
    $region3: #{bert_forward.15} parent=1 // loop_header
      %s9 = sphi 0, %s13
      %p10 = scmp.ge.s32.totalorder %s9, 38
      %s16 = sphi 0, %s35
      %s17 = sphi 0, %s31
      %s18 = sphi 0, %s27
      %s19 = sphi 0, %s16
      %s20 = sphi 0, %s17
      %s21 = sphi 0, %s18
      %s22 = sphi 0, %s19
      %s23 = sphi 0, %s20
      %s24 = sphi 0, %s21
      %s40 = sphi 0, %s42
      %s43 = sphi 0, %s40
      %s44 = sphi 0, %s43
      %s60 = sphi 0, %s44
      %s68 = sphi 0, %s70
      %s71 = sphi 0, %s68
      %s72 = sphi 0, %s71
      %s88 = sphi 0, %s72
      %s94 = sphi 0, %s96
      %s97 = sphi 0, %s94
      %s98 = sphi 0, %s97
      %s114 = sphi 0, %s98
      %s122 = sphi 0, %s124
      %s125 = sphi 0, %s122
      %s126 = sphi 0, %s125
      %s142 = sphi 0, %s126
    $region4: #{bert_forward.15} parent=1 // loop_header_branch
      %12 = sbr.rel (%p10) target = $region8
    $region5: #{bert_forward.15} parent=1 // loop_body
      %s14 = ssub.s32 %s9, 1
      %s15 = ssub.s32 %s9, 2
      %s25 = sadd.s32 1, %s18
      %p26 = scmp.ge.s32.totalorder %s25, 3
      %s27 = scalar_select %p26, 0, %s25
      %s28 = sadd.s32 1, %s17
      %s29 = scalar_select %p26, %s28, %s17
      %p30 = scmp.ge.s32.totalorder %s29, 12
      %s31 = scalar_select %p30, 0, %s29
      %s32 = sadd.s32 1, %s16
      %s33 = scalar_select %p30, %s32, %s16
      %p34 = scmp.ge.s32.totalorder %s33, 1
      %s35 = scalar_select %p34, 0, %s33
      %s36 = ssub.s32 %s16, %s35
      %s37 = ssub.s32 %s18, %s27
      %s38 = sor.u32 %s36, %s37
      %p39 = scmp.eq.s32.totalorder %s38, 0
      %s41 = sadd.s32 %s40, 1
      %s42 = scalar_select %p39, %s40, %s41
      %p45 = pneg %p39
      %p46 = scmp.eq.s32.totalorder %s9, 35
      %p47 = por %p45, %p46
      %p48 = scmp.ne.s32.totalorder %s40, %s43
      %p49 = scmp.eq.s32.totalorder %s9, 0
      %p50 = por %p48, %p49
      %p51 = scmp.ne.s32.totalorder %s40, %s43
      %p52 = scmp.eq.s32.totalorder %s14, 35
      %p53 = por %p51, %p52
      %p54 = scmp.ne.s32.totalorder %s43, %s44
      %p55 = scmp.eq.s32.totalorder %s14, 0
      %p56 = por %p54, %p55
      %p57 = scmp.ne.s32.totalorder %s43, %s44
      %p58 = scmp.eq.s32.totalorder %s15, 35
      %p59 = por %p57, %p58
      %p61 = scmp.ne.s32.totalorder %s44, %s60
      %p62 = scmp.eq.s32.totalorder %s15, 0
      %p63 = por %p61, %p62
      %s64 = ssub.s32 %s18, %s27
      %s65 = ssub.s32 %s17, %s31
      %s66 = sor.u32 %s64, %s65
      %p67 = scmp.eq.s32.totalorder %s66, 0
      %s69 = sadd.s32 %s68, 1
      %s70 = scalar_select %p67, %s68, %s69
      %p73 = pneg %p67
      %p74 = scmp.eq.s32.totalorder %s9, 35
      %p75 = por %p73, %p74
      %p76 = scmp.ne.s32.totalorder %s68, %s71
      %p77 = scmp.eq.s32.totalorder %s9, 0
      %p78 = por %p76, %p77
      %p79 = scmp.ne.s32.totalorder %s68, %s71
      %p80 = scmp.eq.s32.totalorder %s14, 35
      %p81 = por %p79, %p80
      %p82 = scmp.ne.s32.totalorder %s71, %s72
      %p83 = scmp.eq.s32.totalorder %s14, 0
      %p84 = por %p82, %p83
      %p85 = scmp.ne.s32.totalorder %s71, %s72
      %p86 = scmp.eq.s32.totalorder %s15, 35
      %p87 = por %p85, %p86
      %p89 = scmp.ne.s32.totalorder %s72, %s88
      %p90 = scmp.eq.s32.totalorder %s15, 0
      %p91 = por %p89, %p90
      %s92 = ssub.s32 %s17, %s31
      %p93 = scmp.eq.s32.totalorder %s92, 0
      %s95 = sadd.s32 %s94, 1
      %s96 = scalar_select %p93, %s94, %s95
      %p99 = pneg %p93
      %p100 = scmp.eq.s32.totalorder %s9, 35
      %p101 = por %p99, %p100
      %p102 = scmp.ne.s32.totalorder %s94, %s97
      %p103 = scmp.eq.s32.totalorder %s9, 0
      %p104 = por %p102, %p103
      %p105 = scmp.ne.s32.totalorder %s94, %s97
      %p106 = scmp.eq.s32.totalorder %s14, 35
      %p107 = por %p105, %p106
      %p108 = scmp.ne.s32.totalorder %s97, %s98
      %p109 = scmp.eq.s32.totalorder %s14, 0
      %p110 = por %p108, %p109
      %p111 = scmp.ne.s32.totalorder %s97, %s98
      %p112 = scmp.eq.s32.totalorder %s15, 35
      %p113 = por %p111, %p112
      %p115 = scmp.ne.s32.totalorder %s98, %s114
      %p116 = scmp.eq.s32.totalorder %s15, 0
      %p117 = por %p115, %p116
      %s118 = ssub.s32 %s16, %s35
      %s119 = ssub.s32 %s17, %s31
      %s120 = sor.u32 %s118, %s119
      %p121 = scmp.eq.s32.totalorder %s120, 0
      %s123 = sadd.s32 %s122, 1
      %s124 = scalar_select %p121, %s122, %s123
      %p127 = pneg %p121
      %p128 = scmp.eq.s32.totalorder %s9, 35
      %p129 = por %p127, %p128
      %p130 = scmp.ne.s32.totalorder %s122, %s125
      %p131 = scmp.eq.s32.totalorder %s9, 0
      %p132 = por %p130, %p131
      %p133 = scmp.ne.s32.totalorder %s122, %s125
      %p134 = scmp.eq.s32.totalorder %s14, 35
      %p135 = por %p133, %p134
      %p136 = scmp.ne.s32.totalorder %s125, %s126
      %p137 = scmp.eq.s32.totalorder %s14, 0
      %p138 = por %p136, %p137
      %p139 = scmp.ne.s32.totalorder %s125, %s126
      %p140 = scmp.eq.s32.totalorder %s15, 35
      %p141 = por %p139, %p140
      %p143 = scmp.ne.s32.totalorder %s126, %s142
      %p144 = scmp.eq.s32.totalorder %s15, 0
      %p145 = por %p143, %p144
      %p146 = scmp.le.s32.totalorder 1, %s9
      %p147 = scmp.lt.s32.totalorder %s9, 37
      %p148 = pnand %p146, %p147
      %p149 = pneg %p148
      // Predicated region
      $region9: #{bert_forward.15} parent=5 // pred_check
        _
      $region10: #{bert_forward.15} parent=5 // pred_check_branch
        %151 = sbr.rel (%p148) target = $region12
      $region11: #{bert_forward.15} parent=5 // pred_region
        %s152 = ssub.s32 %s9, 1
      $region12: #{bert_forward.15} parent=5 // pred_fallthru
        _
      %p153 = scmp.lt.s32.totalorder %s9, 36
      // Predicated region
      $region13: #{bert_forward.15} parent=5 // pred_check
        %p154 = pneg %p153
      $region14: #{bert_forward.15} parent=5 // pred_check_branch
        %156 = sbr.rel (%p154) target = $region16
      $region15: #{bert_forward.15} parent=5 // pred_region
        // Predicated region
        $region17: #{bert_forward.15} parent=15 // pred_check
          %p157 = pneg %p50
        $region18: #{bert_forward.15} parent=15 // pred_check_branch
          %159 = sbr.rel (%p157) target = $region20
        $region19: #{bert_forward.15} parent=15 // pred_region
          %s160 = sand.u32 %s40, 1
          %s161 = sand.u32 %s40, 1
          %s162 = smul.addr %s161, 16
          %s163 = scalar_lea.vmem [#allocation3], %s162
          %s164 = smul.u32 2, %s16
          %s165 = smul.u32 2, %s18
          %s166 = smul.addr %s164, 6
          %s167 = sadd.s32 %s165, %s166
          %s168 = smul.addr %s167, 4
          %s169 = scalar_lea.vmem %s0, %s168
          // Predicated region
          $region21: #{bert_forward.15} parent=19 // pred_check
            _
          $region22: #{bert_forward.15} parent=19 // pred_check_branch
            %171 = sbr.rel (0) target = $region24
          $region23: #{bert_forward.15} parent=19 // pred_region
            // Predicated region
            $region25: #{bert_forward.15} parent=23 // pred_check
              _
            $region26: #{bert_forward.15} parent=23 // pred_check_branch
              %173 = sbr.rel (0) target = $region28
            $region27: #{bert_forward.15} parent=23 // pred_region
              // Predicated region
              $region40: #{bert_forward.15} parent=27 // pred_check
                _
              $region41: #{bert_forward.15} parent=27 // pred_check_branch
                %190 = sbr.rel (0) target = $region43
              $region42: #{bert_forward.15} parent=27 // pred_region
                loop: start=0, step=1, limit=1
                $region44: #{bert_forward.15} parent=42 // loop_pre_header
                  _
                $region45: #{bert_forward.15} parent=42 // loop_header
                  %s192 = sphi 0, %s196
                  %p193 = scmp.ge.s32.totalorder %s192, 1
                  %s197 = sphi %s169, %s169
                  %s198 = sphi %s163, %s163
                $region46: #{bert_forward.15} parent=42 // loop_header_branch
                  %195 = sbr.rel (%p193) target = $region50
                $region47: #{bert_forward.15} parent=42 // loop_body
                  %v199 = vld [vmem:[%s197] sm:$0xff]
                  %200 = vst [vmem:[%s198] sm:$0xff] %v199
                  %v201 = vld [vmem:[%s197 + $0x18] sm:$0xff]
                  %202 = vst [vmem:[%s198 + $0x8] sm:$0xff] %v201
                $region48: #{bert_forward.15} parent=42 // loop_footer
                  %s196 = sadd.s32 1, %s192
                $region49: #{bert_forward.15} parent=42 // loop_footer_branch
                  %191 = sbr.rel target = $region45
                $region50: #{bert_forward.15} parent=42 // loop_exit
                  _
              $region43: #{bert_forward.15} parent=27 // pred_fallthru
                _
              // Predicated region
              $region51: #{bert_forward.15} parent=27 // pred_check
                _
              $region52: #{bert_forward.15} parent=27 // pred_check_branch
                %204 = sbr.rel target = $region54
              $region53: #{bert_forward.15} parent=27 // pred_region
                _
              $region54: #{bert_forward.15} parent=27 // pred_fallthru
                _
            $region28: #{bert_forward.15} parent=23 // pred_fallthru
              _
            // Predicated region
            $region29: #{bert_forward.15} parent=23 // pred_check
              _
            $region30: #{bert_forward.15} parent=23 // pred_check_branch
              %175 = sbr.rel target = $region32
            $region31: #{bert_forward.15} parent=23 // pred_region
              loop: start=0, step=1, limit=1
              $region33: #{bert_forward.15} parent=31 // loop_pre_header
                _
              $region34: #{bert_forward.15} parent=31 // loop_header
                %s178 = sphi 0, %s182
                %p179 = scmp.ge.s32.totalorder %s178, 1
                %s183 = sphi %s169, %s169
                %s184 = sphi %s163, %s163
              $region35: #{bert_forward.15} parent=31 // loop_header_branch
                %181 = sbr.rel (%p179) target = $region39
              $region36: #{bert_forward.15} parent=31 // loop_body
                %v185 = vld [vmem:[%s183] sm:$0xff]
                %186 = vst [vmem:[%s184] sm:$0xff] %v185
                %v187 = vld [vmem:[%s183 + $0x18] sm:$0xff]
                %188 = vst [vmem:[%s184 + $0x8] sm:$0xff] %v187
              $region37: #{bert_forward.15} parent=31 // loop_footer
                %s182 = sadd.s32 1, %s178
              $region38: #{bert_forward.15} parent=31 // loop_footer_branch
                %177 = sbr.rel target = $region34
              $region39: #{bert_forward.15} parent=31 // loop_exit
                _
            $region32: #{bert_forward.15} parent=23 // pred_fallthru
              _
          $region24: #{bert_forward.15} parent=19 // pred_fallthru
            _
          %205 = vnop
        $region20: #{bert_forward.15} parent=15 // pred_fallthru
          _
        // Predicated region
        $region55: #{bert_forward.15} parent=15 // pred_check
          %p206 = pneg %p78
        $region56: #{bert_forward.15} parent=15 // pred_check_branch
          %208 = sbr.rel (%p206) target = $region58
        $region57: #{bert_forward.15} parent=15 // pred_region
          %s209 = sand.u32 %s68, 1
          %s210 = sand.u32 %s68, 1
          %s211 = smul.addr %s210, 256
          %s212 = scalar_lea.vmem [#allocation4], %s211
          %s213 = smul.u32 32, %s18
          %s214 = smul.u32 2, %s17
          %s215 = smul.addr %s213, 24
          %s216 = sadd.s32 %s214, %s215
          %s217 = smul.addr %s216, 4
          %s218 = scalar_lea.vmem %s1, %s217
          // Predicated region
          $region59: #{bert_forward.15} parent=57 // pred_check
            _
          $region60: #{bert_forward.15} parent=57 // pred_check_branch
            %220 = sbr.rel (0) target = $region62
          $region61: #{bert_forward.15} parent=57 // pred_region
            // Predicated region
            $region63: #{bert_forward.15} parent=61 // pred_check
              _
            $region64: #{bert_forward.15} parent=61 // pred_check_branch
              %222 = sbr.rel (0) target = $region66
            $region65: #{bert_forward.15} parent=61 // pred_region
              // Predicated region
              $region78: #{bert_forward.15} parent=65 // pred_check
                _
              $region79: #{bert_forward.15} parent=65 // pred_check_branch
                %299 = sbr.rel (0) target = $region81
              $region80: #{bert_forward.15} parent=65 // pred_region
                loop: start=0, step=1, limit=1
                $region82: #{bert_forward.15} parent=80 // loop_pre_header
                  _
                $region83: #{bert_forward.15} parent=80 // loop_header
                  %s301 = sphi 0, %s305
                  %p302 = scmp.ge.s32.totalorder %s301, 1
                  %s306 = sphi %s218, %s218
                  %s307 = sphi %s212, %s212
                $region84: #{bert_forward.15} parent=80 // loop_header_branch
                  %304 = sbr.rel (%p302) target = $region88
                $region85: #{bert_forward.15} parent=80 // loop_body
                  %v308 = vld [vmem:[%s306] sm:$0xff]
                  %309 = vst [vmem:[%s307] sm:$0xff] %v308
                  %v310 = vld [vmem:[%s306 + $0x60] sm:$0xff]
                  %311 = vst [vmem:[%s307 + $0x8] sm:$0xff] %v310
                  %v312 = vld [vmem:[%s306 + $0xc0] sm:$0xff]
                  %313 = vst [vmem:[%s307 + $0x10] sm:$0xff] %v312
                  %v314 = vld [vmem:[%s306 + $0x120] sm:$0xff]
                  %315 = vst [vmem:[%s307 + $0x18] sm:$0xff] %v314
                  %v316 = vld [vmem:[%s306 + $0x180] sm:$0xff]
                  %317 = vst [vmem:[%s307 + $0x20] sm:$0xff] %v316
                  %v318 = vld [vmem:[%s306 + $0x1e0] sm:$0xff]
                  %319 = vst [vmem:[%s307 + $0x28] sm:$0xff] %v318
                  %v320 = vld [vmem:[%s306 + $0x240] sm:$0xff]
                  %321 = vst [vmem:[%s307 + $0x30] sm:$0xff] %v320
                  %v322 = vld [vmem:[%s306 + $0x2a0] sm:$0xff]
                  %323 = vst [vmem:[%s307 + $0x38] sm:$0xff] %v322
                  %v324 = vld [vmem:[%s306 + $0x300] sm:$0xff]
                  %325 = vst [vmem:[%s307 + $0x40] sm:$0xff] %v324
                  %v326 = vld [vmem:[%s306 + $0x360] sm:$0xff]
                  %327 = vst [vmem:[%s307 + $0x48] sm:$0xff] %v326
                  %v328 = vld [vmem:[%s306 + $0x3c0] sm:$0xff]
                  %329 = vst [vmem:[%s307 + $0x50] sm:$0xff] %v328
                  %v330 = vld [vmem:[%s306 + $0x420] sm:$0xff]
                  %331 = vst [vmem:[%s307 + $0x58] sm:$0xff] %v330
                  %v332 = vld [vmem:[%s306 + $0x480] sm:$0xff]
                  %333 = vst [vmem:[%s307 + $0x60] sm:$0xff] %v332
                  %v334 = vld [vmem:[%s306 + $0x4e0] sm:$0xff]
                  %335 = vst [vmem:[%s307 + $0x68] sm:$0xff] %v334
                  %v336 = vld [vmem:[%s306 + $0x540] sm:$0xff]
                  %337 = vst [vmem:[%s307 + $0x70] sm:$0xff] %v336
                  %v338 = vld [vmem:[%s306 + $0x5a0] sm:$0xff]
                  %339 = vst [vmem:[%s307 + $0x78] sm:$0xff] %v338
                  %v340 = vld [vmem:[%s306 + $0x600] sm:$0xff]
                  %341 = vst [vmem:[%s307 + $0x80] sm:$0xff] %v340
                  %v342 = vld [vmem:[%s306 + $0x660] sm:$0xff]
                  %343 = vst [vmem:[%s307 + $0x88] sm:$0xff] %v342
                  %v344 = vld [vmem:[%s306 + $0x6c0] sm:$0xff]
                  %345 = vst [vmem:[%s307 + $0x90] sm:$0xff] %v344
                  %v346 = vld [vmem:[%s306 + $0x720] sm:$0xff]
                  %347 = vst [vmem:[%s307 + $0x98] sm:$0xff] %v346
                  %v348 = vld [vmem:[%s306 + $0x780] sm:$0xff]
                  %349 = vst [vmem:[%s307 + $0xa0] sm:$0xff] %v348
                  %v350 = vld [vmem:[%s306 + $0x7e0] sm:$0xff]
                  %351 = vst [vmem:[%s307 + $0xa8] sm:$0xff] %v350
                  %v352 = vld [vmem:[%s306 + $0x840] sm:$0xff]
                  %353 = vst [vmem:[%s307 + $0xb0] sm:$0xff] %v352
                  %v354 = vld [vmem:[%s306 + $0x8a0] sm:$0xff]
                  %355 = vst [vmem:[%s307 + $0xb8] sm:$0xff] %v354
                  %v356 = vld [vmem:[%s306 + $0x900] sm:$0xff]
                  %357 = vst [vmem:[%s307 + $0xc0] sm:$0xff] %v356
                  %v358 = vld [vmem:[%s306 + $0x960] sm:$0xff]
                  %359 = vst [vmem:[%s307 + $0xc8] sm:$0xff] %v358
                  %v360 = vld [vmem:[%s306 + $0x9c0] sm:$0xff]
                  %361 = vst [vmem:[%s307 + $0xd0] sm:$0xff] %v360
                  %v362 = vld [vmem:[%s306 + $0xa20] sm:$0xff]
                  %363 = vst [vmem:[%s307 + $0xd8] sm:$0xff] %v362
                  %v364 = vld [vmem:[%s306 + $0xa80] sm:$0xff]
                  %365 = vst [vmem:[%s307 + $0xe0] sm:$0xff] %v364
                  %v366 = vld [vmem:[%s306 + $0xae0] sm:$0xff]
                  %367 = vst [vmem:[%s307 + $0xe8] sm:$0xff] %v366
                  %v368 = vld [vmem:[%s306 + $0xb40] sm:$0xff]
                  %369 = vst [vmem:[%s307 + $0xf0] sm:$0xff] %v368
                  %v370 = vld [vmem:[%s306 + $0xba0] sm:$0xff]
                  %371 = vst [vmem:[%s307 + $0xf8] sm:$0xff] %v370
                $region86: #{bert_forward.15} parent=80 // loop_footer
                  %s305 = sadd.s32 1, %s301
                $region87: #{bert_forward.15} parent=80 // loop_footer_branch
                  %300 = sbr.rel target = $region83
                $region88: #{bert_forward.15} parent=80 // loop_exit
                  _
              $region81: #{bert_forward.15} parent=65 // pred_fallthru
                _
              // Predicated region
              $region89: #{bert_forward.15} parent=65 // pred_check
                _
              $region90: #{bert_forward.15} parent=65 // pred_check_branch
                %373 = sbr.rel target = $region92
              $region91: #{bert_forward.15} parent=65 // pred_region
                _
              $region92: #{bert_forward.15} parent=65 // pred_fallthru
                _
            $region66: #{bert_forward.15} parent=61 // pred_fallthru
              _
            // Predicated region
            $region67: #{bert_forward.15} parent=61 // pred_check
              _
            $region68: #{bert_forward.15} parent=61 // pred_check_branch
              %224 = sbr.rel target = $region70
            $region69: #{bert_forward.15} parent=61 // pred_region
              loop: start=0, step=1, limit=1
              $region71: #{bert_forward.15} parent=69 // loop_pre_header
                _
              $region72: #{bert_forward.15} parent=69 // loop_header
                %s227 = sphi 0, %s231
                %p228 = scmp.ge.s32.totalorder %s227, 1
                %s232 = sphi %s218, %s218
                %s233 = sphi %s212, %s212
              $region73: #{bert_forward.15} parent=69 // loop_header_branch
                %230 = sbr.rel (%p228) target = $region77
              $region74: #{bert_forward.15} parent=69 // loop_body
                %v234 = vld [vmem:[%s232] sm:$0xff]
                %235 = vst [vmem:[%s233] sm:$0xff] %v234
                %v236 = vld [vmem:[%s232 + $0x60] sm:$0xff]
                %237 = vst [vmem:[%s233 + $0x8] sm:$0xff] %v236
                %v238 = vld [vmem:[%s232 + $0xc0] sm:$0xff]
                %239 = vst [vmem:[%s233 + $0x10] sm:$0xff] %v238
                %v240 = vld [vmem:[%s232 + $0x120] sm:$0xff]
                %241 = vst [vmem:[%s233 + $0x18] sm:$0xff] %v240
                %v242 = vld [vmem:[%s232 + $0x180] sm:$0xff]
                %243 = vst [vmem:[%s233 + $0x20] sm:$0xff] %v242
                %v244 = vld [vmem:[%s232 + $0x1e0] sm:$0xff]
                %245 = vst [vmem:[%s233 + $0x28] sm:$0xff] %v244
                %v246 = vld [vmem:[%s232 + $0x240] sm:$0xff]
                %247 = vst [vmem:[%s233 + $0x30] sm:$0xff] %v246
                %v248 = vld [vmem:[%s232 + $0x2a0] sm:$0xff]
                %249 = vst [vmem:[%s233 + $0x38] sm:$0xff] %v248
                %v250 = vld [vmem:[%s232 + $0x300] sm:$0xff]
                %251 = vst [vmem:[%s233 + $0x40] sm:$0xff] %v250
                %v252 = vld [vmem:[%s232 + $0x360] sm:$0xff]
                %253 = vst [vmem:[%s233 + $0x48] sm:$0xff] %v252
                %v254 = vld [vmem:[%s232 + $0x3c0] sm:$0xff]
                %255 = vst [vmem:[%s233 + $0x50] sm:$0xff] %v254
                %v256 = vld [vmem:[%s232 + $0x420] sm:$0xff]
                %257 = vst [vmem:[%s233 + $0x58] sm:$0xff] %v256
                %v258 = vld [vmem:[%s232 + $0x480] sm:$0xff]
                %259 = vst [vmem:[%s233 + $0x60] sm:$0xff] %v258
                %v260 = vld [vmem:[%s232 + $0x4e0] sm:$0xff]
                %261 = vst [vmem:[%s233 + $0x68] sm:$0xff] %v260
                %v262 = vld [vmem:[%s232 + $0x540] sm:$0xff]
                %263 = vst [vmem:[%s233 + $0x70] sm:$0xff] %v262
                %v264 = vld [vmem:[%s232 + $0x5a0] sm:$0xff]
                %265 = vst [vmem:[%s233 + $0x78] sm:$0xff] %v264
                %v266 = vld [vmem:[%s232 + $0x600] sm:$0xff]
                %267 = vst [vmem:[%s233 + $0x80] sm:$0xff] %v266
                %v268 = vld [vmem:[%s232 + $0x660] sm:$0xff]
                %269 = vst [vmem:[%s233 + $0x88] sm:$0xff] %v268
                %v270 = vld [vmem:[%s232 + $0x6c0] sm:$0xff]
                %271 = vst [vmem:[%s233 + $0x90] sm:$0xff] %v270
                %v272 = vld [vmem:[%s232 + $0x720] sm:$0xff]
                %273 = vst [vmem:[%s233 + $0x98] sm:$0xff] %v272
                %v274 = vld [vmem:[%s232 + $0x780] sm:$0xff]
                %275 = vst [vmem:[%s233 + $0xa0] sm:$0xff] %v274
                %v276 = vld [vmem:[%s232 + $0x7e0] sm:$0xff]
                %277 = vst [vmem:[%s233 + $0xa8] sm:$0xff] %v276
                %v278 = vld [vmem:[%s232 + $0x840] sm:$0xff]
                %279 = vst [vmem:[%s233 + $0xb0] sm:$0xff] %v278
                %v280 = vld [vmem:[%s232 + $0x8a0] sm:$0xff]
                %281 = vst [vmem:[%s233 + $0xb8] sm:$0xff] %v280
                %v282 = vld [vmem:[%s232 + $0x900] sm:$0xff]
                %283 = vst [vmem:[%s233 + $0xc0] sm:$0xff] %v282
                %v284 = vld [vmem:[%s232 + $0x960] sm:$0xff]
                %285 = vst [vmem:[%s233 + $0xc8] sm:$0xff] %v284
                %v286 = vld [vmem:[%s232 + $0x9c0] sm:$0xff]
                %287 = vst [vmem:[%s233 + $0xd0] sm:$0xff] %v286
                %v288 = vld [vmem:[%s232 + $0xa20] sm:$0xff]
                %289 = vst [vmem:[%s233 + $0xd8] sm:$0xff] %v288
                %v290 = vld [vmem:[%s232 + $0xa80] sm:$0xff]
                %291 = vst [vmem:[%s233 + $0xe0] sm:$0xff] %v290
                %v292 = vld [vmem:[%s232 + $0xae0] sm:$0xff]
                %293 = vst [vmem:[%s233 + $0xe8] sm:$0xff] %v292
                %v294 = vld [vmem:[%s232 + $0xb40] sm:$0xff]
                %295 = vst [vmem:[%s233 + $0xf0] sm:$0xff] %v294
                %v296 = vld [vmem:[%s232 + $0xba0] sm:$0xff]
                %297 = vst [vmem:[%s233 + $0xf8] sm:$0xff] %v296
              $region75: #{bert_forward.15} parent=69 // loop_footer
                %s231 = sadd.s32 1, %s227
              $region76: #{bert_forward.15} parent=69 // loop_footer_branch
                %226 = sbr.rel target = $region72
              $region77: #{bert_forward.15} parent=69 // loop_exit
                _
            $region70: #{bert_forward.15} parent=61 // pred_fallthru
              _
          $region62: #{bert_forward.15} parent=57 // pred_fallthru
            _
          %374 = vnop
        $region58: #{bert_forward.15} parent=15 // pred_fallthru
          _
        // Predicated region
        $region93: #{bert_forward.15} parent=15 // pred_check
          %p375 = pneg %p104
        $region94: #{bert_forward.15} parent=15 // pred_check_branch
          %377 = sbr.rel (%p375) target = $region96
        $region95: #{bert_forward.15} parent=15 // pred_region
          %s378 = smul.u32 2, %s17
          %p379 = scmp.lt.s32.totalorder %s378, 23
          %s380 = scalar_select %p379, %s378, 23
          %s381 = scalar_lea.vmem %s2, %s380
          %s382 = smul.u32 2, %s17
        $region96: #{bert_forward.15} parent=15 // pred_fallthru
          _
      $region16: #{bert_forward.15} parent=5 // pred_fallthru
        _
      %p383 = scmp.le.s32.totalorder 1, %s9
      %p384 = scmp.lt.s32.totalorder %s9, 37
      %p385 = pnand %p383, %p384
      %p386 = pneg %p385
      // Predicated region
      $region97: #{bert_forward.15} parent=5 // pred_check
        _
      $region98: #{bert_forward.15} parent=5 // pred_check_branch
        %388 = sbr.rel (%p385) target = $region100
      $region99: #{bert_forward.15} parent=5 // pred_region
        %s389 = ssub.s32 %s9, 1
        %s390 = sand.u32 %s43, 1
        %s391 = sand.u32 %s43, 1
        %s392 = smul.addr %s391, 16
        %s393 = scalar_lea.vmem [#allocation3], %s392
        // Predicated region
        $region101: #{bert_forward.15} parent=99 // pred_check
          %p394 = pneg %p56
        $region102: #{bert_forward.15} parent=99 // pred_check_branch
          %396 = sbr.rel (%p394) target = $region104
        $region103: #{bert_forward.15} parent=99 // pred_region
          _
        $region104: #{bert_forward.15} parent=99 // pred_fallthru
          _
        %s397 = sand.u32 %s71, 1
        %s398 = sand.u32 %s71, 1
        %s399 = smul.addr %s398, 256
        %s400 = scalar_lea.vmem [#allocation4], %s399
        // Predicated region
        $region105: #{bert_forward.15} parent=99 // pred_check
          %p401 = pneg %p84
        $region106: #{bert_forward.15} parent=99 // pred_check_branch
          %403 = sbr.rel (%p401) target = $region108
        $region107: #{bert_forward.15} parent=99 // pred_region
          _
        $region108: #{bert_forward.15} parent=99 // pred_fallthru
          _
        %s404 = sand.u32 %s43, 1
        %s405 = sand.u32 %s43, 1
        %s406 = smul.addr %s405, 16
        %s407 = scalar_lea.vmem [#allocation3], %s406
        %p408 = pneg %p56
        %p409 = pneg %p53
        %s410 = sand.u32 %s71, 1
        %s411 = sand.u32 %s71, 1
        %s412 = smul.addr %s411, 256
        %s413 = scalar_lea.vmem [#allocation4], %s412
        %p414 = pneg %p84
        %p415 = pneg %p81
        %s416 = smul.u32 2, %s20
        %p417 = scmp.lt.s32.totalorder %s416, 23
        %s418 = scalar_select %p417, %s416, 23
        %s419 = scalar_lea.vmem %s2, %s418
        %p420 = pneg %p110
        %p421 = pneg %p107
        %p422 = pneg %p138
        %p423 = pneg %p135
        %s424 = sand.u32 %s125, 1
        %s425 = sand.u32 %s125, 1
        %s426 = smul.addr %s425, 16
        %s427 = scalar_lea.vmem [#allocation5], %s426
        %s428 = smul.u32 2, %s19
        %s429 = smul.u32 2, %s21
        %s430 = smul.u32 32, %s21
        %s431 = smul.u32 2, %s20
        %s432 = smul.u32 2, %s20
        %p433 = scmp.lt.s32.totalorder %s432, 23
        %s434 = scalar_select %p433, %s432, 23
        %s435 = scalar_lea.vmem %s2, %s434
        %s436 = smul.u32 2, %s20
        %s437 = smul.u32 2, %s19
        %s438 = smul.u32 2, %s20
        %p439 = scmp.eq.s32.totalorder %s21, 0
        // Predicated region
        $region109: #{bert_forward.15} parent=99 // pred_check
          %p440 = pneg %p439
        $region110: #{bert_forward.15} parent=99 // pred_check_branch
          %442 = sbr.rel (%p440) target = $region112
        $region111: #{bert_forward.15} parent=99 // pred_region
          %443 = vst [vmem:[#allocation2] sm:$0xff] 0.0
          %444 = vst [vmem:[#allocation2 + $0x8] sm:$0xff] 0.0
          %445 = vst [vmem:[#allocation2 + $0x10] sm:$0xff] 0.0
          %446 = vst [vmem:[#allocation2 + $0x18] sm:$0xff] 0.0
        $region112: #{bert_forward.15} parent=99 // pred_fallthru
          _
        %v447 = vld [vmem:[#allocation2] sm:$0xff]
        %v448 = vld [vmem:[#allocation2 + $0x8] sm:$0xff]
        %v449 = vld [vmem:[#allocation2 + $0x10] sm:$0xff]
        %v450 = vld [vmem:[#allocation2 + $0x18] sm:$0xff]
        %v451 = vld [vmem:[%s393] sm:$0xff]
        %v452 = vld [vmem:[%s393 + $0x8] sm:$0xff]
        %v453 = vld [vmem:[%s400] sm:$0xff]
        %v454 = vld [vmem:[%s400 + $0x8] sm:$0xff]
        %v455 = vld [vmem:[%s400 + $0x10] sm:$0xff]
        %v456 = vld [vmem:[%s400 + $0x18] sm:$0xff]
        %v457 = vld [vmem:[%s400 + $0x20] sm:$0xff]
        %v458 = vld [vmem:[%s400 + $0x28] sm:$0xff]
        %v459 = vld [vmem:[%s400 + $0x30] sm:$0xff]
        %v460 = vld [vmem:[%s400 + $0x38] sm:$0xff]
        %v461 = vld [vmem:[%s400 + $0x40] sm:$0xff]
        %v462 = vld [vmem:[%s400 + $0x48] sm:$0xff]
        %v463 = vld [vmem:[%s400 + $0x50] sm:$0xff]
        %v464 = vld [vmem:[%s400 + $0x58] sm:$0xff]
        %v465 = vld [vmem:[%s400 + $0x60] sm:$0xff]
        %v466 = vld [vmem:[%s400 + $0x68] sm:$0xff]
        %v467 = vld [vmem:[%s400 + $0x70] sm:$0xff]
        %v468 = vld [vmem:[%s400 + $0x78] sm:$0xff]
        %v469 = vld [vmem:[%s400 + $0x80] sm:$0xff]
        %v470 = vld [vmem:[%s400 + $0x88] sm:$0xff]
        %v471 = vld [vmem:[%s400 + $0x90] sm:$0xff]
        %v472 = vld [vmem:[%s400 + $0x98] sm:$0xff]
        %v473 = vld [vmem:[%s400 + $0xa0] sm:$0xff]
        %v474 = vld [vmem:[%s400 + $0xa8] sm:$0xff]
        %v475 = vld [vmem:[%s400 + $0xb0] sm:$0xff]
        %v476 = vld [vmem:[%s400 + $0xb8] sm:$0xff]
        %v477 = vld [vmem:[%s400 + $0xc0] sm:$0xff]
        %v478 = vld [vmem:[%s400 + $0xc8] sm:$0xff]
        %v479 = vld [vmem:[%s400 + $0xd0] sm:$0xff]
        %v480 = vld [vmem:[%s400 + $0xd8] sm:$0xff]
        %v481 = vld [vmem:[%s400 + $0xe0] sm:$0xff]
        %v482 = vld [vmem:[%s400 + $0xe8] sm:$0xff]
        %v483 = vld [vmem:[%s400 + $0xf0] sm:$0xff]
        %v484 = vld [vmem:[%s400 + $0xf8] sm:$0xff]
        %v487 = vunpack.c.l.b16 %v451
        %v488 = vunpack.c.h.b16 %v451
        %v489 = vunpack.c.l.b16 %v452
        %v490 = vunpack.c.h.b16 %v452
        %v491 = vpack.c.b16 %v489, %v487
        %v492 = vpack.c.b16 %v490, %v488
        %v527 = vunpack.c.l.b16 %v453
        %v528 = vunpack.c.h.b16 %v453
        %v529 = vunpack.c.l.b16 %v454
        %v530 = vunpack.c.h.b16 %v454
        %v531 = vunpack.c.l.b16 %v455
        %v532 = vunpack.c.h.b16 %v455
        %v533 = vunpack.c.l.b16 %v456
        %v534 = vunpack.c.h.b16 %v456
        %v535 = vunpack.c.l.b16 %v457
        %v536 = vunpack.c.h.b16 %v457
        %v537 = vunpack.c.l.b16 %v458
        %v538 = vunpack.c.h.b16 %v458
        %v539 = vunpack.c.l.b16 %v459
        %v540 = vunpack.c.h.b16 %v459
        %v541 = vunpack.c.l.b16 %v460
        %v542 = vunpack.c.h.b16 %v460
        %v543 = vunpack.c.l.b16 %v461
        %v544 = vunpack.c.h.b16 %v461
        %v545 = vunpack.c.l.b16 %v462
        %v546 = vunpack.c.h.b16 %v462
        %v547 = vunpack.c.l.b16 %v463
        %v548 = vunpack.c.h.b16 %v463
        %v549 = vunpack.c.l.b16 %v464
        %v550 = vunpack.c.h.b16 %v464
        %v551 = vunpack.c.l.b16 %v465
        %v552 = vunpack.c.h.b16 %v465
        %v553 = vunpack.c.l.b16 %v466
        %v554 = vunpack.c.h.b16 %v466
        %v555 = vunpack.c.l.b16 %v467
        %v556 = vunpack.c.h.b16 %v467
        %v557 = vunpack.c.l.b16 %v468
        %v558 = vunpack.c.h.b16 %v468
        %v559 = vunpack.c.l.b16 %v469
        %v560 = vunpack.c.h.b16 %v469
        %v561 = vunpack.c.l.b16 %v470
        %v562 = vunpack.c.h.b16 %v470
        %v563 = vunpack.c.l.b16 %v471
        %v564 = vunpack.c.h.b16 %v471
        %v565 = vunpack.c.l.b16 %v472
        %v566 = vunpack.c.h.b16 %v472
        %v567 = vunpack.c.l.b16 %v473
        %v568 = vunpack.c.h.b16 %v473
        %v569 = vunpack.c.l.b16 %v474
        %v570 = vunpack.c.h.b16 %v474
        %v571 = vunpack.c.l.b16 %v475
        %v572 = vunpack.c.h.b16 %v475
        %v573 = vunpack.c.l.b16 %v476
        %v574 = vunpack.c.h.b16 %v476
        %v575 = vunpack.c.l.b16 %v477
        %v576 = vunpack.c.h.b16 %v477
        %v577 = vunpack.c.l.b16 %v478
        %v578 = vunpack.c.h.b16 %v478
        %v579 = vunpack.c.l.b16 %v479
        %v580 = vunpack.c.h.b16 %v479
        %v581 = vunpack.c.l.b16 %v480
        %v582 = vunpack.c.h.b16 %v480
        %v583 = vunpack.c.l.b16 %v481
        %v584 = vunpack.c.h.b16 %v481
        %v585 = vunpack.c.l.b16 %v482
        %v586 = vunpack.c.h.b16 %v482
        %v587 = vunpack.c.l.b16 %v483
        %v588 = vunpack.c.h.b16 %v483
        %v589 = vunpack.c.l.b16 %v484
        %v590 = vunpack.c.h.b16 %v484
        %v591 = vpack.c.b16 %v529, %v527
        %v592 = vpack.c.b16 %v530, %v528
        %v593 = vpack.c.b16 %v533, %v531
        %v594 = vpack.c.b16 %v534, %v532
        %v595 = vpack.c.b16 %v537, %v535
        %v596 = vpack.c.b16 %v538, %v536
        %v597 = vpack.c.b16 %v541, %v539
        %v598 = vpack.c.b16 %v542, %v540
        %v599 = vpack.c.b16 %v545, %v543
        %v600 = vpack.c.b16 %v546, %v544
        %v601 = vpack.c.b16 %v549, %v547
        %v602 = vpack.c.b16 %v550, %v548
        %v603 = vpack.c.b16 %v553, %v551
        %v604 = vpack.c.b16 %v554, %v552
        %v605 = vpack.c.b16 %v557, %v555
        %v606 = vpack.c.b16 %v558, %v556
        %v607 = vpack.c.b16 %v561, %v559
        %v608 = vpack.c.b16 %v562, %v560
        %v609 = vpack.c.b16 %v565, %v563
        %v610 = vpack.c.b16 %v566, %v564
        %v611 = vpack.c.b16 %v569, %v567
        %v612 = vpack.c.b16 %v570, %v568
        %v613 = vpack.c.b16 %v573, %v571
        %v614 = vpack.c.b16 %v574, %v572
        %v615 = vpack.c.b16 %v577, %v575
        %v616 = vpack.c.b16 %v578, %v576
        %v617 = vpack.c.b16 %v581, %v579
        %v618 = vpack.c.b16 %v582, %v580
        %v619 = vpack.c.b16 %v585, %v583
        %v620 = vpack.c.b16 %v586, %v584
        %v621 = vpack.c.b16 %v589, %v587
        %v622 = vpack.c.b16 %v590, %v588
        %655 = vmatprep.subr.bf16.mxu0 %v592
        %656 = vmatpush1.bf16.msra.mxu0 %v591
        %657 = vmatprep.subr.bf16.mxu0 %v594
        %658 = vmatpush1.bf16.msra.mxu0 %v593
        %659 = vmatprep.subr.bf16.mxu0 %v596
        %660 = vmatpush1.bf16.msra.mxu0 %v595
        %661 = vmatprep.subr.bf16.mxu0 %v598
        %662 = vmatpush1.bf16.msra.mxu0 %v597
        %663 = vmatprep.subr.bf16.mxu0 %v600
        %664 = vmatpush1.bf16.msra.mxu0 %v599
        %665 = vmatprep.subr.bf16.mxu0 %v602
        %666 = vmatpush1.bf16.msra.mxu0 %v601
        %667 = vmatprep.subr.bf16.mxu0 %v604
        %668 = vmatpush1.bf16.msra.mxu0 %v603
        %669 = vmatprep.subr.bf16.mxu0 %v606
        %670 = vmatpush1.bf16.msra.mxu0 %v605
        %671 = vmatprep.subr.bf16.mxu0 %v608
        %672 = vmatpush1.bf16.msra.mxu0 %v607
        %673 = vmatprep.subr.bf16.mxu0 %v610
        %674 = vmatpush1.bf16.msra.mxu0 %v609
        %675 = vmatprep.subr.bf16.mxu0 %v612
        %676 = vmatpush1.bf16.msra.mxu0 %v611
        %677 = vmatprep.subr.bf16.mxu0 %v614
        %678 = vmatpush1.bf16.msra.mxu0 %v613
        %679 = vmatprep.subr.bf16.mxu0 %v616
        %680 = vmatpush1.bf16.msra.mxu0 %v615
        %681 = vmatprep.subr.bf16.mxu0 %v618
        %682 = vmatpush1.bf16.msra.mxu0 %v617
        %683 = vmatprep.subr.bf16.mxu0 %v620
        %684 = vmatpush1.bf16.msra.mxu0 %v619
        %685 = vmatprep.subr.bf16.mxu0 %v622
        %686 = vmatpush1.bf16.msra.mxu0 %v621
        %687 = vmatprep.mubr.bf16.mxu0 %v492
        %688 = vmatmul.mubr.bf16.gmra.mrb[0].mxu0 %v491
        %v689 = vpop.f32.mrb[0].mxu0
        %v690 = vadd.f32 0.0, %v689
        %v691 = vpop.f32.mrb[0].mxu0
        %v692 = vadd.f32 0.0, %v691
        %v693 = vpop.f32.mrb[0].mxu0
        %v694 = vadd.f32 0.0, %v693
        %v695 = vpop.f32.mrb[0].mxu0
        %v696 = vadd.f32 0.0, %v695
        %697 = vdwg.mxu0
        %v698 = vadd.f32 %v447, %v690
        %v699 = vadd.f32 %v448, %v692
        %v700 = vadd.f32 %v449, %v694
        %v701 = vadd.f32 %v450, %v696
        %702 = vst [vmem:[#allocation2] sm:$0xff] %v698
        %703 = vst [vmem:[#allocation2 + $0x8] sm:$0xff] %v699
        %704 = vst [vmem:[#allocation2 + $0x10] sm:$0xff] %v700
        %705 = vst [vmem:[#allocation2 + $0x18] sm:$0xff] %v701
        %p706 = scmp.eq.s32.totalorder %s21, 2
        // Predicated region
        $region113: #{bert_forward.15} parent=99 // pred_check
          %p707 = pneg %p706
        $region114: #{bert_forward.15} parent=99 // pred_check_branch
          %709 = sbr.rel (%p707) target = $region116
        $region115: #{bert_forward.15} parent=99 // pred_region
          %v710 = vld [vmem:[#allocation2] sm:$0xff]
          %v711 = vld [vmem:[#allocation2 + $0x8] sm:$0xff]
          %v712 = vld [vmem:[#allocation2 + $0x10] sm:$0xff]
          %v713 = vld [vmem:[#allocation2 + $0x18] sm:$0xff]
          %v714 = vld [vmem:[%s435] sm:$0x3]
          %v716 = vlaneseq
          %v717 = vshrl.u32 %v716, 7
          %v718 = vsub.s32 0, %v717
          %v719 = vrot.slane %v714, %v718
          %v720 = vlaneseq
          %v721 = vshrl.u32 %v720, 7
          %v722 = vsub.s32 1, %v721
          %v723 = vrot.slane %v714, %v722
          %v726 = vadd.f32 %v710, %v719
          %v727 = vadd.f32 %v711, %v723
          %v728 = vadd.f32 %v712, %v719
          %v729 = vadd.f32 %v713, %v723
          %v730 = vmul.f32 %v726, 0.5
          %v731 = vmul.f32 %v727, 0.5
          %v732 = vmul.f32 %v728, 0.5
          %v733 = vmul.f32 %v729, 0.5
          %v734 = vmul.f32 %v726, 0.70710677
          %v735 = vmul.f32 %v727, 0.70710677
          %v736 = vmul.f32 %v728, 0.70710677
          %v737 = vmul.f32 %v729, 0.70710677
          %v738 = verf.f32.pop %v734
          %v739 = verf.f32.pop %v735
          %v740 = verf.f32.pop %v736
          %v741 = verf.f32.pop %v737
          %v742 = vadd.f32 %v738, 1.0
          %v743 = vadd.f32 %v739, 1.0
          %v744 = vadd.f32 %v740, 1.0
          %v745 = vadd.f32 %v741, 1.0
          %v746 = vmul.f32 %v730, %v742
          %v747 = vmul.f32 %v731, %v743
          %v748 = vmul.f32 %v732, %v744
          %v749 = vmul.f32 %v733, %v745
          %v750 = vpack.c.bf16 %v748, %v746
          %v751 = vpack.c.bf16 %v749, %v747
          %v754 = vunpack.c.l.b16 %v750
          %v755 = vunpack.c.l.b16 %v751
          %v756 = vunpack.c.h.b16 %v750
          %v757 = vunpack.c.h.b16 %v751
          %v758 = vpack.c.b16 %v755, %v754
          %v759 = vpack.c.b16 %v757, %v756
          %762 = vst [vmem:[%s427] sm:$0xff] %v758
          %763 = vst [vmem:[%s427 + $0x8] sm:$0xff] %v759
        $region116: #{bert_forward.15} parent=99 // pred_fallthru
          _
        %s764 = sand.u32 %s125, 1
        %s765 = sand.u32 %s125, 1
        %s766 = smul.addr %s765, 16
        %s767 = scalar_lea.vmem [#allocation5], %s766
        // Predicated region
        $region117: #{bert_forward.15} parent=99 // pred_check
          %p768 = pneg %p135
        $region118: #{bert_forward.15} parent=99 // pred_check_branch
          %770 = sbr.rel (%p768) target = $region120
        $region119: #{bert_forward.15} parent=99 // pred_region
          %s771 = smul.u32 2, %s19
          %s772 = smul.u32 2, %s20
          %s773 = smul.addr %s771, 24
          %s774 = sadd.s32 %s772, %s773
          %s775 = smul.addr %s774, 4
          %s776 = scalar_lea.vmem %s3, %s775
          // Predicated region
          $region121: #{bert_forward.15} parent=119 // pred_check
            _
          $region122: #{bert_forward.15} parent=119 // pred_check_branch
            %778 = sbr.rel (0) target = $region124
          $region123: #{bert_forward.15} parent=119 // pred_region
            // Predicated region
            $region125: #{bert_forward.15} parent=123 // pred_check
              _
            $region126: #{bert_forward.15} parent=123 // pred_check_branch
              %780 = sbr.rel (0) target = $region128
            $region127: #{bert_forward.15} parent=123 // pred_region
              // Predicated region
              $region140: #{bert_forward.15} parent=127 // pred_check
                _
              $region141: #{bert_forward.15} parent=127 // pred_check_branch
                %797 = sbr.rel (0) target = $region143
              $region142: #{bert_forward.15} parent=127 // pred_region
                loop: start=0, step=1, limit=1
                $region144: #{bert_forward.15} parent=142 // loop_pre_header
                  _
                $region145: #{bert_forward.15} parent=142 // loop_header
                  %s799 = sphi 0, %s803
                  %p800 = scmp.ge.s32.totalorder %s799, 1
                  %s804 = sphi %s767, %s767
                  %s805 = sphi %s776, %s776
                $region146: #{bert_forward.15} parent=142 // loop_header_branch
                  %802 = sbr.rel (%p800) target = $region150
                $region147: #{bert_forward.15} parent=142 // loop_body
                  %v806 = vld [vmem:[%s804] sm:$0xff]
                  %807 = vst [vmem:[%s805] sm:$0xff] %v806
                  %v808 = vld [vmem:[%s804 + $0x8] sm:$0xff]
                  %809 = vst [vmem:[%s805 + $0x60] sm:$0xff] %v808
                $region148: #{bert_forward.15} parent=142 // loop_footer
                  %s803 = sadd.s32 1, %s799
                $region149: #{bert_forward.15} parent=142 // loop_footer_branch
                  %798 = sbr.rel target = $region145
                $region150: #{bert_forward.15} parent=142 // loop_exit
                  _
              $region143: #{bert_forward.15} parent=127 // pred_fallthru
                _
              // Predicated region
              $region151: #{bert_forward.15} parent=127 // pred_check
                _
              $region152: #{bert_forward.15} parent=127 // pred_check_branch
                %811 = sbr.rel target = $region154
              $region153: #{bert_forward.15} parent=127 // pred_region
                _
              $region154: #{bert_forward.15} parent=127 // pred_fallthru
                _
            $region128: #{bert_forward.15} parent=123 // pred_fallthru
              _
            // Predicated region
            $region129: #{bert_forward.15} parent=123 // pred_check
              _
            $region130: #{bert_forward.15} parent=123 // pred_check_branch
              %782 = sbr.rel target = $region132
            $region131: #{bert_forward.15} parent=123 // pred_region
              loop: start=0, step=1, limit=1
              $region133: #{bert_forward.15} parent=131 // loop_pre_header
                _
              $region134: #{bert_forward.15} parent=131 // loop_header
                %s785 = sphi 0, %s789
                %p786 = scmp.ge.s32.totalorder %s785, 1
                %s790 = sphi %s767, %s767
                %s791 = sphi %s776, %s776
              $region135: #{bert_forward.15} parent=131 // loop_header_branch
                %788 = sbr.rel (%p786) target = $region139
              $region136: #{bert_forward.15} parent=131 // loop_body
                %v792 = vld [vmem:[%s790] sm:$0xff]
                %793 = vst [vmem:[%s791] sm:$0xff] %v792
                %v794 = vld [vmem:[%s790 + $0x8] sm:$0xff]
                %795 = vst [vmem:[%s791 + $0x60] sm:$0xff] %v794
              $region137: #{bert_forward.15} parent=131 // loop_footer
                %s789 = sadd.s32 1, %s785
              $region138: #{bert_forward.15} parent=131 // loop_footer_branch
                %784 = sbr.rel target = $region134
              $region139: #{bert_forward.15} parent=131 // loop_exit
                _
            $region132: #{bert_forward.15} parent=123 // pred_fallthru
              _
          $region124: #{bert_forward.15} parent=119 // pred_fallthru
            _
          %812 = vnop
        $region120: #{bert_forward.15} parent=99 // pred_fallthru
          _
      $region100: #{bert_forward.15} parent=5 // pred_fallthru
        _
      %p813 = scmp.le.s32.totalorder 2, %s9
      // Predicated region
      $region155: #{bert_forward.15} parent=5 // pred_check
        %p814 = pneg %p813
      $region156: #{bert_forward.15} parent=5 // pred_check_branch
        %816 = sbr.rel (%p814) target = $region158
      $region157: #{bert_forward.15} parent=5 // pred_region
        %s817 = ssub.s32 %s9, 2
        // Predicated region
        $region159: #{bert_forward.15} parent=157 // pred_check
          %p818 = pneg %p141
        $region160: #{bert_forward.15} parent=157 // pred_check_branch
          %820 = sbr.rel (%p818) target = $region162
        $region161: #{bert_forward.15} parent=157 // pred_region
          %s821 = sand.u32 %s126, 1
          %s822 = sand.u32 %s126, 1
          %s823 = smul.addr %s822, 16
          %s824 = scalar_lea.vmem [#allocation5], %s823
        $region162: #{bert_forward.15} parent=157 // pred_fallthru
          _
      $region158: #{bert_forward.15} parent=5 // pred_fallthru
        _
    $region6: #{bert_forward.15} parent=1 // loop_footer
      %s13 = sadd.s32 1, %s9
    $region7: #{bert_forward.15} parent=1 // loop_footer_branch
      %8 = sbr.rel target = $region3
    $region8: #{bert_forward.15} parent=1 // loop_exit
      _

</llo_original>
